<compile_context>
chip_gen: v7x
topology: tpu7x:2x2x1
jax: 0.10.0
libtpu: 0.0.40
codegen_flags: <defaults>
</compile_context>

<pallas_src>
import functools

import jax
import jax.numpy as jnp
from jax.experimental import pallas as pl
from jax.experimental.pallas import tpu as pltpu

_CP = 128                      # padded (lane-dense) channel count
_INV_SQRT2 = 0.7071067811865476

# ---- packed-parameter layout -------------------------------------------------
# vector pack rows (shape (_NV, _CP)):
_R_BQ, _R_BK, _R_BV = 0, 1, 2
_R_BL = 3
_R_BDH, _R_BDV = 4, 5          # sc_h / sc_v depthwise biases
_R_BHVC = 6                    # fused (bph + bpv) @ Wch + bch
_R_BO, _R_BP = 7, 8
_R_LNG, _R_LNB = 9, 10
_R_DSC_DB, _R_DSC_PB = 11, 12
_R_SCH = 13                    # 5 rows: sc_h (5,1) depthwise taps
_R_SCV = 18                    # 5 rows: sc_v (1,5) depthwise taps
_R_DSC = 23                    # 9 rows: dsc 3x3 depthwise taps
_NV = 32

# matrix pack 128-column blocks (shape (_CP, _NM*_CP)):
# [0..2]=Wq|Wk|Wv  3=Wl  4=Wph@Wch  5=Wpv@Wch  6=Wo  7=Wp  8=Wdsc_pw
_M_L, _M_PH, _M_PV, _M_O, _M_P, _M_DSC = 3, 4, 5, 6, 7, 8
_NM = 9


# ----------------------------- in-kernel math --------------------------------
def _erf(x):
    # Abramowitz & Stegun 7.1.26 rational approximation (abs err ~1.5e-7);
    # avoids depending on lax.erf lowering inside Mosaic.
    a1, a2, a3, a4, a5 = (0.254829592, -0.284496736, 1.421413741,
                          -1.453152027, 1.061405429)
    p = 0.3275911
    sgn = jnp.where(x >= 0.0, 1.0, -1.0)
    z = jnp.abs(x)
    t = 1.0 / (1.0 + p * z)
    poly = ((((a5 * t + a4) * t + a3) * t + a2) * t + a1) * t
    return sgn * (1.0 - poly * jnp.exp(-z * z))


def _gelu(x):
    # matches torch.nn.GELU() default (exact, erf-based) up to ~1e-7
    return 0.5 * x * (1.0 + _erf(x * _INV_SQRT2))


def _softmax(s):
    m = jnp.max(s, axis=-1, keepdims=True)
    e = jnp.exp(s - m)
    denom = jnp.sum(e, axis=-1, keepdims=True)
    return e * pl.reciprocal(denom, approx=True)   # EUP vrcp, off the VALU path


# ------------------------------- fused kernel --------------------------------
def _gcm_kernel(x_ref, w_ref, v_ref, out_ref, pad4_ref, pad2_ref, *,
                c_true, scale):
    # x_ref / out_ref blocks: (1, Hp, Wp, CP) channels-last, CP = 128 (padded).
    # w_ref: (CP, 9*CP) packed matrices; v_ref: (32, CP) packed biases + taps.
    _, hp, wp, cp = out_ref.shape
    n = hp * wp
    eps = 1e-5

    def col(i):                                  # (CP, CP) matrix block
        return w_ref[:, i * cp:(i + 1) * cp]

    def row(i):                                  # (CP,) vector row
        return v_ref[i, :]

    x_sp = x_ref[0]                              # (Hp, Wp, CP)
    x_fl = x_sp.reshape(n, cp)                   # (N, CP), layout no-op

    # ------------------------------ forward_lpg ------------------------------
    gap = jnp.mean(x_fl, axis=0, keepdims=True)  # AdaptiveAvgPool2d((1,1))
    xg = x_fl * gap
    qkv = jnp.dot(xg, w_ref[:, 0:3 * cp],        # fused Q/K/V projection
                  preferred_element_type=jnp.float32)
    q = qkv[:, 0:cp] + row(_R_BQ)
    k = qkv[:, cp:2 * cp] + row(_R_BK)
    v = qkv[:, 2 * cp:3 * cp] + row(_R_BV)
    # TODO(synk): tile this (N, N) attention flash-style before scaling H, W —
    # the fully materialized score matrix will not fit VMEM for large inputs.
    s = jnp.dot(q, k.T, preferred_element_type=jnp.float32) * scale
    ctx = jnp.dot(_softmax(s), v, preferred_element_type=jnp.float32)
    prompt_l = jnp.dot(ctx, col(_M_L),
                       preferred_element_type=jnp.float32) + row(_R_BL)

    # ------------------------------ forward_hpg ------------------------------
    # halo padding done in VMEM scratch (no jnp.pad / extra HBM tensor)
    pad4_ref[...] = jnp.zeros((hp + 4, wp + 4, cp), jnp.float32)
    pad4_ref[2:2 + hp, 2:2 + wp, :] = x_sp
    acc_h = jnp.zeros((hp, wp, cp), jnp.float32)
    acc_v = jnp.zeros((hp, wp, cp), jnp.float32)
    for t in range(5):                           # vectorized over the full map
        acc_h = acc_h + pad4_ref[t:t + hp, 2:2 + wp, :] * row(_R_SCH + t)
        acc_v = acc_v + pad4_ref[2:2 + hp, t:t + wp, :] * row(_R_SCV + t)
    xh = _gelu(acc_h + row(_R_BDH)).reshape(n, cp)
    xv = _gelu(acc_v + row(_R_BDV)).reshape(n, cp)
    # 1x1 convs of sc_h/sc_v folded with conv_h (weights pre-fused on host)
    prompt_h = (jnp.dot(xh, col(_M_PH), preferred_element_type=jnp.float32) +
                jnp.dot(xv, col(_M_PV), preferred_element_type=jnp.float32) +
                row(_R_BHVC))

    # ------------------------------ forward_pgc ------------------------------
    x_v = jnp.dot(x_fl, col(_M_O),
                  preferred_element_type=jnp.float32) + row(_R_BO)
    s2 = jnp.dot(prompt_h, prompt_l.T,
                 preferred_element_type=jnp.float32) * scale
    prompt = jnp.dot(_softmax(s2), x_v, preferred_element_type=jnp.float32)
    prompt = jnp.dot(prompt, col(_M_P),
                     preferred_element_type=jnp.float32) + row(_R_BP) + x_v
    # LayerNorm over the true C channels (padded lanes are exactly zero)
    inv_c = 1.0 / float(c_true)
    mu = jnp.sum(prompt, axis=-1, keepdims=True) * inv_c
    ex2 = jnp.sum(prompt * prompt, axis=-1, keepdims=True) * inv_c
    var = ex2 - mu * mu
    p_norm = ((prompt - mu) * jax.lax.rsqrt(var + eps)
              * row(_R_LNG) + row(_R_LNB))

    # ----------------------------- dsc + residual ----------------------------
    pad2_ref[...] = jnp.zeros((hp + 2, wp + 2, cp), jnp.float32)
    pad2_ref[1:1 + hp, 1:1 + wp, :] = p_norm.reshape(hp, wp, cp)
    acc = jnp.zeros((hp, wp, cp), jnp.float32)
    for i in range(3):
        for j in range(3):
            acc = acc + pad2_ref[i:i + hp, j:j + wp, :] * row(_R_DSC + i * 3 + j)
    g = _gelu(acc + row(_R_DSC_DB)).reshape(n, cp)
    y = jnp.dot(g, col(_M_DSC),
                preferred_element_type=jnp.float32) + row(_R_DSC_PB)
    out_ref[0] = (y + p_norm).reshape(hp, wp, cp)   # lane-dense (CP=128) store


# ------------------------------ parameter prep -------------------------------
def _pad_mat(w, cp):
    c_in, c_out = w.shape
    return jnp.zeros((cp, cp), jnp.float32).at[:c_in, :c_out].set(
        w.astype(jnp.float32))


def _pad_vec(v, cp):
    v = jnp.reshape(jnp.asarray(v, jnp.float32), (-1,))
    return jnp.zeros((cp,), jnp.float32).at[:v.shape[0]].set(v)


def prepare_params(p, cp=_CP):
    """Fuse + zero-pad raw per-layer params into two packed kernel inputs."""
    # fold sc_h/sc_v pointwise convs into conv_h (true-C math, then pad)
    wph_c = p["sch_pw_t"] @ p["convh_w_t"]
    wpv_c = p["scv_pw_t"] @ p["convh_w_t"]
    b_hvc = (p["sch_pb"] + p["scv_pb"]) @ p["convh_w_t"] + p["convh_b"]

    mats = [p["wq_t"], p["wk_t"], p["wv_t"], p["wl_t"], wph_c, wpv_c,
            p["wo_t"], p["wp_t"], p["dsc_pw_t"]]
    w_pack = jnp.concatenate([_pad_mat(m, cp) for m in mats], axis=1)

    rows = [p["bq"], p["bk"], p["bv"], p["bl"], p["sch_db"], p["scv_db"],
            b_hvc, p["bo"], p["bp"], p["ln_g"], p["ln_b"],
            p["dsc_db"], p["dsc_pb"]]
    rows += [p["sch_dw"][i] for i in range(5)]
    rows += [p["scv_dw"][i] for i in range(5)]
    rows += [p["dsc_dw"][i] for i in range(9)]
    v_pack = jnp.stack([_pad_vec(r, cp) for r in rows], axis=0)
    assert v_pack.shape == (_NV, cp) and w_pack.shape == (cp, _NM * cp)
    return {"w": w_pack, "v": v_pack}


def init_params(key, C):
    ks = iter(jax.random.split(key, 40))

    def nrm(shape, s):
        return jax.random.normal(next(ks), shape, jnp.float32) * s

    p = {}
    inv = 1.0 / (C ** 0.5)
    # Linear(C, C): torch weight (out, in); store transposed (in, out)
    for name in ("q", "k", "v", "l", "o", "p"):
        p[f"w{name}_t"] = nrm((C, C), inv).T
        p[f"b{name}"] = nrm((1, C), 0.02)
    # LayerNorm(C) — PyTorch default init
    p["ln_g"] = jnp.ones((1, C), jnp.float32)
    p["ln_b"] = jnp.zeros((1, C), jnp.float32)
    # sc_h: Conv2d(C,C,(5,1),padding=(2,0),groups=C) + GELU + Conv2d(C,C,1)
    p["sch_dw"] = nrm((C, 1, 5, 1), 0.2).reshape(C, 5).T          # (5, C)
    p["sch_db"] = nrm((1, C), 0.02)
    p["sch_pw_t"] = nrm((C, C, 1, 1), inv)[:, :, 0, 0].T
    p["sch_pb"] = nrm((1, C), 0.02)
    # sc_v: Conv2d(C,C,(1,5),padding=(0,2),groups=C) + GELU + Conv2d(C,C,1)
    p["scv_dw"] = nrm((C, 1, 1, 5), 0.2).reshape(C, 5).T
    p["scv_db"] = nrm((1, C), 0.02)
    p["scv_pw_t"] = nrm((C, C, 1, 1), inv)[:, :, 0, 0].T
    p["scv_pb"] = nrm((1, C), 0.02)
    # conv_h: Conv2d(C,C,1)
    p["convh_w_t"] = nrm((C, C, 1, 1), inv)[:, :, 0, 0].T
    p["convh_b"] = nrm((1, C), 0.02)
    # dsc: Conv2d(C,C,3,padding=1,groups=C) + GELU + Conv2d(C,C,1)
    p["dsc_dw"] = nrm((C, 1, 3, 3), 0.2).reshape(C, 9).T          # (9, C)
    p["dsc_db"] = nrm((1, C), 0.02)
    p["dsc_pw_t"] = nrm((C, C, 1, 1), inv)[:, :, 0, 0].T
    p["dsc_pb"] = nrm((1, C), 0.02)
    return p


# ------------------------------ JAX glue --------------------------------------
def _upsample_bilinear_x2_align_corners(x):
    # nn.Upsample(scale_factor=2, mode='bilinear', align_corners=True), NHWC
    B, H, W, C = x.shape
    Ho, Wo = 2 * H, 2 * W
    hi = jnp.arange(Ho, dtype=jnp.float32) * (H - 1) / (Ho - 1)
    wi = jnp.arange(Wo, dtype=jnp.float32) * (W - 1) / (Wo - 1)
    h0 = jnp.floor(hi).astype(jnp.int32)
    h1 = jnp.minimum(h0 + 1, H - 1)
    hf = (hi - h0.astype(jnp.float32))[None, :, None, None]
    w0 = jnp.floor(wi).astype(jnp.int32)
    w1 = jnp.minimum(w0 + 1, W - 1)
    wf = (wi - w0.astype(jnp.float32))[None, None, :, None]
    xh = jnp.take(x, h0, axis=1) * (1.0 - hf) + jnp.take(x, h1, axis=1) * hf
    return jnp.take(xh, w0, axis=2) * (1.0 - wf) + jnp.take(xh, w1, axis=2) * wf


def gcm_forward(prep, x_nchw):
    B, C, H, W = x_nchw.shape
    if H % 2 or W % 2:
        raise ValueError("GCM AvgPool2d(2,2) path assumes even H and W")
    cp = prep["w"].shape[0]
    nv = prep["v"].shape[0]
    Hp, Wp = H // 2, W // 2
    scale = float(C) ** (-0.5)                    # num_head = 1

    x = jnp.transpose(x_nchw, (0, 2, 3, 1)).astype(jnp.float32)   # NHWC
    # AvgPool2d(2, stride=2) + channel pad to CP (resampling / layout glue)
    xp = x.reshape(B, Hp, 2, Wp, 2, C).mean(axis=(2, 4))
    xp = jnp.pad(xp, ((0, 0), (0, 0), (0, 0), (0, cp - C)))       # (B,Hp,Wp,CP)

    kernel = functools.partial(_gcm_kernel, c_true=C, scale=scale)
    out = pl.pallas_call(
        kernel,
        out_shape=jax.ShapeDtypeStruct((B, Hp, Wp, cp), jnp.float32),
        grid=(B,),
        in_specs=[
            pl.BlockSpec((1, Hp, Wp, cp), lambda b: (b, 0, 0, 0)),
            pl.BlockSpec((cp, _NM * cp), lambda b: (0, 0)),
            pl.BlockSpec((nv, cp), lambda b: (0, 0)),
        ],
        out_specs=pl.BlockSpec((1, Hp, Wp, cp), lambda b: (b, 0, 0, 0)),
        scratch_shapes=[
            pltpu.VMEM((Hp + 4, Wp + 4, cp), jnp.float32),   # 5-tap halo pad
            pltpu.VMEM((Hp + 2, Wp + 2, cp), jnp.float32),   # 3x3 halo pad
        ],
        compiler_params=pltpu.CompilerParams(
            dimension_semantics=("parallel",)),               # v7x: 2 TCs
    )(xp, prep["w"], prep["v"])

    out = out[..., :C]                                        # drop channel pad
    out = _upsample_bilinear_x2_align_corners(out)            # (B, H, W, C)
    return jnp.transpose(out, (0, 3, 1, 2))                   # back to NCHW


if __name__ == "__main__":
    key = jax.random.PRNGKey(0)
    pkey, xkey = jax.random.split(key)
    B, C, H, W = 2, 8, 16, 16
    raw_params = init_params(pkey, C)
    prep = prepare_params(raw_params)             # fuse + pad weights once
    x = jax.random.normal(xkey, (B, C, H, W), jnp.float32)

    fwd = jax.jit(gcm_forward)
    out = jax.block_until_ready(fwd(prep, x))
    assert out.shape == (B, C, H, W), out.shape
    assert bool(jnp.all(jnp.isfinite(out)))
    print("KERNEL_OK")
</pallas_src>

<mosaic_0001>
module attributes {stable_mosaic.version = 11 : i64} {
  func.func @_gcm_kernel(%arg0: i32, %arg1: memref<1x8x8x128xf32, #tpu.memory_space<vmem>>, %arg2: memref<128x1152xf32, #tpu.memory_space<vmem>>, %arg3: memref<32x128xf32, #tpu.memory_space<vmem>>, %arg4: memref<1x8x8x128xf32, #tpu.memory_space<vmem>>, %arg5: memref<12x12x128xf32, #tpu.memory_space<vmem>>, %arg6: memref<10x10x128xf32, #tpu.memory_space<vmem>>) attributes {dimension_semantics = [#tpu.dimension_semantics<parallel>], iteration_bounds = array<i64: 2>, scalar_prefetch = 0 : i64, scratch_operands = 2 : i64, tpu.core_type = #tpu.core_type<tc>, window_params = [{transform_indices = @transform_0, window_bounds = array<i64: 1, 8, 8, 128>}, {pipeline_mode = #tpu.pipeline_mode<synchronous>, transform_indices = @transform_1, window_bounds = array<i64: 128, 1152>}, {pipeline_mode = #tpu.pipeline_mode<synchronous>, transform_indices = @transform_2, window_bounds = array<i64: 32, 128>}, {transform_indices = @transform_3, window_bounds = array<i64: 1, 8, 8, 128>}]} {
    %c0 = arith.constant 0 : index
    %c0_0 = arith.constant 0 : index
    %c0_1 = arith.constant 0 : index
    %c0_2 = arith.constant 0 : index
    %0 = vector.load %arg1[%c0, %c0_0, %c0_1, %c0_2] : memref<1x8x8x128xf32, #tpu.memory_space<vmem>>, vector<1x8x8x128xf32>
    %1 = vector.shape_cast %0 : vector<1x8x8x128xf32> to vector<8x8x128xf32>
    %2 = vector.shape_cast %1 : vector<8x8x128xf32> to vector<64x128xf32>
    %cst = arith.constant dense<0.000000e+00> : vector<128xf32>
    %3 = vector.multi_reduction <add>, %2, %cst [0] : vector<64x128xf32> to vector<128xf32>
    %4 = vector.shape_cast %3 : vector<128xf32> to vector<1x128xf32>
    %cst_3 = arith.constant 6.400000e+01 : f32
    %5 = vector.broadcast %cst_3 : f32 to vector<1x128xf32>
    %6 = arith.divf %4, %5 : vector<1x128xf32>
    %7 = vector.broadcast %6 : vector<1x128xf32> to vector<64x128xf32>
    %8 = arith.mulf %2, %7 : vector<64x128xf32>
    %c0_4 = arith.constant 0 : index
    %c0_5 = arith.constant 0 : index
    %9 = vector.load %arg2[%c0_4, %c0_5] : memref<128x1152xf32, #tpu.memory_space<vmem>>, vector<128x384xf32>
    %cst_6 = arith.constant dense<0.000000e+00> : vector<64x384xf32>
    %10 = tpu.matmul %8, %9, %cst_6 {dimension_numbers = #tpu.dot_dimension_numbers<[1], [0], [0], [1], [0, 0, 1, 1], [], []>} : vector<64x128xf32>, vector<128x384xf32>, vector<64x384xf32> -> vector<64x384xf32>
    %11 = vector.extract_strided_slice %10 {offsets = [0, 0], sizes = [64, 128], strides = [1, 1]} : vector<64x384xf32> to vector<64x128xf32>
    %c0_7 = arith.constant 0 : index
    %c0_8 = arith.constant 0 : index
    %12 = vector.load %arg3[%c0_7, %c0_8] : memref<32x128xf32, #tpu.memory_space<vmem>>, vector<1x128xf32>
    %13 = vector.shape_cast %12 : vector<1x128xf32> to vector<128xf32>
    %14 = vector.shape_cast %13 : vector<128xf32> to vector<1x128xf32>
    %15 = vector.broadcast %14 : vector<1x128xf32> to vector<64x128xf32>
    %16 = arith.addf %11, %15 : vector<64x128xf32>
    %17 = vector.extract_strided_slice %10 {offsets = [0, 128], sizes = [64, 128], strides = [1, 1]} : vector<64x384xf32> to vector<64x128xf32>
    %c1 = arith.constant 1 : index
    %c0_9 = arith.constant 0 : index
    %18 = vector.load %arg3[%c1, %c0_9] : memref<32x128xf32, #tpu.memory_space<vmem>>, vector<1x128xf32>
    %19 = vector.shape_cast %18 : vector<1x128xf32> to vector<128xf32>
    %20 = vector.shape_cast %19 : vector<128xf32> to vector<1x128xf32>
    %21 = vector.broadcast %20 : vector<1x128xf32> to vector<64x128xf32>
    %22 = arith.addf %17, %21 : vector<64x128xf32>
    %23 = vector.extract_strided_slice %10 {offsets = [0, 256], sizes = [64, 128], strides = [1, 1]} : vector<64x384xf32> to vector<64x128xf32>
    %c2 = arith.constant 2 : index
    %c0_10 = arith.constant 0 : index
    %24 = vector.load %arg3[%c2, %c0_10] : memref<32x128xf32, #tpu.memory_space<vmem>>, vector<1x128xf32>
    %25 = vector.shape_cast %24 : vector<1x128xf32> to vector<128xf32>
    %26 = vector.shape_cast %25 : vector<128xf32> to vector<1x128xf32>
    %27 = vector.broadcast %26 : vector<1x128xf32> to vector<64x128xf32>
    %28 = arith.addf %23, %27 : vector<64x128xf32>
    %29 = tpu.transpose %22, [1, 0] : vector<64x128xf32> -> vector<128x64xf32>
    %cst_11 = arith.constant dense<0.000000e+00> : vector<64x64xf32>
    %30 = tpu.matmul %16, %29, %cst_11 {dimension_numbers = #tpu.dot_dimension_numbers<[1], [0], [0], [1], [0, 0, 1, 1], [], []>} : vector<64x128xf32>, vector<128x64xf32>, vector<64x64xf32> -> vector<64x64xf32>
    %cst_12 = arith.constant 0.353553385 : f32
    %31 = vector.broadcast %cst_12 : f32 to vector<64x64xf32>
    %32 = arith.mulf %30, %31 : vector<64x64xf32>
    %cst_13 = arith.constant dense<0xFF800000> : vector<64xf32>
    %33 = vector.multi_reduction <maximumf>, %32, %cst_13 [1] : vector<64x64xf32> to vector<64xf32>
    %34 = vector.shape_cast %33 : vector<64xf32> to vector<64x1xf32>
    %35 = vector.broadcast %34 : vector<64x1xf32> to vector<64x64xf32>
    %36 = arith.subf %32, %35 : vector<64x64xf32>
    %37 = math.exp %36 : vector<64x64xf32>
    %cst_14 = arith.constant dense<0.000000e+00> : vector<64xf32>
    %38 = vector.multi_reduction <add>, %37, %cst_14 [1] : vector<64x64xf32> to vector<64xf32>
    %39 = vector.shape_cast %38 : vector<64xf32> to vector<64x1xf32>
    %40 = tpu.reciprocal %39 {approx = true} : vector<64x1xf32> -> vector<64x1xf32>
    %41 = vector.broadcast %40 : vector<64x1xf32> to vector<64x64xf32>
    %42 = arith.mulf %37, %41 : vector<64x64xf32>
    %cst_15 = arith.constant dense<0.000000e+00> : vector<64x128xf32>
    %43 = tpu.matmul %42, %28, %cst_15 {dimension_numbers = #tpu.dot_dimension_numbers<[1], [0], [0], [1], [0, 0, 1, 1], [], []>} : vector<64x64xf32>, vector<64x128xf32>, vector<64x128xf32> -> vector<64x128xf32>
    %c0_16 = arith.constant 0 : index
    %c384 = arith.constant 384 : index
    %44 = vector.load %arg2[%c0_16, %c384] : memref<128x1152xf32, #tpu.memory_space<vmem>>, vector<128x128xf32>
    %cst_17 = arith.constant dense<0.000000e+00> : vector<64x128xf32>
    %45 = tpu.matmul %43, %44, %cst_17 {dimension_numbers = #tpu.dot_dimension_numbers<[1], [0], [0], [1], [0, 0, 1, 1], [], []>} : vector<64x128xf32>, vector<128x128xf32>, vector<64x128xf32> -> vector<64x128xf32>
    %c3 = arith.constant 3 : index
    %c0_18 = arith.constant 0 : index
    %46 = vector.load %arg3[%c3, %c0_18] : memref<32x128xf32, #tpu.memory_space<vmem>>, vector<1x128xf32>
    %47 = vector.shape_cast %46 : vector<1x128xf32> to vector<128xf32>
    %48 = vector.shape_cast %47 : vector<128xf32> to vector<1x128xf32>
    %49 = vector.broadcast %48 : vector<1x128xf32> to vector<64x128xf32>
    %50 = arith.addf %45, %49 : vector<64x128xf32>
    %cst_19 = arith.constant 0.000000e+00 : f32
    %51 = vector.broadcast %cst_19 : f32 to vector<12x12x128xf32>
    %c0_20 = arith.constant 0 : index
    %c0_21 = arith.constant 0 : index
    %c0_22 = arith.constant 0 : index
    %52 = vector.load %arg5[%c0_20, %c0_21, %c0_22] : memref<12x12x128xf32, #tpu.memory_space<vmem>>, vector<12x12x128xf32>
    tpu.vector_store %arg5[%c0_20, %c0_21, %c0_22], %51 {strides = array<i32>} : memref<12x12x128xf32, #tpu.memory_space<vmem>>, vector<12x12x128xf32>,
    %c2_23 = arith.constant 2 : index
    %c2_24 = arith.constant 2 : index
    %c0_25 = arith.constant 0 : index
    %53 = vector.load %arg5[%c2_23, %c2_24, %c0_25] : memref<12x12x128xf32, #tpu.memory_space<vmem>>, vector<8x8x128xf32>
    tpu.vector_store %arg5[%c2_23, %c2_24, %c0_25], %1 {strides = array<i32>} : memref<12x12x128xf32, #tpu.memory_space<vmem>>, vector<8x8x128xf32>,
    %cst_26 = arith.constant 0.000000e+00 : f32
    %54 = vector.broadcast %cst_26 : f32 to vector<8x8x128xf32>
    %cst_27 = arith.constant 0.000000e+00 : f32
    %55 = vector.broadcast %cst_27 : f32 to vector<8x8x128xf32>
    %c0_28 = arith.constant 0 : index
    %c2_29 = arith.constant 2 : index
    %c0_30 = arith.constant 0 : index
    %56 = vector.load %arg5[%c0_28, %c2_29, %c0_30] : memref<12x12x128xf32, #tpu.memory_space<vmem>>, vector<8x8x128xf32>
    %c13 = arith.constant 13 : index
    %c0_31 = arith.constant 0 : index
    %57 = vector.load %arg3[%c13, %c0_31] : memref<32x128xf32, #tpu.memory_space<vmem>>, vector<1x128xf32>
    %58 = vector.shape_cast %57 : vector<1x128xf32> to vector<128xf32>
    %59 = vector.shape_cast %58 : vector<128xf32> to vector<1x1x128xf32>
    %60 = vector.broadcast %59 : vector<1x1x128xf32> to vector<8x8x128xf32>
    %61 = arith.mulf %56, %60 : vector<8x8x128xf32>
    %62 = arith.addf %54, %61 : vector<8x8x128xf32>
    %c2_32 = arith.constant 2 : index
    %c0_33 = arith.constant 0 : index
    %c0_34 = arith.constant 0 : index
    %63 = vector.load %arg5[%c2_32, %c0_33, %c0_34] : memref<12x12x128xf32, #tpu.memory_space<vmem>>, vector<8x8x128xf32>
    %c18 = arith.constant 18 : index
    %c0_35 = arith.constant 0 : index
    %64 = vector.load %arg3[%c18, %c0_35] : memref<32x128xf32, #tpu.memory_space<vmem>>, vector<1x128xf32>
    %65 = vector.shape_cast %64 : vector<1x128xf32> to vector<128xf32>
    %66 = vector.shape_cast %65 : vector<128xf32> to vector<1x1x128xf32>
    %67 = vector.broadcast %66 : vector<1x1x128xf32> to vector<8x8x128xf32>
    %68 = arith.mulf %63, %67 : vector<8x8x128xf32>
    %69 = arith.addf %55, %68 : vector<8x8x128xf32>
    %c1_36 = arith.constant 1 : index
    %c2_37 = arith.constant 2 : index
    %c0_38 = arith.constant 0 : index
    %70 = vector.load %arg5[%c1_36, %c2_37, %c0_38] : memref<12x12x128xf32, #tpu.memory_space<vmem>>, vector<8x8x128xf32>
    %c14 = arith.constant 14 : index
    %c0_39 = arith.constant 0 : index
    %71 = vector.load %arg3[%c14, %c0_39] : memref<32x128xf32, #tpu.memory_space<vmem>>, vector<1x128xf32>
    %72 = vector.shape_cast %71 : vector<1x128xf32> to vector<128xf32>
    %73 = vector.shape_cast %72 : vector<128xf32> to vector<1x1x128xf32>
    %74 = vector.broadcast %73 : vector<1x1x128xf32> to vector<8x8x128xf32>
    %75 = arith.mulf %70, %74 : vector<8x8x128xf32>
    %76 = arith.addf %62, %75 : vector<8x8x128xf32>
    %c2_40 = arith.constant 2 : index
    %c1_41 = arith.constant 1 : index
    %c0_42 = arith.constant 0 : index
    %77 = vector.load %arg5[%c2_40, %c1_41, %c0_42] : memref<12x12x128xf32, #tpu.memory_space<vmem>>, vector<8x8x128xf32>
    %c19 = arith.constant 19 : index
    %c0_43 = arith.constant 0 : index
    %78 = vector.load %arg3[%c19, %c0_43] : memref<32x128xf32, #tpu.memory_space<vmem>>, vector<1x128xf32>
    %79 = vector.shape_cast %78 : vector<1x128xf32> to vector<128xf32>
    %80 = vector.shape_cast %79 : vector<128xf32> to vector<1x1x128xf32>
    %81 = vector.broadcast %80 : vector<1x1x128xf32> to vector<8x8x128xf32>
    %82 = arith.mulf %77, %81 : vector<8x8x128xf32>
    %83 = arith.addf %69, %82 : vector<8x8x128xf32>
    %c2_44 = arith.constant 2 : index
    %c2_45 = arith.constant 2 : index
    %c0_46 = arith.constant 0 : index
    %84 = vector.load %arg5[%c2_44, %c2_45, %c0_46] : memref<12x12x128xf32, #tpu.memory_space<vmem>>, vector<8x8x128xf32>
    %c15 = arith.constant 15 : index
    %c0_47 = arith.constant 0 : index
    %85 = vector.load %arg3[%c15, %c0_47] : memref<32x128xf32, #tpu.memory_space<vmem>>, vector<1x128xf32>
    %86 = vector.shape_cast %85 : vector<1x128xf32> to vector<128xf32>
    %87 = vector.shape_cast %86 : vector<128xf32> to vector<1x1x128xf32>
    %88 = vector.broadcast %87 : vector<1x1x128xf32> to vector<8x8x128xf32>
    %89 = arith.mulf %84, %88 : vector<8x8x128xf32>
    %90 = arith.addf %76, %89 : vector<8x8x128xf32>
    %c2_48 = arith.constant 2 : index
    %c2_49 = arith.constant 2 : index
    %c0_50 = arith.constant 0 : index
    %91 = vector.load %arg5[%c2_48, %c2_49, %c0_50] : memref<12x12x128xf32, #tpu.memory_space<vmem>>, vector<8x8x128xf32>
    %c20 = arith.constant 20 : index
    %c0_51 = arith.constant 0 : index
    %92 = vector.load %arg3[%c20, %c0_51] : memref<32x128xf32, #tpu.memory_space<vmem>>, vector<1x128xf32>
    %93 = vector.shape_cast %92 : vector<1x128xf32> to vector<128xf32>
    %94 = vector.shape_cast %93 : vector<128xf32> to vector<1x1x128xf32>
    %95 = vector.broadcast %94 : vector<1x1x128xf32> to vector<8x8x128xf32>
    %96 = arith.mulf %91, %95 : vector<8x8x128xf32>
    %97 = arith.addf %83, %96 : vector<8x8x128xf32>
    %c3_52 = arith.constant 3 : index
    %c2_53 = arith.constant 2 : index
    %c0_54 = arith.constant 0 : index
    %98 = vector.load %arg5[%c3_52, %c2_53, %c0_54] : memref<12x12x128xf32, #tpu.memory_space<vmem>>, vector<8x8x128xf32>
    %c16 = arith.constant 16 : index
    %c0_55 = arith.constant 0 : index
    %99 = vector.load %arg3[%c16, %c0_55] : memref<32x128xf32, #tpu.memory_space<vmem>>, vector<1x128xf32>
    %100 = vector.shape_cast %99 : vector<1x128xf32> to vector<128xf32>
    %101 = vector.shape_cast %100 : vector<128xf32> to vector<1x1x128xf32>
    %102 = vector.broadcast %101 : vector<1x1x128xf32> to vector<8x8x128xf32>
    %103 = arith.mulf %98, %102 : vector<8x8x128xf32>
    %104 = arith.addf %90, %103 : vector<8x8x128xf32>
    %c2_56 = arith.constant 2 : index
    %c3_57 = arith.constant 3 : index
    %c0_58 = arith.constant 0 : index
    %105 = vector.load %arg5[%c2_56, %c3_57, %c0_58] : memref<12x12x128xf32, #tpu.memory_space<vmem>>, vector<8x8x128xf32>
    %c21 = arith.constant 21 : index
    %c0_59 = arith.constant 0 : index
    %106 = vector.load %arg3[%c21, %c0_59] : memref<32x128xf32, #tpu.memory_space<vmem>>, vector<1x128xf32>
    %107 = vector.shape_cast %106 : vector<1x128xf32> to vector<128xf32>
    %108 = vector.shape_cast %107 : vector<128xf32> to vector<1x1x128xf32>
    %109 = vector.broadcast %108 : vector<1x1x128xf32> to vector<8x8x128xf32>
    %110 = arith.mulf %105, %109 : vector<8x8x128xf32>
    %111 = arith.addf %97, %110 : vector<8x8x128xf32>
    %c4 = arith.constant 4 : index
    %c2_60 = arith.constant 2 : index
    %c0_61 = arith.constant 0 : index
    %112 = vector.load %arg5[%c4, %c2_60, %c0_61] : memref<12x12x128xf32, #tpu.memory_space<vmem>>, vector<8x8x128xf32>
    %c17 = arith.constant 17 : index
    %c0_62 = arith.constant 0 : index
    %113 = vector.load %arg3[%c17, %c0_62] : memref<32x128xf32, #tpu.memory_space<vmem>>, vector<1x128xf32>
    %114 = vector.shape_cast %113 : vector<1x128xf32> to vector<128xf32>
    %115 = vector.shape_cast %114 : vector<128xf32> to vector<1x1x128xf32>
    %116 = vector.broadcast %115 : vector<1x1x128xf32> to vector<8x8x128xf32>
    %117 = arith.mulf %112, %116 : vector<8x8x128xf32>
    %118 = arith.addf %104, %117 : vector<8x8x128xf32>
    %c2_63 = arith.constant 2 : index
    %c4_64 = arith.constant 4 : index
    %c0_65 = arith.constant 0 : index
    %119 = vector.load %arg5[%c2_63, %c4_64, %c0_65] : memref<12x12x128xf32, #tpu.memory_space<vmem>>, vector<8x8x128xf32>
    %c22 = arith.constant 22 : index
    %c0_66 = arith.constant 0 : index
    %120 = vector.load %arg3[%c22, %c0_66] : memref<32x128xf32, #tpu.memory_space<vmem>>, vector<1x128xf32>
    %121 = vector.shape_cast %120 : vector<1x128xf32> to vector<128xf32>
    %122 = vector.shape_cast %121 : vector<128xf32> to vector<1x1x128xf32>
    %123 = vector.broadcast %122 : vector<1x1x128xf32> to vector<8x8x128xf32>
    %124 = arith.mulf %119, %123 : vector<8x8x128xf32>
    %125 = arith.addf %111, %124 : vector<8x8x128xf32>
    %c4_67 = arith.constant 4 : index
    %c0_68 = arith.constant 0 : index
    %126 = vector.load %arg3[%c4_67, %c0_68] : memref<32x128xf32, #tpu.memory_space<vmem>>, vector<1x128xf32>
    %127 = vector.shape_cast %126 : vector<1x128xf32> to vector<128xf32>
    %128 = vector.shape_cast %127 : vector<128xf32> to vector<1x1x128xf32>
    %129 = vector.broadcast %128 : vector<1x1x128xf32> to vector<8x8x128xf32>
    %130 = arith.addf %118, %129 : vector<8x8x128xf32>
    %cst_69 = arith.constant 5.000000e-01 : f32
    %131 = vector.broadcast %cst_69 : f32 to vector<8x8x128xf32>
    %132 = arith.mulf %131, %130 : vector<8x8x128xf32>
    %cst_70 = arith.constant 0.707106769 : f32
    %133 = vector.broadcast %cst_70 : f32 to vector<8x8x128xf32>
    %134 = arith.mulf %130, %133 : vector<8x8x128xf32>
    %cst_71 = arith.constant 0.000000e+00 : f32
    %135 = vector.broadcast %cst_71 : f32 to vector<8x8x128xf32>
    %136 = arith.cmpf oge, %134, %135 : vector<8x8x128xf32>
    %cst_72 = arith.constant 1.000000e+00 : f32
    %cst_73 = arith.constant -1.000000e+00 : f32
    %137 = vector.broadcast %cst_72 : f32 to vector<8x8x128xf32>
    %138 = vector.broadcast %cst_73 : f32 to vector<8x8x128xf32>
    %139 = arith.select %136, %137, %138 : vector<8x8x128xi1>, vector<8x8x128xf32>
    %140 = math.absf %134 : vector<8x8x128xf32>
    %cst_74 = arith.constant 0.327591091 : f32
    %141 = vector.broadcast %cst_74 : f32 to vector<8x8x128xf32>
    %142 = arith.mulf %141, %140 : vector<8x8x128xf32>
    %cst_75 = arith.constant 1.000000e+00 : f32
    %143 = vector.broadcast %cst_75 : f32 to vector<8x8x128xf32>
    %144 = arith.addf %143, %142 : vector<8x8x128xf32>
    %cst_76 = arith.constant 1.000000e+00 : f32
    %145 = vector.broadcast %cst_76 : f32 to vector<8x8x128xf32>
    %146 = arith.divf %145, %144 : vector<8x8x128xf32>
    %cst_77 = arith.constant 1.06140542 : f32
    %147 = vector.broadcast %cst_77 : f32 to vector<8x8x128xf32>
    %148 = arith.mulf %147, %146 : vector<8x8x128xf32>
    %cst_78 = arith.constant -1.45315206 : f32
    %149 = vector.broadcast %cst_78 : f32 to vector<8x8x128xf32>
    %150 = arith.addf %148, %149 : vector<8x8x128xf32>
    %151 = arith.mulf %150, %146 : vector<8x8x128xf32>
    %cst_79 = arith.constant 1.42141378 : f32
    %152 = vector.broadcast %cst_79 : f32 to vector<8x8x128xf32>
    %153 = arith.addf %151, %152 : vector<8x8x128xf32>
    %154 = arith.mulf %153, %146 : vector<8x8x128xf32>
    %cst_80 = arith.constant -0.284496725 : f32
    %155 = vector.broadcast %cst_80 : f32 to vector<8x8x128xf32>
    %156 = arith.addf %154, %155 : vector<8x8x128xf32>
    %157 = arith.mulf %156, %146 : vector<8x8x128xf32>
    %cst_81 = arith.constant 0.254829586 : f32
    %158 = vector.broadcast %cst_81 : f32 to vector<8x8x128xf32>
    %159 = arith.addf %157, %158 : vector<8x8x128xf32>
    %160 = arith.mulf %159, %146 : vector<8x8x128xf32>
    %cst_82 = arith.constant 0.000000e+00 : f32
    %161 = vector.broadcast %cst_82 : f32 to vector<8x8x128xf32>
    %162 = arith.subf %161, %140 : vector<8x8x128xf32>
    %163 = arith.mulf %162, %140 : vector<8x8x128xf32>
    %164 = math.exp %163 : vector<8x8x128xf32>
    %165 = arith.mulf %160, %164 : vector<8x8x128xf32>
    %cst_83 = arith.constant 1.000000e+00 : f32
    %166 = vector.broadcast %cst_83 : f32 to vector<8x8x128xf32>
    %167 = arith.subf %166, %165 : vector<8x8x128xf32>
    %168 = arith.mulf %139, %167 : vector<8x8x128xf32>
    %cst_84 = arith.constant 1.000000e+00 : f32
    %169 = vector.broadcast %cst_84 : f32 to vector<8x8x128xf32>
    %170 = arith.addf %169, %168 : vector<8x8x128xf32>
    %171 = arith.mulf %132, %170 : vector<8x8x128xf32>
    %172 = vector.shape_cast %171 : vector<8x8x128xf32> to vector<64x128xf32>
    %c5 = arith.constant 5 : index
    %c0_85 = arith.constant 0 : index
    %173 = vector.load %arg3[%c5, %c0_85] : memref<32x128xf32, #tpu.memory_space<vmem>>, vector<1x128xf32>
    %174 = vector.shape_cast %173 : vector<1x128xf32> to vector<128xf32>
    %175 = vector.shape_cast %174 : vector<128xf32> to vector<1x1x128xf32>
    %176 = vector.broadcast %175 : vector<1x1x128xf32> to vector<8x8x128xf32>
    %177 = arith.addf %125, %176 : vector<8x8x128xf32>
    %cst_86 = arith.constant 5.000000e-01 : f32
    %178 = vector.broadcast %cst_86 : f32 to vector<8x8x128xf32>
    %179 = arith.mulf %178, %177 : vector<8x8x128xf32>
    %cst_87 = arith.constant 0.707106769 : f32
    %180 = vector.broadcast %cst_87 : f32 to vector<8x8x128xf32>
    %181 = arith.mulf %177, %180 : vector<8x8x128xf32>
    %cst_88 = arith.constant 0.000000e+00 : f32
    %182 = vector.broadcast %cst_88 : f32 to vector<8x8x128xf32>
    %183 = arith.cmpf oge, %181, %182 : vector<8x8x128xf32>
    %cst_89 = arith.constant 1.000000e+00 : f32
    %cst_90 = arith.constant -1.000000e+00 : f32
    %184 = vector.broadcast %cst_89 : f32 to vector<8x8x128xf32>
    %185 = vector.broadcast %cst_90 : f32 to vector<8x8x128xf32>
    %186 = arith.select %183, %184, %185 : vector<8x8x128xi1>, vector<8x8x128xf32>
    %187 = math.absf %181 : vector<8x8x128xf32>
    %cst_91 = arith.constant 0.327591091 : f32
    %188 = vector.broadcast %cst_91 : f32 to vector<8x8x128xf32>
    %189 = arith.mulf %188, %187 : vector<8x8x128xf32>
    %cst_92 = arith.constant 1.000000e+00 : f32
    %190 = vector.broadcast %cst_92 : f32 to vector<8x8x128xf32>
    %191 = arith.addf %190, %189 : vector<8x8x128xf32>
    %cst_93 = arith.constant 1.000000e+00 : f32
    %192 = vector.broadcast %cst_93 : f32 to vector<8x8x128xf32>
    %193 = arith.divf %192, %191 : vector<8x8x128xf32>
    %cst_94 = arith.constant 1.06140542 : f32
    %194 = vector.broadcast %cst_94 : f32 to vector<8x8x128xf32>
    %195 = arith.mulf %194, %193 : vector<8x8x128xf32>
    %cst_95 = arith.constant -1.45315206 : f32
    %196 = vector.broadcast %cst_95 : f32 to vector<8x8x128xf32>
    %197 = arith.addf %195, %196 : vector<8x8x128xf32>
    %198 = arith.mulf %197, %193 : vector<8x8x128xf32>
    %cst_96 = arith.constant 1.42141378 : f32
    %199 = vector.broadcast %cst_96 : f32 to vector<8x8x128xf32>
    %200 = arith.addf %198, %199 : vector<8x8x128xf32>
    %201 = arith.mulf %200, %193 : vector<8x8x128xf32>
    %cst_97 = arith.constant -0.284496725 : f32
    %202 = vector.broadcast %cst_97 : f32 to vector<8x8x128xf32>
    %203 = arith.addf %201, %202 : vector<8x8x128xf32>
    %204 = arith.mulf %203, %193 : vector<8x8x128xf32>
    %cst_98 = arith.constant 0.254829586 : f32
    %205 = vector.broadcast %cst_98 : f32 to vector<8x8x128xf32>
    %206 = arith.addf %204, %205 : vector<8x8x128xf32>
    %207 = arith.mulf %206, %193 : vector<8x8x128xf32>
    %cst_99 = arith.constant 0.000000e+00 : f32
    %208 = vector.broadcast %cst_99 : f32 to vector<8x8x128xf32>
    %209 = arith.subf %208, %187 : vector<8x8x128xf32>
    %210 = arith.mulf %209, %187 : vector<8x8x128xf32>
    %211 = math.exp %210 : vector<8x8x128xf32>
    %212 = arith.mulf %207, %211 : vector<8x8x128xf32>
    %cst_100 = arith.constant 1.000000e+00 : f32
    %213 = vector.broadcast %cst_100 : f32 to vector<8x8x128xf32>
    %214 = arith.subf %213, %212 : vector<8x8x128xf32>
    %215 = arith.mulf %186, %214 : vector<8x8x128xf32>
    %cst_101 = arith.constant 1.000000e+00 : f32
    %216 = vector.broadcast %cst_101 : f32 to vector<8x8x128xf32>
    %217 = arith.addf %216, %215 : vector<8x8x128xf32>
    %218 = arith.mulf %179, %217 : vector<8x8x128xf32>
    %219 = vector.shape_cast %218 : vector<8x8x128xf32> to vector<64x128xf32>
    %c0_102 = arith.constant 0 : index
    %c512 = arith.constant 512 : index
    %220 = vector.load %arg2[%c0_102, %c512] : memref<128x1152xf32, #tpu.memory_space<vmem>>, vector<128x128xf32>
    %cst_103 = arith.constant dense<0.000000e+00> : vector<64x128xf32>
    %221 = tpu.matmul %172, %220, %cst_103 {dimension_numbers = #tpu.dot_dimension_numbers<[1], [0], [0], [1], [0, 0, 1, 1], [], []>} : vector<64x128xf32>, vector<128x128xf32>, vector<64x128xf32> -> vector<64x128xf32>
    %c0_104 = arith.constant 0 : index
    %c640 = arith.constant 640 : index
    %222 = vector.load %arg2[%c0_104, %c640] : memref<128x1152xf32, #tpu.memory_space<vmem>>, vector<128x128xf32>
    %cst_105 = arith.constant dense<0.000000e+00> : vector<64x128xf32>
    %223 = tpu.matmul %219, %222, %cst_105 {dimension_numbers = #tpu.dot_dimension_numbers<[1], [0], [0], [1], [0, 0, 1, 1], [], []>} : vector<64x128xf32>, vector<128x128xf32>, vector<64x128xf32> -> vector<64x128xf32>
    %224 = arith.addf %221, %223 : vector<64x128xf32>
    %c6 = arith.constant 6 : index
    %c0_106 = arith.constant 0 : index
    %225 = vector.load %arg3[%c6, %c0_106] : memref<32x128xf32, #tpu.memory_space<vmem>>, vector<1x128xf32>
    %226 = vector.shape_cast %225 : vector<1x128xf32> to vector<128xf32>
    %227 = vector.shape_cast %226 : vector<128xf32> to vector<1x128xf32>
    %228 = vector.broadcast %227 : vector<1x128xf32> to vector<64x128xf32>
    %229 = arith.addf %224, %228 : vector<64x128xf32>
    %c0_107 = arith.constant 0 : index
    %c768 = arith.constant 768 : index
    %230 = vector.load %arg2[%c0_107, %c768] : memref<128x1152xf32, #tpu.memory_space<vmem>>, vector<128x128xf32>
    %cst_108 = arith.constant dense<0.000000e+00> : vector<64x128xf32>
    %231 = tpu.matmul %2, %230, %cst_108 {dimension_numbers = #tpu.dot_dimension_numbers<[1], [0], [0], [1], [0, 0, 1, 1], [], []>} : vector<64x128xf32>, vector<128x128xf32>, vector<64x128xf32> -> vector<64x128xf32>
    %c7 = arith.constant 7 : index
    %c0_109 = arith.constant 0 : index
    %232 = vector.load %arg3[%c7, %c0_109] : memref<32x128xf32, #tpu.memory_space<vmem>>, vector<1x128xf32>
    %233 = vector.shape_cast %232 : vector<1x128xf32> to vector<128xf32>
    %234 = vector.shape_cast %233 : vector<128xf32> to vector<1x128xf32>
    %235 = vector.broadcast %234 : vector<1x128xf32> to vector<64x128xf32>
    %236 = arith.addf %231, %235 : vector<64x128xf32>
    %237 = tpu.transpose %50, [1, 0] : vector<64x128xf32> -> vector<128x64xf32>
    %cst_110 = arith.constant dense<0.000000e+00> : vector<64x64xf32>
    %238 = tpu.matmul %229, %237, %cst_110 {dimension_numbers = #tpu.dot_dimension_numbers<[1], [0], [0], [1], [0, 0, 1, 1], [], []>} : vector<64x128xf32>, vector<128x64xf32>, vector<64x64xf32> -> vector<64x64xf32>
    %cst_111 = arith.constant 0.353553385 : f32
    %239 = vector.broadcast %cst_111 : f32 to vector<64x64xf32>
    %240 = arith.mulf %238, %239 : vector<64x64xf32>
    %cst_112 = arith.constant dense<0xFF800000> : vector<64xf32>
    %241 = vector.multi_reduction <maximumf>, %240, %cst_112 [1] : vector<64x64xf32> to vector<64xf32>
    %242 = vector.shape_cast %241 : vector<64xf32> to vector<64x1xf32>
    %243 = vector.broadcast %242 : vector<64x1xf32> to vector<64x64xf32>
    %244 = arith.subf %240, %243 : vector<64x64xf32>
    %245 = math.exp %244 : vector<64x64xf32>
    %cst_113 = arith.constant dense<0.000000e+00> : vector<64xf32>
    %246 = vector.multi_reduction <add>, %245, %cst_113 [1] : vector<64x64xf32> to vector<64xf32>
    %247 = vector.shape_cast %246 : vector<64xf32> to vector<64x1xf32>
    %248 = tpu.reciprocal %247 {approx = true} : vector<64x1xf32> -> vector<64x1xf32>
    %249 = vector.broadcast %248 : vector<64x1xf32> to vector<64x64xf32>
    %250 = arith.mulf %245, %249 : vector<64x64xf32>
    %cst_114 = arith.constant dense<0.000000e+00> : vector<64x128xf32>
    %251 = tpu.matmul %250, %236, %cst_114 {dimension_numbers = #tpu.dot_dimension_numbers<[1], [0], [0], [1], [0, 0, 1, 1], [], []>} : vector<64x64xf32>, vector<64x128xf32>, vector<64x128xf32> -> vector<64x128xf32>
    %c0_115 = arith.constant 0 : index
    %c896 = arith.constant 896 : index
    %252 = vector.load %arg2[%c0_115, %c896] : memref<128x1152xf32, #tpu.memory_space<vmem>>, vector<128x128xf32>
    %cst_116 = arith.constant dense<0.000000e+00> : vector<64x128xf32>
    %253 = tpu.matmul %251, %252, %cst_116 {dimension_numbers = #tpu.dot_dimension_numbers<[1], [0], [0], [1], [0, 0, 1, 1], [], []>} : vector<64x128xf32>, vector<128x128xf32>, vector<64x128xf32> -> vector<64x128xf32>
    %c8 = arith.constant 8 : index
    %c0_117 = arith.constant 0 : index
    %254 = vector.load %arg3[%c8, %c0_117] : memref<32x128xf32, #tpu.memory_space<vmem>>, vector<1x128xf32>
    %255 = vector.shape_cast %254 : vector<1x128xf32> to vector<128xf32>
    %256 = vector.shape_cast %255 : vector<128xf32> to vector<1x128xf32>
    %257 = vector.broadcast %256 : vector<1x128xf32> to vector<64x128xf32>
    %258 = arith.addf %253, %257 : vector<64x128xf32>
    %259 = arith.addf %258, %236 : vector<64x128xf32>
    %cst_118 = arith.constant dense<0.000000e+00> : vector<64xf32>
    %260 = vector.multi_reduction <add>, %259, %cst_118 [1] : vector<64x128xf32> to vector<64xf32>
    %261 = vector.shape_cast %260 : vector<64xf32> to vector<64x1xf32>
    %cst_119 = arith.constant 1.250000e-01 : f32
    %262 = vector.broadcast %cst_119 : f32 to vector<64x1xf32>
    %263 = arith.mulf %261, %262 : vector<64x1xf32>
    %264 = arith.mulf %259, %259 : vector<64x128xf32>
    %cst_120 = arith.constant dense<0.000000e+00> : vector<64xf32>
    %265 = vector.multi_reduction <add>, %264, %cst_120 [1] : vector<64x128xf32> to vector<64xf32>
    %266 = vector.shape_cast %265 : vector<64xf32> to vector<64x1xf32>
    %cst_121 = arith.constant 1.250000e-01 : f32
    %267 = vector.broadcast %cst_121 : f32 to vector<64x1xf32>
    %268 = arith.mulf %266, %267 : vector<64x1xf32>
    %269 = arith.mulf %263, %263 : vector<64x1xf32>
    %270 = arith.subf %268, %269 : vector<64x1xf32>
    %271 = vector.broadcast %263 : vector<64x1xf32> to vector<64x128xf32>
    %272 = arith.subf %259, %271 : vector<64x128xf32>
    %cst_122 = arith.constant 9.99999974E-6 : f32
    %273 = vector.broadcast %cst_122 : f32 to vector<64x1xf32>
    %274 = arith.addf %270, %273 : vector<64x1xf32>
    %275 = math.rsqrt %274 : vector<64x1xf32>
    %276 = vector.broadcast %275 : vector<64x1xf32> to vector<64x128xf32>
    %277 = arith.mulf %272, %276 : vector<64x128xf32>
    %c9 = arith.constant 9 : index
    %c0_123 = arith.constant 0 : index
    %278 = vector.load %arg3[%c9, %c0_123] : memref<32x128xf32, #tpu.memory_space<vmem>>, vector<1x128xf32>
    %279 = vector.shape_cast %278 : vector<1x128xf32> to vector<128xf32>
    %280 = vector.shape_cast %279 : vector<128xf32> to vector<1x128xf32>
    %281 = vector.broadcast %280 : vector<1x128xf32> to vector<64x128xf32>
    %282 = arith.mulf %277, %281 : vector<64x128xf32>
    %c10 = arith.constant 10 : index
    %c0_124 = arith.constant 0 : index
    %283 = vector.load %arg3[%c10, %c0_124] : memref<32x128xf32, #tpu.memory_space<vmem>>, vector<1x128xf32>
    %284 = vector.shape_cast %283 : vector<1x128xf32> to vector<128xf32>
    %285 = vector.shape_cast %284 : vector<128xf32> to vector<1x128xf32>
    %286 = vector.broadcast %285 : vector<1x128xf32> to vector<64x128xf32>
    %287 = arith.addf %282, %286 : vector<64x128xf32>
    %cst_125 = arith.constant 0.000000e+00 : f32
    %288 = vector.broadcast %cst_125 : f32 to vector<10x10x128xf32>
    %c0_126 = arith.constant 0 : index
    %c0_127 = arith.constant 0 : index
    %c0_128 = arith.constant 0 : index
    %289 = vector.load %arg6[%c0_126, %c0_127, %c0_128] : memref<10x10x128xf32, #tpu.memory_space<vmem>>, vector<10x10x128xf32>
    tpu.vector_store %arg6[%c0_126, %c0_127, %c0_128], %288 {strides = array<i32>} : memref<10x10x128xf32, #tpu.memory_space<vmem>>, vector<10x10x128xf32>,
    %290 = vector.shape_cast %287 : vector<64x128xf32> to vector<8x8x128xf32>
    %c1_129 = arith.constant 1 : index
    %c1_130 = arith.constant 1 : index
    %c0_131 = arith.constant 0 : index
    %291 = vector.load %arg6[%c1_129, %c1_130, %c0_131] : memref<10x10x128xf32, #tpu.memory_space<vmem>>, vector<8x8x128xf32>
    tpu.vector_store %arg6[%c1_129, %c1_130, %c0_131], %290 {strides = array<i32>} : memref<10x10x128xf32, #tpu.memory_space<vmem>>, vector<8x8x128xf32>,
    %cst_132 = arith.constant 0.000000e+00 : f32
    %292 = vector.broadcast %cst_132 : f32 to vector<8x8x128xf32>
    %c0_133 = arith.constant 0 : index
    %c0_134 = arith.constant 0 : index
    %c0_135 = arith.constant 0 : index
    %293 = vector.load %arg6[%c0_133, %c0_134, %c0_135] : memref<10x10x128xf32, #tpu.memory_space<vmem>>, vector<8x8x128xf32>
    %c23 = arith.constant 23 : index
    %c0_136 = arith.constant 0 : index
    %294 = vector.load %arg3[%c23, %c0_136] : memref<32x128xf32, #tpu.memory_space<vmem>>, vector<1x128xf32>
    %295 = vector.shape_cast %294 : vector<1x128xf32> to vector<128xf32>
    %296 = vector.shape_cast %295 : vector<128xf32> to vector<1x1x128xf32>
    %297 = vector.broadcast %296 : vector<1x1x128xf32> to vector<8x8x128xf32>
    %298 = arith.mulf %293, %297 : vector<8x8x128xf32>
    %299 = arith.addf %292, %298 : vector<8x8x128xf32>
    %c0_137 = arith.constant 0 : index
    %c1_138 = arith.constant 1 : index
    %c0_139 = arith.constant 0 : index
    %300 = vector.load %arg6[%c0_137, %c1_138, %c0_139] : memref<10x10x128xf32, #tpu.memory_space<vmem>>, vector<8x8x128xf32>
    %c24 = arith.constant 24 : index
    %c0_140 = arith.constant 0 : index
    %301 = vector.load %arg3[%c24, %c0_140] : memref<32x128xf32, #tpu.memory_space<vmem>>, vector<1x128xf32>
    %302 = vector.shape_cast %301 : vector<1x128xf32> to vector<128xf32>
    %303 = vector.shape_cast %302 : vector<128xf32> to vector<1x1x128xf32>
    %304 = vector.broadcast %303 : vector<1x1x128xf32> to vector<8x8x128xf32>
    %305 = arith.mulf %300, %304 : vector<8x8x128xf32>
    %306 = arith.addf %299, %305 : vector<8x8x128xf32>
    %c0_141 = arith.constant 0 : index
    %c2_142 = arith.constant 2 : index
    %c0_143 = arith.constant 0 : index
    %307 = vector.load %arg6[%c0_141, %c2_142, %c0_143] : memref<10x10x128xf32, #tpu.memory_space<vmem>>, vector<8x8x128xf32>
    %c25 = arith.constant 25 : index
    %c0_144 = arith.constant 0 : index
    %308 = vector.load %arg3[%c25, %c0_144] : memref<32x128xf32, #tpu.memory_space<vmem>>, vector<1x128xf32>
    %309 = vector.shape_cast %308 : vector<1x128xf32> to vector<128xf32>
    %310 = vector.shape_cast %309 : vector<128xf32> to vector<1x1x128xf32>
    %311 = vector.broadcast %310 : vector<1x1x128xf32> to vector<8x8x128xf32>
    %312 = arith.mulf %307, %311 : vector<8x8x128xf32>
    %313 = arith.addf %306, %312 : vector<8x8x128xf32>
    %c1_145 = arith.constant 1 : index
    %c0_146 = arith.constant 0 : index
    %c0_147 = arith.constant 0 : index
    %314 = vector.load %arg6[%c1_145, %c0_146, %c0_147] : memref<10x10x128xf32, #tpu.memory_space<vmem>>, vector<8x8x128xf32>
    %c26 = arith.constant 26 : index
    %c0_148 = arith.constant 0 : index
    %315 = vector.load %arg3[%c26, %c0_148] : memref<32x128xf32, #tpu.memory_space<vmem>>, vector<1x128xf32>
    %316 = vector.shape_cast %315 : vector<1x128xf32> to vector<128xf32>
    %317 = vector.shape_cast %316 : vector<128xf32> to vector<1x1x128xf32>
    %318 = vector.broadcast %317 : vector<1x1x128xf32> to vector<8x8x128xf32>
    %319 = arith.mulf %314, %318 : vector<8x8x128xf32>
    %320 = arith.addf %313, %319 : vector<8x8x128xf32>
    %c1_149 = arith.constant 1 : index
    %c1_150 = arith.constant 1 : index
    %c0_151 = arith.constant 0 : index
    %321 = vector.load %arg6[%c1_149, %c1_150, %c0_151] : memref<10x10x128xf32, #tpu.memory_space<vmem>>, vector<8x8x128xf32>
    %c27 = arith.constant 27 : index
    %c0_152 = arith.constant 0 : index
    %322 = vector.load %arg3[%c27, %c0_152] : memref<32x128xf32, #tpu.memory_space<vmem>>, vector<1x128xf32>
    %323 = vector.shape_cast %322 : vector<1x128xf32> to vector<128xf32>
    %324 = vector.shape_cast %323 : vector<128xf32> to vector<1x1x128xf32>
    %325 = vector.broadcast %324 : vector<1x1x128xf32> to vector<8x8x128xf32>
    %326 = arith.mulf %321, %325 : vector<8x8x128xf32>
    %327 = arith.addf %320, %326 : vector<8x8x128xf32>
    %c1_153 = arith.constant 1 : index
    %c2_154 = arith.constant 2 : index
    %c0_155 = arith.constant 0 : index
    %328 = vector.load %arg6[%c1_153, %c2_154, %c0_155] : memref<10x10x128xf32, #tpu.memory_space<vmem>>, vector<8x8x128xf32>
    %c28 = arith.constant 28 : index
    %c0_156 = arith.constant 0 : index
    %329 = vector.load %arg3[%c28, %c0_156] : memref<32x128xf32, #tpu.memory_space<vmem>>, vector<1x128xf32>
    %330 = vector.shape_cast %329 : vector<1x128xf32> to vector<128xf32>
    %331 = vector.shape_cast %330 : vector<128xf32> to vector<1x1x128xf32>
    %332 = vector.broadcast %331 : vector<1x1x128xf32> to vector<8x8x128xf32>
    %333 = arith.mulf %328, %332 : vector<8x8x128xf32>
    %334 = arith.addf %327, %333 : vector<8x8x128xf32>
    %c2_157 = arith.constant 2 : index
    %c0_158 = arith.constant 0 : index
    %c0_159 = arith.constant 0 : index
    %335 = vector.load %arg6[%c2_157, %c0_158, %c0_159] : memref<10x10x128xf32, #tpu.memory_space<vmem>>, vector<8x8x128xf32>
    %c29 = arith.constant 29 : index
    %c0_160 = arith.constant 0 : index
    %336 = vector.load %arg3[%c29, %c0_160] : memref<32x128xf32, #tpu.memory_space<vmem>>, vector<1x128xf32>
    %337 = vector.shape_cast %336 : vector<1x128xf32> to vector<128xf32>
    %338 = vector.shape_cast %337 : vector<128xf32> to vector<1x1x128xf32>
    %339 = vector.broadcast %338 : vector<1x1x128xf32> to vector<8x8x128xf32>
    %340 = arith.mulf %335, %339 : vector<8x8x128xf32>
    %341 = arith.addf %334, %340 : vector<8x8x128xf32>
    %c2_161 = arith.constant 2 : index
    %c1_162 = arith.constant 1 : index
    %c0_163 = arith.constant 0 : index
    %342 = vector.load %arg6[%c2_161, %c1_162, %c0_163] : memref<10x10x128xf32, #tpu.memory_space<vmem>>, vector<8x8x128xf32>
    %c30 = arith.constant 30 : index
    %c0_164 = arith.constant 0 : index
    %343 = vector.load %arg3[%c30, %c0_164] : memref<32x128xf32, #tpu.memory_space<vmem>>, vector<1x128xf32>
    %344 = vector.shape_cast %343 : vector<1x128xf32> to vector<128xf32>
    %345 = vector.shape_cast %344 : vector<128xf32> to vector<1x1x128xf32>
    %346 = vector.broadcast %345 : vector<1x1x128xf32> to vector<8x8x128xf32>
    %347 = arith.mulf %342, %346 : vector<8x8x128xf32>
    %348 = arith.addf %341, %347 : vector<8x8x128xf32>
    %c2_165 = arith.constant 2 : index
    %c2_166 = arith.constant 2 : index
    %c0_167 = arith.constant 0 : index
    %349 = vector.load %arg6[%c2_165, %c2_166, %c0_167] : memref<10x10x128xf32, #tpu.memory_space<vmem>>, vector<8x8x128xf32>
    %c31 = arith.constant 31 : index
    %c0_168 = arith.constant 0 : index
    %350 = vector.load %arg3[%c31, %c0_168] : memref<32x128xf32, #tpu.memory_space<vmem>>, vector<1x128xf32>
    %351 = vector.shape_cast %350 : vector<1x128xf32> to vector<128xf32>
    %352 = vector.shape_cast %351 : vector<128xf32> to vector<1x1x128xf32>
    %353 = vector.broadcast %352 : vector<1x1x128xf32> to vector<8x8x128xf32>
    %354 = arith.mulf %349, %353 : vector<8x8x128xf32>
    %355 = arith.addf %348, %354 : vector<8x8x128xf32>
    %c11 = arith.constant 11 : index
    %c0_169 = arith.constant 0 : index
    %356 = vector.load %arg3[%c11, %c0_169] : memref<32x128xf32, #tpu.memory_space<vmem>>, vector<1x128xf32>
    %357 = vector.shape_cast %356 : vector<1x128xf32> to vector<128xf32>
    %358 = vector.shape_cast %357 : vector<128xf32> to vector<1x1x128xf32>
    %359 = vector.broadcast %358 : vector<1x1x128xf32> to vector<8x8x128xf32>
    %360 = arith.addf %355, %359 : vector<8x8x128xf32>
    %cst_170 = arith.constant 5.000000e-01 : f32
    %361 = vector.broadcast %cst_170 : f32 to vector<8x8x128xf32>
    %362 = arith.mulf %361, %360 : vector<8x8x128xf32>
    %cst_171 = arith.constant 0.707106769 : f32
    %363 = vector.broadcast %cst_171 : f32 to vector<8x8x128xf32>
    %364 = arith.mulf %360, %363 : vector<8x8x128xf32>
    %cst_172 = arith.constant 0.000000e+00 : f32
    %365 = vector.broadcast %cst_172 : f32 to vector<8x8x128xf32>
    %366 = arith.cmpf oge, %364, %365 : vector<8x8x128xf32>
    %cst_173 = arith.constant 1.000000e+00 : f32
    %cst_174 = arith.constant -1.000000e+00 : f32
    %367 = vector.broadcast %cst_173 : f32 to vector<8x8x128xf32>
    %368 = vector.broadcast %cst_174 : f32 to vector<8x8x128xf32>
    %369 = arith.select %366, %367, %368 : vector<8x8x128xi1>, vector<8x8x128xf32>
    %370 = math.absf %364 : vector<8x8x128xf32>
    %cst_175 = arith.constant 0.327591091 : f32
    %371 = vector.broadcast %cst_175 : f32 to vector<8x8x128xf32>
    %372 = arith.mulf %371, %370 : vector<8x8x128xf32>
    %cst_176 = arith.constant 1.000000e+00 : f32
    %373 = vector.broadcast %cst_176 : f32 to vector<8x8x128xf32>
    %374 = arith.addf %373, %372 : vector<8x8x128xf32>
    %cst_177 = arith.constant 1.000000e+00 : f32
    %375 = vector.broadcast %cst_177 : f32 to vector<8x8x128xf32>
    %376 = arith.divf %375, %374 : vector<8x8x128xf32>
    %cst_178 = arith.constant 1.06140542 : f32
    %377 = vector.broadcast %cst_178 : f32 to vector<8x8x128xf32>
    %378 = arith.mulf %377, %376 : vector<8x8x128xf32>
    %cst_179 = arith.constant -1.45315206 : f32
    %379 = vector.broadcast %cst_179 : f32 to vector<8x8x128xf32>
    %380 = arith.addf %378, %379 : vector<8x8x128xf32>
    %381 = arith.mulf %380, %376 : vector<8x8x128xf32>
    %cst_180 = arith.constant 1.42141378 : f32
    %382 = vector.broadcast %cst_180 : f32 to vector<8x8x128xf32>
    %383 = arith.addf %381, %382 : vector<8x8x128xf32>
    %384 = arith.mulf %383, %376 : vector<8x8x128xf32>
    %cst_181 = arith.constant -0.284496725 : f32
    %385 = vector.broadcast %cst_181 : f32 to vector<8x8x128xf32>
    %386 = arith.addf %384, %385 : vector<8x8x128xf32>
    %387 = arith.mulf %386, %376 : vector<8x8x128xf32>
    %cst_182 = arith.constant 0.254829586 : f32
    %388 = vector.broadcast %cst_182 : f32 to vector<8x8x128xf32>
    %389 = arith.addf %387, %388 : vector<8x8x128xf32>
    %390 = arith.mulf %389, %376 : vector<8x8x128xf32>
    %cst_183 = arith.constant 0.000000e+00 : f32
    %391 = vector.broadcast %cst_183 : f32 to vector<8x8x128xf32>
    %392 = arith.subf %391, %370 : vector<8x8x128xf32>
    %393 = arith.mulf %392, %370 : vector<8x8x128xf32>
    %394 = math.exp %393 : vector<8x8x128xf32>
    %395 = arith.mulf %390, %394 : vector<8x8x128xf32>
    %cst_184 = arith.constant 1.000000e+00 : f32
    %396 = vector.broadcast %cst_184 : f32 to vector<8x8x128xf32>
    %397 = arith.subf %396, %395 : vector<8x8x128xf32>
    %398 = arith.mulf %369, %397 : vector<8x8x128xf32>
    %cst_185 = arith.constant 1.000000e+00 : f32
    %399 = vector.broadcast %cst_185 : f32 to vector<8x8x128xf32>
    %400 = arith.addf %399, %398 : vector<8x8x128xf32>
    %401 = arith.mulf %362, %400 : vector<8x8x128xf32>
    %402 = vector.shape_cast %401 : vector<8x8x128xf32> to vector<64x128xf32>
    %c0_186 = arith.constant 0 : index
    %c1024 = arith.constant 1024 : index
    %403 = vector.load %arg2[%c0_186, %c1024] : memref<128x1152xf32, #tpu.memory_space<vmem>>, vector<128x128xf32>
    %cst_187 = arith.constant dense<0.000000e+00> : vector<64x128xf32>
    %404 = tpu.matmul %402, %403, %cst_187 {dimension_numbers = #tpu.dot_dimension_numbers<[1], [0], [0], [1], [0, 0, 1, 1], [], []>} : vector<64x128xf32>, vector<128x128xf32>, vector<64x128xf32> -> vector<64x128xf32>
    %c12 = arith.constant 12 : index
    %c0_188 = arith.constant 0 : index
    %405 = vector.load %arg3[%c12, %c0_188] : memref<32x128xf32, #tpu.memory_space<vmem>>, vector<1x128xf32>
    %406 = vector.shape_cast %405 : vector<1x128xf32> to vector<128xf32>
    %407 = vector.shape_cast %406 : vector<128xf32> to vector<1x128xf32>
    %408 = vector.broadcast %407 : vector<1x128xf32> to vector<64x128xf32>
    %409 = arith.addf %404, %408 : vector<64x128xf32>
    %410 = arith.addf %409, %287 : vector<64x128xf32>
    %411 = vector.shape_cast %410 : vector<64x128xf32> to vector<8x8x128xf32>
    %c0_189 = arith.constant 0 : index
    %c0_190 = arith.constant 0 : index
    %c0_191 = arith.constant 0 : index
    %c0_192 = arith.constant 0 : index
    %412 = vector.load %arg4[%c0_189, %c0_190, %c0_191, %c0_192] : memref<1x8x8x128xf32, #tpu.memory_space<vmem>>, vector<1x8x8x128xf32>
    %413 = vector.shape_cast %412 : vector<1x8x8x128xf32> to vector<8x8x128xf32>
    %414 = vector.shape_cast %411 : vector<8x8x128xf32> to vector<1x8x8x128xf32>
    tpu.vector_store %arg4[%c0_189, %c0_190, %c0_191, %c0_192], %414 {strides = array<i32>} : memref<1x8x8x128xf32, #tpu.memory_space<vmem>>, vector<1x8x8x128xf32>,
    return
  }
  func.func @transform_0(%arg0: i32) -> (i32, i32, i32, i32) {
    %c0_i32 = arith.constant 0 : i32
    %c0_i32_0 = arith.constant 0 : i32
    %c0_i32_1 = arith.constant 0 : i32
    %c0_i32_2 = arith.constant 0 : i32
    return %arg0, %c0_i32, %c0_i32_0, %c0_i32_1 : i32, i32, i32, i32
  }
  func.func @transform_1(%arg0: i32) -> (i32, i32) {
    %c0_i32 = arith.constant 0 : i32
    %c0_i32_0 = arith.constant 0 : i32
    %c0_i32_1 = arith.constant 0 : i32
    return %c0_i32, %c0_i32_0 : i32, i32
  }
  func.func @transform_2(%arg0: i32) -> (i32, i32) {
    %c0_i32 = arith.constant 0 : i32
    %c0_i32_0 = arith.constant 0 : i32
    %c0_i32_1 = arith.constant 0 : i32
    return %c0_i32, %c0_i32_0 : i32, i32
  }
  func.func @transform_3(%arg0: i32) -> (i32, i32, i32, i32) {
    %c0_i32 = arith.constant 0 : i32
    %c0_i32_0 = arith.constant 0 : i32
    %c0_i32_1 = arith.constant 0 : i32
    %c0_i32_2 = arith.constant 0 : i32
    return %arg0, %c0_i32, %c0_i32_0, %c0_i32_1 : i32, i32, i32, i32
  }
}

</mosaic_0001>

<llo_original>
// kernel: gcm_forward.1
$region0: #{gcm_forward.1}
  #allocation0 [shape = 'u32[]', space=smem, size = 0x4, offset = 0x4, fixed_abs, tag = 'smem constant byte address 0x4 - core index']
  #allocation1 [shape = 'u32[144,128]{1,0:T(1,128)}', space=vmem, size = 0x12000, scoped, tag = 'internal scratch']
  #allocation2 [shape = 'f32[12,12,128]{2,1,0:T(8,128)}', space=vmem, size = 0x18000, scoped, tag = 'scratch operand']
  #allocation3 [shape = 'f32[10,10,128]{2,1,0:T(8,128)}', space=vmem, size = 0x14000, scoped, tag = 'scratch operand']
  %s0 = inlined_call_operand.vmem [shape: f32[2,8,8,128], index: 0, kind: input, shape index: {}]
  %s1 = inlined_call_operand.vmem [shape: f32[128,1152], index: 1, kind: input, shape index: {}]
  %s2 = inlined_call_operand.vmem [shape: f32[32,128], index: 2, kind: input, shape index: {}]
  %s3 = inlined_call_operand.vmem [shape: f32[2,8,8,128], index: 3, kind: output, shape index: {}]
  %s4 = sld [smem:[#allocation0]]
  $region45: #{gcm_forward.1} parent=0
    _
  %s6 = ssub.s32 1, %s4
  %s7 = scalar_select 0, %s6, %s4
  loop: start=0, step=1, limit=4
  $region2: #{gcm_forward.1} parent=0 // loop_pre_header
    _
  $region3: #{gcm_forward.1} parent=0 // loop_header
    %s9 = sphi 0, %s13
    %p10 = scmp.ge.s32.totalorder %s9, 4
    %s19 = sphi 0, %s21
    %s22 = sphi 0, %s19
    %s23 = sphi 0, %s22
    %s39 = sphi 0, %s23
    %s43 = sphi 0, %s43
    %s45 = sphi 0, %s43
    %s46 = sphi 0, %s45
    %s60 = sphi 0, %s46
    %s64 = sphi 0, %s64
    %s66 = sphi 0, %s64
    %s67 = sphi 0, %s66
    %s81 = sphi 0, %s67
    %s87 = sphi 0, %s89
    %s90 = sphi 0, %s87
    %s91 = sphi 0, %s90
    %s107 = sphi 0, %s91
  $region4: #{gcm_forward.1} parent=0 // loop_header_branch
    %12 = sbr.rel (%p10) target = $region8
  $region5: #{gcm_forward.1} parent=0 // loop_body
    %s14 = ssub.s32 %s9, 1
    %s15 = ssub.s32 %s9, 2
    %s16 = sadd.s32 %s9, 1
    %s17 = ssub.s32 %s9, %s16
    %p18 = scmp.eq.s32.totalorder %s17, 0
    %s20 = sadd.s32 %s19, 1
    %s21 = scalar_select %p18, %s19, %s20
    %p24 = pneg %p18
    %p25 = scmp.eq.s32.totalorder %s9, 1
    %p26 = por %p24, %p25
    %p27 = scmp.ne.s32.totalorder %s19, %s22
    %p28 = scmp.eq.s32.totalorder %s9, 0
    %p29 = por %p27, %p28
    %p30 = scmp.ne.s32.totalorder %s19, %s22
    %p31 = scmp.eq.s32.totalorder %s14, 1
    %p32 = por %p30, %p31
    %p33 = scmp.ne.s32.totalorder %s22, %s23
    %p34 = scmp.eq.s32.totalorder %s14, 0
    %p35 = por %p33, %p34
    %p36 = scmp.ne.s32.totalorder %s22, %s23
    %p37 = scmp.eq.s32.totalorder %s15, 1
    %p38 = por %p36, %p37
    %p40 = scmp.ne.s32.totalorder %s23, %s39
    %p41 = scmp.eq.s32.totalorder %s15, 0
    %p42 = por %p40, %p41
    %s44 = sadd.s32 %s43, 1
    %p47 = scmp.eq.s32.totalorder %s9, 1
    %p48 = scmp.ne.s32.totalorder %s43, %s45
    %p49 = scmp.eq.s32.totalorder %s9, 0
    %p50 = por %p48, %p49
    %p51 = scmp.ne.s32.totalorder %s43, %s45
    %p52 = scmp.eq.s32.totalorder %s14, 1
    %p53 = por %p51, %p52
    %p54 = scmp.ne.s32.totalorder %s45, %s46
    %p55 = scmp.eq.s32.totalorder %s14, 0
    %p56 = por %p54, %p55
    %p57 = scmp.ne.s32.totalorder %s45, %s46
    %p58 = scmp.eq.s32.totalorder %s15, 1
    %p59 = por %p57, %p58
    %p61 = scmp.ne.s32.totalorder %s46, %s60
    %p62 = scmp.eq.s32.totalorder %s15, 0
    %p63 = por %p61, %p62
    %s65 = sadd.s32 %s64, 1
    %p68 = scmp.eq.s32.totalorder %s9, 1
    %p69 = scmp.ne.s32.totalorder %s64, %s66
    %p70 = scmp.eq.s32.totalorder %s9, 0
    %p71 = por %p69, %p70
    %p72 = scmp.ne.s32.totalorder %s64, %s66
    %p73 = scmp.eq.s32.totalorder %s14, 1
    %p74 = por %p72, %p73
    %p75 = scmp.ne.s32.totalorder %s66, %s67
    %p76 = scmp.eq.s32.totalorder %s14, 0
    %p77 = por %p75, %p76
    %p78 = scmp.ne.s32.totalorder %s66, %s67
    %p79 = scmp.eq.s32.totalorder %s15, 1
    %p80 = por %p78, %p79
    %p82 = scmp.ne.s32.totalorder %s67, %s81
    %p83 = scmp.eq.s32.totalorder %s15, 0
    %p84 = por %p82, %p83
    %s85 = ssub.s32 %s9, %s16
    %p86 = scmp.eq.s32.totalorder %s85, 0
    %s88 = sadd.s32 %s87, 1
    %s89 = scalar_select %p86, %s87, %s88
    %p92 = pneg %p86
    %p93 = scmp.eq.s32.totalorder %s9, 1
    %p94 = por %p92, %p93
    %p95 = scmp.ne.s32.totalorder %s87, %s90
    %p96 = scmp.eq.s32.totalorder %s9, 0
    %p97 = por %p95, %p96
    %p98 = scmp.ne.s32.totalorder %s87, %s90
    %p99 = scmp.eq.s32.totalorder %s14, 1
    %p100 = por %p98, %p99
    %p101 = scmp.ne.s32.totalorder %s90, %s91
    %p102 = scmp.eq.s32.totalorder %s14, 0
    %p103 = por %p101, %p102
    %p104 = scmp.ne.s32.totalorder %s90, %s91
    %p105 = scmp.eq.s32.totalorder %s15, 1
    %p106 = por %p104, %p105
    %p108 = scmp.ne.s32.totalorder %s91, %s107
    %p109 = scmp.eq.s32.totalorder %s15, 0
    %p110 = por %p108, %p109
    %p111 = scmp.le.s32.totalorder 1, %s9
    %p112 = scmp.lt.s32.totalorder %s9, 3
    %p113 = pnand %p111, %p112
    %p114 = pneg %p113
    // Predicated region
    $region9: #{gcm_forward.1} parent=5 // pred_check
      _
    $region10: #{gcm_forward.1} parent=5 // pred_check_branch
      %116 = sbr.rel (%p113) target = $region12
    $region11: #{gcm_forward.1} parent=5 // pred_region
      %s117 = ssub.s32 %s9, 1
      // Predicated region
      $region13: #{gcm_forward.1} parent=11 // pred_check
        %p118 = pneg %p56
      $region14: #{gcm_forward.1} parent=11 // pred_check_branch
        %120 = sbr.rel (%p118) target = $region16
      $region15: #{gcm_forward.1} parent=11 // pred_region
        _
      $region16: #{gcm_forward.1} parent=11 // pred_fallthru
        _
      // Predicated region
      $region17: #{gcm_forward.1} parent=11 // pred_check
        %p121 = pneg %p77
      $region18: #{gcm_forward.1} parent=11 // pred_check_branch
        %123 = sbr.rel (%p121) target = $region20
      $region19: #{gcm_forward.1} parent=11 // pred_region
        _
      $region20: #{gcm_forward.1} parent=11 // pred_fallthru
        _
    $region12: #{gcm_forward.1} parent=5 // pred_fallthru
      _
    %p124 = scmp.lt.s32.totalorder %s9, 2
    // Predicated region
    $region21: #{gcm_forward.1} parent=5 // pred_check
      %p125 = pneg %p124
    $region22: #{gcm_forward.1} parent=5 // pred_check_branch
      %127 = sbr.rel (%p125) target = $region24
    $region23: #{gcm_forward.1} parent=5 // pred_region
      // Predicated region
      $region25: #{gcm_forward.1} parent=23 // pred_check
        %p128 = pneg %p29
      $region26: #{gcm_forward.1} parent=23 // pred_check_branch
        %130 = sbr.rel (%p128) target = $region28
      $region27: #{gcm_forward.1} parent=23 // pred_region
        %p131 = scmp.lt.s32.totalorder %s9, 1
        %s132 = scalar_select %p131, %s9, 1
        %s133 = smul.addr %s132, 8
        %s134 = smul.addr %s133, 8
        %s135 = scalar_lea.vmem %s0, %s134
      $region28: #{gcm_forward.1} parent=23 // pred_fallthru
        _
    $region24: #{gcm_forward.1} parent=5 // pred_fallthru
      _
    %p136 = scmp.le.s32.totalorder 1, %s9
    %p137 = scmp.lt.s32.totalorder %s9, 3
    %p138 = pnand %p136, %p137
    %p139 = pneg %p138
    // Predicated region
    $region29: #{gcm_forward.1} parent=5 // pred_check
      _
    $region30: #{gcm_forward.1} parent=5 // pred_check_branch
      %141 = sbr.rel (%p138) target = $region32
    $region31: #{gcm_forward.1} parent=5 // pred_region
      %s142 = ssub.s32 %s9, 1
      %p143 = scmp.lt.s32.totalorder %s14, 1
      %s144 = scalar_select %p143, %s14, 1
      %s145 = smul.addr %s144, 8
      %s146 = smul.addr %s145, 8
      %s147 = scalar_lea.vmem %s0, %s146
      %p148 = pneg %p35
      %p149 = pneg %p32
      %p150 = pneg %p56
      %p151 = pneg %p53
      %p152 = pneg %p77
      %p153 = pneg %p74
      %p154 = pneg %p103
      %p155 = pneg %p100
      %p156 = scmp.lt.s32.totalorder %s14, 1
      %s157 = scalar_select %p156, %s14, 1
      %s158 = smul.addr %s157, 8
      %s159 = smul.addr %s158, 8
      %s160 = scalar_lea.vmem %s3, %s159
      %p161 = scmp.lt.s32.totalorder %s14, 1
      %s162 = scalar_select %p161, %s14, 1
      %s163 = smul.addr %s162, 8
      %s164 = smul.addr %s163, 8
      %s165 = scalar_lea.vmem %s0, %s164
      %p166 = scmp.lt.s32.totalorder %s14, 1
      %s167 = scalar_select %p166, %s14, 1
      %s168 = smul.addr %s167, 8
      %s169 = smul.addr %s168, 8
      %s170 = scalar_lea.vmem %s3, %s169
      %v171 = vld [vmem:[%s165] sm:$0xff]
      %v172 = vld [vmem:[%s165 + $0x8] sm:$0xff]
      %v173 = vld [vmem:[%s165 + $0x10] sm:$0xff]
      %v174 = vld [vmem:[%s165 + $0x18] sm:$0xff]
      %v175 = vld [vmem:[%s165 + $0x20] sm:$0xff]
      %v176 = vld [vmem:[%s165 + $0x28] sm:$0xff]
      %v177 = vld [vmem:[%s165 + $0x30] sm:$0xff]
      %v178 = vld [vmem:[%s165 + $0x38] sm:$0xff]
      %v179 = vadd.f32 %v171, %v172
      %v180 = vadd.f32 %v179, %v173
      %v181 = vadd.f32 %v180, %v174
      %v182 = vadd.f32 %v181, %v175
      %v183 = vadd.f32 %v182, %v176
      %v184 = vadd.f32 %v183, %v177
      %v185 = vadd.f32 %v184, %v178
      %v186 = vrot.slane %v185, 4
      %v187 = vadd.f32 %v185, %v186
      %v188 = vrot.slane %v187, 2
      %v189 = vadd.f32 %v187, %v188
      %v190 = vrot.slane %v189, 1
      %v191 = vadd.f32 %v189, %v190
      %v192 = vrcp.pop 64.0
      %v193 = vmul.f32 %v191, %v192
      %v194 = vmul.f32 %v171, %v193
      %v195 = vmul.f32 %v172, %v193
      %v196 = vmul.f32 %v173, %v193
      %v197 = vmul.f32 %v174, %v193
      %v198 = vmul.f32 %v175, %v193
      %v199 = vmul.f32 %v176, %v193
      %v200 = vmul.f32 %v177, %v193
      %v201 = vmul.f32 %v178, %v193
      %v202 = vld [vmem:[%s1] sm:$0xff]
      %v203 = vld [vmem:[%s1 + $0x8] sm:$0xff]
      %v204 = vld [vmem:[%s1 + $0x10] sm:$0xff]
      %v205 = vld [vmem:[%s1 + $0x48] sm:$0xff]
      %v206 = vld [vmem:[%s1 + $0x50] sm:$0xff]
      %v207 = vld [vmem:[%s1 + $0x58] sm:$0xff]
      %v208 = vld [vmem:[%s1 + $0x90] sm:$0xff]
      %v209 = vld [vmem:[%s1 + $0x98] sm:$0xff]
      %v210 = vld [vmem:[%s1 + $0xa0] sm:$0xff]
      %v211 = vld [vmem:[%s1 + $0xd8] sm:$0xff]
      %v212 = vld [vmem:[%s1 + $0xe0] sm:$0xff]
      %v213 = vld [vmem:[%s1 + $0xe8] sm:$0xff]
      %v214 = vld [vmem:[%s1 + $0x120] sm:$0xff]
      %v215 = vld [vmem:[%s1 + $0x128] sm:$0xff]
      %v216 = vld [vmem:[%s1 + $0x130] sm:$0xff]
      %v217 = vld [vmem:[%s1 + $0x168] sm:$0xff]
      %v218 = vld [vmem:[%s1 + $0x170] sm:$0xff]
      %v219 = vld [vmem:[%s1 + $0x178] sm:$0xff]
      %v220 = vld [vmem:[%s1 + $0x1b0] sm:$0xff]
      %v221 = vld [vmem:[%s1 + $0x1b8] sm:$0xff]
      %v222 = vld [vmem:[%s1 + $0x1c0] sm:$0xff]
      %v223 = vld [vmem:[%s1 + $0x1f8] sm:$0xff]
      %v224 = vld [vmem:[%s1 + $0x200] sm:$0xff]
      %v225 = vld [vmem:[%s1 + $0x208] sm:$0xff]
      %v226 = vld [vmem:[%s1 + $0x240] sm:$0xff]
      %v227 = vld [vmem:[%s1 + $0x248] sm:$0xff]
      %v228 = vld [vmem:[%s1 + $0x250] sm:$0xff]
      %v229 = vld [vmem:[%s1 + $0x288] sm:$0xff]
      %v230 = vld [vmem:[%s1 + $0x290] sm:$0xff]
      %v231 = vld [vmem:[%s1 + $0x298] sm:$0xff]
      %v232 = vld [vmem:[%s1 + $0x2d0] sm:$0xff]
      %v233 = vld [vmem:[%s1 + $0x2d8] sm:$0xff]
      %v234 = vld [vmem:[%s1 + $0x2e0] sm:$0xff]
      %v235 = vld [vmem:[%s1 + $0x318] sm:$0xff]
      %v236 = vld [vmem:[%s1 + $0x320] sm:$0xff]
      %v237 = vld [vmem:[%s1 + $0x328] sm:$0xff]
      %v238 = vld [vmem:[%s1 + $0x360] sm:$0xff]
      %v239 = vld [vmem:[%s1 + $0x368] sm:$0xff]
      %v240 = vld [vmem:[%s1 + $0x370] sm:$0xff]
      %v241 = vld [vmem:[%s1 + $0x3a8] sm:$0xff]
      %v242 = vld [vmem:[%s1 + $0x3b0] sm:$0xff]
      %v243 = vld [vmem:[%s1 + $0x3b8] sm:$0xff]
      %v244 = vld [vmem:[%s1 + $0x3f0] sm:$0xff]
      %v245 = vld [vmem:[%s1 + $0x3f8] sm:$0xff]
      %v246 = vld [vmem:[%s1 + $0x400] sm:$0xff]
      %v247 = vld [vmem:[%s1 + $0x438] sm:$0xff]
      %v248 = vld [vmem:[%s1 + $0x440] sm:$0xff]
      %v249 = vld [vmem:[%s1 + $0x448] sm:$0xff]
      %250 = vmatprep.subr.mxu0 %v203
      %251 = vmatpush1.msra.mxu0 %v202
      %252 = vmatprep.subr.mxu0 %v206
      %253 = vmatpush1.msra.mxu0 %v205
      %254 = vmatprep.subr.mxu0 %v209
      %255 = vmatpush1.msra.mxu0 %v208
      %256 = vmatprep.subr.mxu0 %v212
      %257 = vmatpush1.msra.mxu0 %v211
      %258 = vmatprep.subr.mxu0 %v215
      %259 = vmatpush1.msra.mxu0 %v214
      %260 = vmatprep.subr.mxu0 %v218
      %261 = vmatpush1.msra.mxu0 %v217
      %262 = vmatprep.subr.mxu0 %v221
      %263 = vmatpush1.msra.mxu0 %v220
      %264 = vmatprep.subr.mxu0 %v224
      %265 = vmatpush1.msra.mxu0 %v223
      %266 = vmatprep.subr.mxu0 %v227
      %267 = vmatpush1.msra.mxu0 %v226
      %268 = vmatprep.subr.mxu0 %v230
      %269 = vmatpush1.msra.mxu0 %v229
      %270 = vmatprep.subr.mxu0 %v233
      %271 = vmatpush1.msra.mxu0 %v232
      %272 = vmatprep.subr.mxu0 %v236
      %273 = vmatpush1.msra.mxu0 %v235
      %274 = vmatprep.subr.mxu0 %v239
      %275 = vmatpush1.msra.mxu0 %v238
      %276 = vmatprep.subr.mxu0 %v242
      %277 = vmatpush1.msra.mxu0 %v241
      %278 = vmatprep.subr.mxu0 %v245
      %279 = vmatpush1.msra.mxu0 %v244
      %280 = vmatprep.subr.mxu0 %v248
      %281 = vmatpush1.msra.mxu0 %v247
      %282 = vmatprep.subr.mxu0 0.0
      %283 = vmatpush1.msra.mxu0 0.0
      %284 = vmatprep.subr.mxu0 0.0
      %285 = vmatpush1.msra.mxu0 0.0
      %286 = vmatprep.subr.mxu0 0.0
      %287 = vmatpush1.msra.mxu0 0.0
      %288 = vmatprep.subr.mxu0 0.0
      %289 = vmatpush1.msra.mxu0 0.0
      %290 = vmatprep.subr.mxu0 0.0
      %291 = vmatpush1.msra.mxu0 0.0
      %292 = vmatprep.subr.mxu0 0.0
      %293 = vmatpush1.msra.mxu0 0.0
      %294 = vmatprep.subr.mxu0 0.0
      %295 = vmatpush1.msra.mxu0 0.0
      %296 = vmatprep.subr.mxu0 0.0
      %297 = vmatpush1.msra.mxu0 0.0
      %298 = vmatprep.subr.mxu0 0.0
      %299 = vmatpush1.msra.mxu0 0.0
      %300 = vmatprep.subr.mxu0 0.0
      %301 = vmatpush1.msra.mxu0 0.0
      %302 = vmatprep.subr.mxu0 0.0
      %303 = vmatpush1.msra.mxu0 0.0
      %304 = vmatprep.subr.mxu0 0.0
      %305 = vmatpush1.msra.mxu0 0.0
      %306 = vmatprep.subr.mxu0 0.0
      %307 = vmatpush1.msra.mxu0 0.0
      %308 = vmatprep.subr.mxu0 0.0
      %309 = vmatpush1.msra.mxu0 0.0
      %310 = vmatprep.subr.mxu0 0.0
      %311 = vmatpush1.msra.mxu0 0.0
      %312 = vmatprep.subr.mxu0 0.0
      %313 = vmatpush1.msra.mxu0 0.0
      %314 = vmatprep.mubr.f32.mxu0 0.0
      %315 = vmatmul.mubr.f32.gmra.mrb[0].mxu0 %v194
      %v316 = vpop.f32.mrb[0].mxu0
      %v317 = vadd.f32 0.0, %v316
      %v318 = vpop.f32.mrb[0].mxu0
      %v319 = vadd.f32 0.0, %v318
      %320 = vmatprep.mubr.f32.mxu0 0.0
      %321 = vmatmul.mubr.f32.gmra.mrb[0].mxu0 %v195
      %v322 = vpop.f32.mrb[0].mxu0
      %v323 = vadd.f32 0.0, %v322
      %v324 = vpop.f32.mrb[0].mxu0
      %v325 = vadd.f32 0.0, %v324
      %326 = vmatprep.mubr.f32.mxu0 0.0
      %327 = vmatmul.mubr.f32.gmra.mrb[0].mxu0 %v196
      %v328 = vpop.f32.mrb[0].mxu0
      %v329 = vadd.f32 0.0, %v328
      %v330 = vpop.f32.mrb[0].mxu0
      %v331 = vadd.f32 0.0, %v330
      %332 = vmatprep.mubr.f32.mxu0 0.0
      %333 = vmatmul.mubr.f32.gmra.mrb[0].mxu0 %v197
      %v334 = vpop.f32.mrb[0].mxu0
      %v335 = vadd.f32 0.0, %v334
      %v336 = vpop.f32.mrb[0].mxu0
      %v337 = vadd.f32 0.0, %v336
      %338 = vmatprep.mubr.f32.mxu0 0.0
      %339 = vmatmul.mubr.f32.gmra.mrb[0].mxu0 %v198
      %v340 = vpop.f32.mrb[0].mxu0
      %v341 = vadd.f32 0.0, %v340
      %v342 = vpop.f32.mrb[0].mxu0
      %v343 = vadd.f32 0.0, %v342
      %344 = vmatprep.mubr.f32.mxu0 0.0
      %345 = vmatmul.mubr.f32.gmra.mrb[0].mxu0 %v199
      %v346 = vpop.f32.mrb[0].mxu0
      %v347 = vadd.f32 0.0, %v346
      %v348 = vpop.f32.mrb[0].mxu0
      %v349 = vadd.f32 0.0, %v348
      %350 = vmatprep.mubr.f32.mxu0 0.0
      %351 = vmatmul.mubr.f32.gmra.mrb[0].mxu0 %v200
      %v352 = vpop.f32.mrb[0].mxu0
      %v353 = vadd.f32 0.0, %v352
      %v354 = vpop.f32.mrb[0].mxu0
      %v355 = vadd.f32 0.0, %v354
      %356 = vmatprep.mubr.f32.mxu0 0.0
      %357 = vmatmul.mubr.f32.gmra.mrb[0].mxu0 %v201
      %v358 = vpop.f32.mrb[0].mxu0
      %v359 = vadd.f32 0.0, %v358
      %v360 = vpop.f32.mrb[0].mxu0
      %v361 = vadd.f32 0.0, %v360
      %362 = vdwg.mxu0
      %363 = vmatprep.subr.mxu0 0.0
      %364 = vmatpush1.msra.mxu0 %v204
      %365 = vmatprep.subr.mxu0 0.0
      %366 = vmatpush1.msra.mxu0 %v207
      %367 = vmatprep.subr.mxu0 0.0
      %368 = vmatpush1.msra.mxu0 %v210
      %369 = vmatprep.subr.mxu0 0.0
      %370 = vmatpush1.msra.mxu0 %v213
      %371 = vmatprep.subr.mxu0 0.0
      %372 = vmatpush1.msra.mxu0 %v216
      %373 = vmatprep.subr.mxu0 0.0
      %374 = vmatpush1.msra.mxu0 %v219
      %375 = vmatprep.subr.mxu0 0.0
      %376 = vmatpush1.msra.mxu0 %v222
      %377 = vmatprep.subr.mxu0 0.0
      %378 = vmatpush1.msra.mxu0 %v225
      %379 = vmatprep.subr.mxu0 0.0
      %380 = vmatpush1.msra.mxu0 %v228
      %381 = vmatprep.subr.mxu0 0.0
      %382 = vmatpush1.msra.mxu0 %v231
      %383 = vmatprep.subr.mxu0 0.0
      %384 = vmatpush1.msra.mxu0 %v234
      %385 = vmatprep.subr.mxu0 0.0
      %386 = vmatpush1.msra.mxu0 %v237
      %387 = vmatprep.subr.mxu0 0.0
      %388 = vmatpush1.msra.mxu0 %v240
      %389 = vmatprep.subr.mxu0 0.0
      %390 = vmatpush1.msra.mxu0 %v243
      %391 = vmatprep.subr.mxu0 0.0
      %392 = vmatpush1.msra.mxu0 %v246
      %393 = vmatprep.subr.mxu0 0.0
      %394 = vmatpush1.msra.mxu0 %v249
      %395 = vmatprep.subr.mxu0 0.0
      %396 = vmatpush1.msra.mxu0 0.0
      %397 = vmatprep.subr.mxu0 0.0
      %398 = vmatpush1.msra.mxu0 0.0
      %399 = vmatprep.subr.mxu0 0.0
      %400 = vmatpush1.msra.mxu0 0.0
      %401 = vmatprep.subr.mxu0 0.0
      %402 = vmatpush1.msra.mxu0 0.0
      %403 = vmatprep.subr.mxu0 0.0
      %404 = vmatpush1.msra.mxu0 0.0
      %405 = vmatprep.subr.mxu0 0.0
      %406 = vmatpush1.msra.mxu0 0.0
      %407 = vmatprep.subr.mxu0 0.0
      %408 = vmatpush1.msra.mxu0 0.0
      %409 = vmatprep.subr.mxu0 0.0
      %410 = vmatpush1.msra.mxu0 0.0
      %411 = vmatprep.subr.mxu0 0.0
      %412 = vmatpush1.msra.mxu0 0.0
      %413 = vmatprep.subr.mxu0 0.0
      %414 = vmatpush1.msra.mxu0 0.0
      %415 = vmatprep.subr.mxu0 0.0
      %416 = vmatpush1.msra.mxu0 0.0
      %417 = vmatprep.subr.mxu0 0.0
      %418 = vmatpush1.msra.mxu0 0.0
      %419 = vmatprep.subr.mxu0 0.0
      %420 = vmatpush1.msra.mxu0 0.0
      %421 = vmatprep.subr.mxu0 0.0
      %422 = vmatpush1.msra.mxu0 0.0
      %423 = vmatprep.subr.mxu0 0.0
      %424 = vmatpush1.msra.mxu0 0.0
      %425 = vmatprep.subr.mxu0 0.0
      %426 = vmatpush1.msra.mxu0 0.0
      %427 = vmatprep.mubr.f32.mxu0 0.0
      %428 = vmatmul.mubr.f32.gmra.mrb[0].mxu0 %v194
      %v429 = vpop.f32.mrb[0].mxu0
      %v430 = vadd.f32 0.0, %v429
      %v431 = vpop.f32.mrb[0].mxu0
      %432 = vmatprep.mubr.f32.mxu0 0.0
      %433 = vmatmul.mubr.f32.gmra.mrb[0].mxu0 %v195
      %v434 = vpop.f32.mrb[0].mxu0
      %v435 = vadd.f32 0.0, %v434
      %v436 = vpop.f32.mrb[0].mxu0
      %437 = vmatprep.mubr.f32.mxu0 0.0
      %438 = vmatmul.mubr.f32.gmra.mrb[0].mxu0 %v196
      %v439 = vpop.f32.mrb[0].mxu0
      %v440 = vadd.f32 0.0, %v439
      %v441 = vpop.f32.mrb[0].mxu0
      %442 = vmatprep.mubr.f32.mxu0 0.0
      %443 = vmatmul.mubr.f32.gmra.mrb[0].mxu0 %v197
      %v444 = vpop.f32.mrb[0].mxu0
      %v445 = vadd.f32 0.0, %v444
      %v446 = vpop.f32.mrb[0].mxu0
      %447 = vmatprep.mubr.f32.mxu0 0.0
      %448 = vmatmul.mubr.f32.gmra.mrb[0].mxu0 %v198
      %v449 = vpop.f32.mrb[0].mxu0
      %v450 = vadd.f32 0.0, %v449
      %v451 = vpop.f32.mrb[0].mxu0
      %452 = vmatprep.mubr.f32.mxu0 0.0
      %453 = vmatmul.mubr.f32.gmra.mrb[0].mxu0 %v199
      %v454 = vpop.f32.mrb[0].mxu0
      %v455 = vadd.f32 0.0, %v454
      %v456 = vpop.f32.mrb[0].mxu0
      %457 = vmatprep.mubr.f32.mxu0 0.0
      %458 = vmatmul.mubr.f32.gmra.mrb[0].mxu0 %v200
      %v459 = vpop.f32.mrb[0].mxu0
      %v460 = vadd.f32 0.0, %v459
      %v461 = vpop.f32.mrb[0].mxu0
      %462 = vmatprep.mubr.f32.mxu0 0.0
      %463 = vmatmul.mubr.f32.gmra.mrb[0].mxu0 %v201
      %v464 = vpop.f32.mrb[0].mxu0
      %v465 = vadd.f32 0.0, %v464
      %v466 = vpop.f32.mrb[0].mxu0
      %467 = vdwg.mxu0
      %v468 = vld [vmem:[%s2] sm:$0x1]
      %v469 = vlaneseq
      %v470 = vshrl.u32 %v469, 7
      %v471 = vsub.s32 0, %v470
      %v472 = vrot.slane %v468, %v471
      %v473 = vadd.f32 %v317, %v472
      %v474 = vadd.f32 %v323, %v472
      %v475 = vadd.f32 %v329, %v472
      %v476 = vadd.f32 %v335, %v472
      %v477 = vadd.f32 %v341, %v472
      %v478 = vadd.f32 %v347, %v472
      %v479 = vadd.f32 %v353, %v472
      %v480 = vadd.f32 %v359, %v472
      %v481 = vld [vmem:[%s2 + $0x1] sm:$0x1]
      %v482 = vlaneseq
      %v483 = vshrl.u32 %v482, 7
      %v484 = vsub.s32 0, %v483
      %v485 = vrot.slane %v481, %v484
      %v486 = vadd.f32 %v319, %v485
      %v487 = vadd.f32 %v325, %v485
      %v488 = vadd.f32 %v331, %v485
      %v489 = vadd.f32 %v337, %v485
      %v490 = vadd.f32 %v343, %v485
      %v491 = vadd.f32 %v349, %v485
      %v492 = vadd.f32 %v355, %v485
      %v493 = vadd.f32 %v361, %v485
      %v494 = vld [vmem:[%s2 + $0x2] sm:$0x1]
      %v495 = vlaneseq
      %v496 = vshrl.u32 %v495, 7
      %v497 = vsub.s32 0, %v496
      %v498 = vrot.slane %v494, %v497
      %v499 = vadd.f32 %v430, %v498
      %v500 = vadd.f32 %v435, %v498
      %v501 = vadd.f32 %v440, %v498
      %v502 = vadd.f32 %v445, %v498
      %v503 = vadd.f32 %v450, %v498
      %v504 = vadd.f32 %v455, %v498
      %v505 = vadd.f32 %v460, %v498
      %v506 = vadd.f32 %v465, %v498
      %507 = vmatprep.subr.mxu0 0.0
      %508 = vmatpush1.xpose.msra.mxu0 %v486
      %509 = vmatprep.subr.mxu0 0.0
      %510 = vmatpush1.xpose.msra.mxu0 %v487
      %511 = vmatprep.subr.mxu0 0.0
      %512 = vmatpush1.xpose.msra.mxu0 %v488
      %513 = vmatprep.subr.mxu0 0.0
      %514 = vmatpush1.xpose.msra.mxu0 %v489
      %515 = vmatprep.subr.mxu0 0.0
      %516 = vmatpush1.xpose.msra.mxu0 %v490
      %517 = vmatprep.subr.mxu0 0.0
      %518 = vmatpush1.xpose.msra.mxu0 %v491
      %519 = vmatprep.subr.mxu0 0.0
      %520 = vmatpush1.xpose.msra.mxu0 %v492
      %521 = vmatprep.subr.mxu0 0.0
      %522 = vmatpush1.xpose.msra.mxu0 %v493
      %523 = vmatprep.subr.mxu0 0.0
      %524 = vmatpush1.xpose.msra.mxu0 0.0
      %525 = vmatprep.subr.mxu0 0.0
      %526 = vmatpush1.xpose.msra.mxu0 0.0
      %527 = vmatprep.subr.mxu0 0.0
      %528 = vmatpush1.xpose.msra.mxu0 0.0
      %529 = vmatprep.subr.mxu0 0.0
      %530 = vmatpush1.xpose.msra.mxu0 0.0
      %531 = vmatprep.subr.mxu0 0.0
      %532 = vmatpush1.xpose.msra.mxu0 0.0
      %533 = vmatprep.subr.mxu0 0.0
      %534 = vmatpush1.xpose.msra.mxu0 0.0
      %535 = vmatprep.subr.mxu0 0.0
      %536 = vmatpush1.xpose.msra.mxu0 0.0
      %537 = vmatprep.subr.mxu0 0.0
      %538 = vmatpush1.xpose.msra.mxu0 0.0
      %539 = vmatprep.subr.mxu0 0.0
      %540 = vmatpush1.xpose.msra.mxu0 0.0
      %541 = vmatprep.subr.mxu0 0.0
      %542 = vmatpush1.xpose.msra.mxu0 0.0
      %543 = vmatprep.subr.mxu0 0.0
      %544 = vmatpush1.xpose.msra.mxu0 0.0
      %545 = vmatprep.subr.mxu0 0.0
      %546 = vmatpush1.xpose.msra.mxu0 0.0
      %547 = vmatprep.subr.mxu0 0.0
      %548 = vmatpush1.xpose.msra.mxu0 0.0
      %549 = vmatprep.subr.mxu0 0.0
      %550 = vmatpush1.xpose.msra.mxu0 0.0
      %551 = vmatprep.subr.mxu0 0.0
      %552 = vmatpush1.xpose.msra.mxu0 0.0
      %553 = vmatprep.subr.mxu0 0.0
      %554 = vmatpush1.xpose.msra.mxu0 0.0
      %555 = vmatprep.subr.mxu0 0.0
      %556 = vmatpush1.xpose.msra.mxu0 0.0
      %557 = vmatprep.subr.mxu0 0.0
      %558 = vmatpush1.xpose.msra.mxu0 0.0
      %559 = vmatprep.subr.mxu0 0.0
      %560 = vmatpush1.xpose.msra.mxu0 0.0
      %561 = vmatprep.subr.mxu0 0.0
      %562 = vmatpush1.xpose.msra.mxu0 0.0
      %563 = vmatprep.subr.mxu0 0.0
      %564 = vmatpush1.xpose.msra.mxu0 0.0
      %565 = vmatprep.subr.mxu0 0.0
      %566 = vmatpush1.xpose.msra.mxu0 0.0
      %567 = vmatprep.subr.mxu0 0.0
      %568 = vmatpush1.xpose.msra.mxu0 0.0
      %569 = vmatprep.subr.mxu0 0.0
      %570 = vmatpush1.xpose.msra.mxu0 0.0
      %571 = vmatprep.mubr.f32.mxu0 0.0
      %572 = vmatmul.mubr.f32.gmra.mrb[0].mxu0 %v473
      %v573 = vpop.f32.mrb[0].mxu0
      %v574 = vadd.f32 0.0, %v573
      %v575 = vpop.f32.mrb[0].mxu0
      %576 = vmatprep.mubr.f32.mxu0 0.0
      %577 = vmatmul.mubr.f32.gmra.mrb[0].mxu0 %v474
      %v578 = vpop.f32.mrb[0].mxu0
      %v579 = vadd.f32 0.0, %v578
      %v580 = vpop.f32.mrb[0].mxu0
      %581 = vmatprep.mubr.f32.mxu0 0.0
      %582 = vmatmul.mubr.f32.gmra.mrb[0].mxu0 %v475
      %v583 = vpop.f32.mrb[0].mxu0
      %v584 = vadd.f32 0.0, %v583
      %v585 = vpop.f32.mrb[0].mxu0
      %586 = vmatprep.mubr.f32.mxu0 0.0
      %587 = vmatmul.mubr.f32.gmra.mrb[0].mxu0 %v476
      %v588 = vpop.f32.mrb[0].mxu0
      %v589 = vadd.f32 0.0, %v588
      %v590 = vpop.f32.mrb[0].mxu0
      %591 = vmatprep.mubr.f32.mxu0 0.0
      %592 = vmatmul.mubr.f32.gmra.mrb[0].mxu0 %v477
      %v593 = vpop.f32.mrb[0].mxu0
      %v594 = vadd.f32 0.0, %v593
      %v595 = vpop.f32.mrb[0].mxu0
      %596 = vmatprep.mubr.f32.mxu0 0.0
      %597 = vmatmul.mubr.f32.gmra.mrb[0].mxu0 %v478
      %v598 = vpop.f32.mrb[0].mxu0
      %v599 = vadd.f32 0.0, %v598
      %v600 = vpop.f32.mrb[0].mxu0
      %601 = vmatprep.mubr.f32.mxu0 0.0
      %602 = vmatmul.mubr.f32.gmra.mrb[0].mxu0 %v479
      %v603 = vpop.f32.mrb[0].mxu0
      %v604 = vadd.f32 0.0, %v603
      %v605 = vpop.f32.mrb[0].mxu0
      %606 = vmatprep.mubr.f32.mxu0 0.0
      %607 = vmatmul.mubr.f32.gmra.mrb[0].mxu0 %v480
      %v608 = vpop.f32.mrb[0].mxu0
      %v609 = vadd.f32 0.0, %v608
      %v610 = vpop.f32.mrb[0].mxu0
      %611 = vdwg.mxu0
      %v612 = vmul.f32 %v574, 0.35355338
      %v613 = vmul.f32 %v579, 0.35355338
      %v614 = vmul.f32 %v584, 0.35355338
      %v615 = vmul.f32 %v589, 0.35355338
      %v616 = vmul.f32 %v594, 0.35355338
      %v617 = vmul.f32 %v599, 0.35355338
      %v618 = vmul.f32 %v604, 0.35355338
      %v619 = vmul.f32 %v609, 0.35355338
      %vm620 = vcmask 523264
      %v621 = vsel %vm620, %v612, -inf
      %622 = vmax.xlane.f32.xlu0 %v621
      %v623 = vpop.xlane.xlu0 %622
      %v624 = vsel %vm620, %v613, -inf
      %625 = vmax.xlane.f32.xlu0 %v624
      %v626 = vpop.xlane.xlu0 %625
      %v627 = vsel %vm620, %v614, -inf
      %628 = vmax.xlane.f32.xlu0 %v627
      %v629 = vpop.xlane.xlu0 %628
      %v630 = vsel %vm620, %v615, -inf
      %631 = vmax.xlane.f32.xlu0 %v630
      %v632 = vpop.xlane.xlu0 %631
      %v633 = vsel %vm620, %v616, -inf
      %634 = vmax.xlane.f32.xlu0 %v633
      %v635 = vpop.xlane.xlu0 %634
      %v636 = vsel %vm620, %v617, -inf
      %637 = vmax.xlane.f32.xlu0 %v636
      %v638 = vpop.xlane.xlu0 %637
      %v639 = vsel %vm620, %v618, -inf
      %640 = vmax.xlane.f32.xlu0 %v639
      %v641 = vpop.xlane.xlu0 %640
      %v642 = vsel %vm620, %v619, -inf
      %643 = vmax.xlane.f32.xlu0 %v642
      %v644 = vpop.xlane.xlu0 %643
      %v645 = vsub.f32 %v612, %v623
      %v646 = vsub.f32 %v613, %v626
      %v647 = vsub.f32 %v614, %v629
      %v648 = vsub.f32 %v615, %v632
      %v649 = vsub.f32 %v616, %v635
      %v650 = vsub.f32 %v617, %v638
      %v651 = vsub.f32 %v618, %v641
      %v652 = vsub.f32 %v619, %v644
      %v653 = vmul.f32 %v645, 1.442695
      %v654 = vpow.pop %v653
      %v655 = vmul.f32 %v646, 1.442695
      %v656 = vpow.pop %v655
      %v657 = vmul.f32 %v647, 1.442695
      %v658 = vpow.pop %v657
      %v659 = vmul.f32 %v648, 1.442695
      %v660 = vpow.pop %v659
      %v661 = vmul.f32 %v649, 1.442695
      %v662 = vpow.pop %v661
      %v663 = vmul.f32 %v650, 1.442695
      %v664 = vpow.pop %v663
      %v665 = vmul.f32 %v651, 1.442695
      %v666 = vpow.pop %v665
      %v667 = vmul.f32 %v652, 1.442695
      %v668 = vpow.pop %v667
      %v669 = vsel %vm620, %v654, 0.0
      %670 = vadd.xlane.f32.xlu0 %v669
      %v671 = vpop.xlane.xlu0 %670
      %v672 = vsel %vm620, %v656, 0.0
      %673 = vadd.xlane.f32.xlu0 %v672
      %v674 = vpop.xlane.xlu0 %673
      %v675 = vsel %vm620, %v658, 0.0
      %676 = vadd.xlane.f32.xlu0 %v675
      %v677 = vpop.xlane.xlu0 %676
      %v678 = vsel %vm620, %v660, 0.0
      %679 = vadd.xlane.f32.xlu0 %v678
      %v680 = vpop.xlane.xlu0 %679
      %v681 = vsel %vm620, %v662, 0.0
      %682 = vadd.xlane.f32.xlu0 %v681
      %v683 = vpop.xlane.xlu0 %682
      %v684 = vsel %vm620, %v664, 0.0
      %685 = vadd.xlane.f32.xlu0 %v684
      %v686 = vpop.xlane.xlu0 %685
      %v687 = vsel %vm620, %v666, 0.0
      %688 = vadd.xlane.f32.xlu0 %v687
      %v689 = vpop.xlane.xlu0 %688
      %v690 = vsel %vm620, %v668, 0.0
      %691 = vadd.xlane.f32.xlu0 %v690
      %v692 = vpop.xlane.xlu0 %691
      %v693 = vrcp.pop %v671
      %v694 = vrcp.pop %v674
      %v695 = vrcp.pop %v677
      %v696 = vrcp.pop %v680
      %v697 = vrcp.pop %v683
      %v698 = vrcp.pop %v686
      %v699 = vrcp.pop %v689
      %v700 = vrcp.pop %v692
      %v701 = vmul.f32 %v654, %v693
      %v702 = vmul.f32 %v656, %v694
      %v703 = vmul.f32 %v658, %v695
      %v704 = vmul.f32 %v660, %v696
      %v705 = vmul.f32 %v662, %v697
      %v706 = vmul.f32 %v664, %v698
      %v707 = vmul.f32 %v666, %v699
      %v708 = vmul.f32 %v668, %v700
      %v710 = vsel %vm620, %v701, 0
      %v713 = vsel %vm620, %v702, 0
      %v716 = vsel %vm620, %v703, 0
      %v719 = vsel %vm620, %v704, 0
      %v722 = vsel %vm620, %v705, 0
      %v725 = vsel %vm620, %v706, 0
      %v728 = vsel %vm620, %v707, 0
      %v731 = vsel %vm620, %v708, 0
      %733 = vmatprep.subr.mxu0 0.0
      %734 = vmatpush1.msra.mxu0 %v499
      %735 = vmatprep.subr.mxu0 0.0
      %736 = vmatpush1.msra.mxu0 %v500
      %737 = vmatprep.subr.mxu0 0.0
      %738 = vmatpush1.msra.mxu0 %v501
      %739 = vmatprep.subr.mxu0 0.0
      %740 = vmatpush1.msra.mxu0 %v502
      %741 = vmatprep.subr.mxu0 0.0
      %742 = vmatpush1.msra.mxu0 %v503
      %743 = vmatprep.subr.mxu0 0.0
      %744 = vmatpush1.msra.mxu0 %v504
      %745 = vmatprep.subr.mxu0 0.0
      %746 = vmatpush1.msra.mxu0 %v505
      %747 = vmatprep.subr.mxu0 0.0
      %748 = vmatpush1.msra.mxu0 %v506
      %749 = vmatprep.subr.mxu0 0.0
      %750 = vmatpush1.msra.mxu0 0.0
      %751 = vmatprep.subr.mxu0 0.0
      %752 = vmatpush1.msra.mxu0 0.0
      %753 = vmatprep.subr.mxu0 0.0
      %754 = vmatpush1.msra.mxu0 0.0
      %755 = vmatprep.subr.mxu0 0.0
      %756 = vmatpush1.msra.mxu0 0.0
      %757 = vmatprep.subr.mxu0 0.0
      %758 = vmatpush1.msra.mxu0 0.0
      %759 = vmatprep.subr.mxu0 0.0
      %760 = vmatpush1.msra.mxu0 0.0
      %761 = vmatprep.subr.mxu0 0.0
      %762 = vmatpush1.msra.mxu0 0.0
      %763 = vmatprep.subr.mxu0 0.0
      %764 = vmatpush1.msra.mxu0 0.0
      %765 = vmatprep.subr.mxu0 0.0
      %766 = vmatpush1.msra.mxu0 0.0
      %767 = vmatprep.subr.mxu0 0.0
      %768 = vmatpush1.msra.mxu0 0.0
      %769 = vmatprep.subr.mxu0 0.0
      %770 = vmatpush1.msra.mxu0 0.0
      %771 = vmatprep.subr.mxu0 0.0
      %772 = vmatpush1.msra.mxu0 0.0
      %773 = vmatprep.subr.mxu0 0.0
      %774 = vmatpush1.msra.mxu0 0.0
      %775 = vmatprep.subr.mxu0 0.0
      %776 = vmatpush1.msra.mxu0 0.0
      %777 = vmatprep.subr.mxu0 0.0
      %778 = vmatpush1.msra.mxu0 0.0
      %779 = vmatprep.subr.mxu0 0.0
      %780 = vmatpush1.msra.mxu0 0.0
      %781 = vmatprep.subr.mxu0 0.0
      %782 = vmatpush1.msra.mxu0 0.0
      %783 = vmatprep.subr.mxu0 0.0
      %784 = vmatpush1.msra.mxu0 0.0
      %785 = vmatprep.subr.mxu0 0.0
      %786 = vmatpush1.msra.mxu0 0.0
      %787 = vmatprep.subr.mxu0 0.0
      %788 = vmatpush1.msra.mxu0 0.0
      %789 = vmatprep.subr.mxu0 0.0
      %790 = vmatpush1.msra.mxu0 0.0
      %791 = vmatprep.subr.mxu0 0.0
      %792 = vmatpush1.msra.mxu0 0.0
      %793 = vmatprep.subr.mxu0 0.0
      %794 = vmatpush1.msra.mxu0 0.0
      %795 = vmatprep.subr.mxu0 0.0
      %796 = vmatpush1.msra.mxu0 0.0
      %797 = vmatprep.mubr.f32.mxu0 0.0
      %798 = vmatmul.mubr.f32.gmra.mrb[0].mxu0 %v710
      %v799 = vpop.f32.mrb[0].mxu0
      %v800 = vadd.f32 0.0, %v799
      %v801 = vpop.f32.mrb[0].mxu0
      %802 = vmatprep.mubr.f32.mxu0 0.0
      %803 = vmatmul.mubr.f32.gmra.mrb[0].mxu0 %v713
      %v804 = vpop.f32.mrb[0].mxu0
      %v805 = vadd.f32 0.0, %v804
      %v806 = vpop.f32.mrb[0].mxu0
      %807 = vmatprep.mubr.f32.mxu0 0.0
      %808 = vmatmul.mubr.f32.gmra.mrb[0].mxu0 %v716
      %v809 = vpop.f32.mrb[0].mxu0
      %v810 = vadd.f32 0.0, %v809
      %v811 = vpop.f32.mrb[0].mxu0
      %812 = vmatprep.mubr.f32.mxu0 0.0
      %813 = vmatmul.mubr.f32.gmra.mrb[0].mxu0 %v719
      %v814 = vpop.f32.mrb[0].mxu0
      %v815 = vadd.f32 0.0, %v814
      %v816 = vpop.f32.mrb[0].mxu0
      %817 = vmatprep.mubr.f32.mxu0 0.0
      %818 = vmatmul.mubr.f32.gmra.mrb[0].mxu0 %v722
      %v819 = vpop.f32.mrb[0].mxu0
      %v820 = vadd.f32 0.0, %v819
      %v821 = vpop.f32.mrb[0].mxu0
      %822 = vmatprep.mubr.f32.mxu0 0.0
      %823 = vmatmul.mubr.f32.gmra.mrb[0].mxu0 %v725
      %v824 = vpop.f32.mrb[0].mxu0
      %v825 = vadd.f32 0.0, %v824
      %v826 = vpop.f32.mrb[0].mxu0
      %827 = vmatprep.mubr.f32.mxu0 0.0
      %828 = vmatmul.mubr.f32.gmra.mrb[0].mxu0 %v728
      %v829 = vpop.f32.mrb[0].mxu0
      %v830 = vadd.f32 0.0, %v829
      %v831 = vpop.f32.mrb[0].mxu0
      %832 = vmatprep.mubr.f32.mxu0 0.0
      %833 = vmatmul.mubr.f32.gmra.mrb[0].mxu0 %v731
      %v834 = vpop.f32.mrb[0].mxu0
      %v835 = vadd.f32 0.0, %v834
      %v836 = vpop.f32.mrb[0].mxu0
      %837 = vdwg.mxu0
      %v838 = vld [vmem:[%s1 + $0x18] sm:$0xff]
      %v839 = vld [vmem:[%s1 + $0x60] sm:$0xff]
      %v840 = vld [vmem:[%s1 + $0xa8] sm:$0xff]
      %v841 = vld [vmem:[%s1 + $0xf0] sm:$0xff]
      %v842 = vld [vmem:[%s1 + $0x138] sm:$0xff]
      %v843 = vld [vmem:[%s1 + $0x180] sm:$0xff]
      %v844 = vld [vmem:[%s1 + $0x1c8] sm:$0xff]
      %v845 = vld [vmem:[%s1 + $0x210] sm:$0xff]
      %v846 = vld [vmem:[%s1 + $0x258] sm:$0xff]
      %v847 = vld [vmem:[%s1 + $0x2a0] sm:$0xff]
      %v848 = vld [vmem:[%s1 + $0x2e8] sm:$0xff]
      %v849 = vld [vmem:[%s1 + $0x330] sm:$0xff]
      %v850 = vld [vmem:[%s1 + $0x378] sm:$0xff]
      %v851 = vld [vmem:[%s1 + $0x3c0] sm:$0xff]
      %v852 = vld [vmem:[%s1 + $0x408] sm:$0xff]
      %v853 = vld [vmem:[%s1 + $0x450] sm:$0xff]
      %v854 = vld [vmem:[%s2 + $0x3] sm:$0x1]
      %v855 = vlaneseq
      %v856 = vshrl.u32 %v855, 7
      %v857 = vsub.s32 0, %v856
      %v858 = vrot.slane %v854, %v857
      %859 = vmatprep.subr.mxu0 0.0
      %860 = vmatpush1.msra.mxu0 %v838
      %861 = vmatprep.subr.mxu0 0.0
      %862 = vmatpush1.msra.mxu0 %v839
      %863 = vmatprep.subr.mxu0 0.0
      %864 = vmatpush1.msra.mxu0 %v840
      %865 = vmatprep.subr.mxu0 0.0
      %866 = vmatpush1.msra.mxu0 %v841
      %867 = vmatprep.subr.mxu0 0.0
      %868 = vmatpush1.msra.mxu0 %v842
      %869 = vmatprep.subr.mxu0 0.0
      %870 = vmatpush1.msra.mxu0 %v843
      %871 = vmatprep.subr.mxu0 0.0
      %872 = vmatpush1.msra.mxu0 %v844
      %873 = vmatprep.subr.mxu0 0.0
      %874 = vmatpush1.msra.mxu0 %v845
      %875 = vmatprep.subr.mxu0 0.0
      %876 = vmatpush1.msra.mxu0 %v846
      %877 = vmatprep.subr.mxu0 0.0
      %878 = vmatpush1.msra.mxu0 %v847
      %879 = vmatprep.subr.mxu0 0.0
      %880 = vmatpush1.msra.mxu0 %v848
      %881 = vmatprep.subr.mxu0 0.0
      %882 = vmatpush1.msra.mxu0 %v849
      %883 = vmatprep.subr.mxu0 0.0
      %884 = vmatpush1.msra.mxu0 %v850
      %885 = vmatprep.subr.mxu0 0.0
      %886 = vmatpush1.msra.mxu0 %v851
      %887 = vmatprep.subr.mxu0 0.0
      %888 = vmatpush1.msra.mxu0 %v852
      %889 = vmatprep.subr.mxu0 0.0
      %890 = vmatpush1.msra.mxu0 %v853
      %891 = vmatprep.subr.mxu0 0.0
      %892 = vmatpush1.msra.mxu0 0.0
      %893 = vmatprep.subr.mxu0 0.0
      %894 = vmatpush1.msra.mxu0 0.0
      %895 = vmatprep.subr.mxu0 0.0
      %896 = vmatpush1.msra.mxu0 0.0
      %897 = vmatprep.subr.mxu0 0.0
      %898 = vmatpush1.msra.mxu0 0.0
      %899 = vmatprep.subr.mxu0 0.0
      %900 = vmatpush1.msra.mxu0 0.0
      %901 = vmatprep.subr.mxu0 0.0
      %902 = vmatpush1.msra.mxu0 0.0
      %903 = vmatprep.subr.mxu0 0.0
      %904 = vmatpush1.msra.mxu0 0.0
      %905 = vmatprep.subr.mxu0 0.0
      %906 = vmatpush1.msra.mxu0 0.0
      %907 = vmatprep.subr.mxu0 0.0
      %908 = vmatpush1.msra.mxu0 0.0
      %909 = vmatprep.subr.mxu0 0.0
      %910 = vmatpush1.msra.mxu0 0.0
      %911 = vmatprep.subr.mxu0 0.0
      %912 = vmatpush1.msra.mxu0 0.0
      %913 = vmatprep.subr.mxu0 0.0
      %914 = vmatpush1.msra.mxu0 0.0
      %915 = vmatprep.subr.mxu0 0.0
      %916 = vmatpush1.msra.mxu0 0.0
      %917 = vmatprep.subr.mxu0 0.0
      %918 = vmatpush1.msra.mxu0 0.0
      %919 = vmatprep.subr.mxu0 0.0
      %920 = vmatpush1.msra.mxu0 0.0
      %921 = vmatprep.subr.mxu0 0.0
      %922 = vmatpush1.msra.mxu0 0.0
      %923 = vmatprep.mubr.f32.mxu0 0.0
      %924 = vmatmul.mubr.f32.gmra.mrb[0].mxu0 %v800
      %v925 = vpop.f32.mrb[0].mxu0
      %v926 = vadd.f32 %v858, %v925
      %v927 = vpop.f32.mrb[0].mxu0
      %928 = vmatprep.mubr.f32.mxu0 0.0
      %929 = vmatmul.mubr.f32.gmra.mrb[0].mxu0 %v805
      %v930 = vpop.f32.mrb[0].mxu0
      %v931 = vadd.f32 %v858, %v930
      %v932 = vpop.f32.mrb[0].mxu0
      %933 = vmatprep.mubr.f32.mxu0 0.0
      %934 = vmatmul.mubr.f32.gmra.mrb[0].mxu0 %v810
      %v935 = vpop.f32.mrb[0].mxu0
      %v936 = vadd.f32 %v858, %v935
      %v937 = vpop.f32.mrb[0].mxu0
      %938 = vmatprep.mubr.f32.mxu0 0.0
      %939 = vmatmul.mubr.f32.gmra.mrb[0].mxu0 %v815
      %v940 = vpop.f32.mrb[0].mxu0
      %v941 = vadd.f32 %v858, %v940
      %v942 = vpop.f32.mrb[0].mxu0
      %943 = vmatprep.mubr.f32.mxu0 0.0
      %944 = vmatmul.mubr.f32.gmra.mrb[0].mxu0 %v820
      %v945 = vpop.f32.mrb[0].mxu0
      %v946 = vadd.f32 %v858, %v945
      %v947 = vpop.f32.mrb[0].mxu0
      %948 = vmatprep.mubr.f32.mxu0 0.0
      %949 = vmatmul.mubr.f32.gmra.mrb[0].mxu0 %v825
      %v950 = vpop.f32.mrb[0].mxu0
      %v951 = vadd.f32 %v858, %v950
      %v952 = vpop.f32.mrb[0].mxu0
      %953 = vmatprep.mubr.f32.mxu0 0.0
      %954 = vmatmul.mubr.f32.gmra.mrb[0].mxu0 %v830
      %v955 = vpop.f32.mrb[0].mxu0
      %v956 = vadd.f32 %v858, %v955
      %v957 = vpop.f32.mrb[0].mxu0
      %958 = vmatprep.mubr.f32.mxu0 0.0
      %959 = vmatmul.mubr.f32.gmra.mrb[0].mxu0 %v835
      %v960 = vpop.f32.mrb[0].mxu0
      %v961 = vadd.f32 %v858, %v960
      %v962 = vpop.f32.mrb[0].mxu0
      %963 = vdwg.mxu0
      %964 = vst [vmem:[#allocation2] sm:$0xff] 0.0
      %965 = vst [vmem:[#allocation2 + $0x8] sm:$0xf] 0.0
      %966 = vst [vmem:[#allocation2 + $0x10] sm:$0xff] 0.0
      %967 = vst [vmem:[#allocation2 + $0x18] sm:$0xf] 0.0
      %968 = vst [vmem:[#allocation2 + $0x20] sm:$0xff] 0.0
      %969 = vst [vmem:[#allocation2 + $0x28] sm:$0xf] 0.0
      %970 = vst [vmem:[#allocation2 + $0x30] sm:$0xff] 0.0
      %971 = vst [vmem:[#allocation2 + $0x38] sm:$0xf] 0.0
      %972 = vst [vmem:[#allocation2 + $0x40] sm:$0xff] 0.0
      %973 = vst [vmem:[#allocation2 + $0x48] sm:$0xf] 0.0
      %974 = vst [vmem:[#allocation2 + $0x50] sm:$0xff] 0.0
      %975 = vst [vmem:[#allocation2 + $0x58] sm:$0xf] 0.0
      %976 = vst [vmem:[#allocation2 + $0x60] sm:$0xff] 0.0
      %977 = vst [vmem:[#allocation2 + $0x68] sm:$0xf] 0.0
      %978 = vst [vmem:[#allocation2 + $0x70] sm:$0xff] 0.0
      %979 = vst [vmem:[#allocation2 + $0x78] sm:$0xf] 0.0
      %980 = vst [vmem:[#allocation2 + $0x80] sm:$0xff] 0.0
      %981 = vst [vmem:[#allocation2 + $0x88] sm:$0xf] 0.0
      %982 = vst [vmem:[#allocation2 + $0x90] sm:$0xff] 0.0
      %983 = vst [vmem:[#allocation2 + $0x98] sm:$0xf] 0.0
      %984 = vst [vmem:[#allocation2 + $0xa0] sm:$0xff] 0.0
      %985 = vst [vmem:[#allocation2 + $0xa8] sm:$0xf] 0.0
      %986 = vst [vmem:[#allocation2 + $0xb0] sm:$0xff] 0.0
      %987 = vst [vmem:[#allocation2 + $0xb8] sm:$0xf] 0.0
      %s988 = scalar_lea.vmem [#allocation2], 32
      %989 = vst [vmem:[%s988 + $0x2] sm:$0xff] %v171
      %990 = vst [vmem:[%s988 + $0x12] sm:$0xff] %v172
      %991 = vst [vmem:[%s988 + $0x22] sm:$0xff] %v173
      %992 = vst [vmem:[%s988 + $0x32] sm:$0xff] %v174
      %993 = vst [vmem:[%s988 + $0x42] sm:$0xff] %v175
      %994 = vst [vmem:[%s988 + $0x52] sm:$0xff] %v176
      %995 = vst [vmem:[%s988 + $0x62] sm:$0xff] %v177
      %996 = vst [vmem:[%s988 + $0x72] sm:$0xff] %v178
      %v997 = vld [vmem:[#allocation2 + $0x2] sm:$0xff]
      %v998 = vld [vmem:[#allocation2 + $0x12] sm:$0xff]
      %v999 = vld [vmem:[#allocation2 + $0x22] sm:$0xff]
      %v1000 = vld [vmem:[#allocation2 + $0x32] sm:$0xff]
      %v1001 = vld [vmem:[#allocation2 + $0x42] sm:$0xff]
      %v1002 = vld [vmem:[#allocation2 + $0x52] sm:$0xff]
      %v1003 = vld [vmem:[#allocation2 + $0x62] sm:$0xff]
      %v1004 = vld [vmem:[#allocation2 + $0x72] sm:$0xff]
      %v1005 = vld [vmem:[%s2 + $0xd] sm:$0x1]
      %v1006 = vlaneseq
      %v1007 = vshrl.u32 %v1006, 7
      %v1008 = vsub.s32 0, %v1007
      %v1009 = vrot.slane %v1005, %v1008
      %v1010 = vmul.f32 %v997, %v1009
      %v1011 = vmul.f32 %v998, %v1009
      %v1012 = vmul.f32 %v999, %v1009
      %v1013 = vmul.f32 %v1000, %v1009
      %v1014 = vmul.f32 %v1001, %v1009
      %v1015 = vmul.f32 %v1002, %v1009
      %v1016 = vmul.f32 %v1003, %v1009
      %v1017 = vmul.f32 %v1004, %v1009
      %v1018 = vadd.f32 %v1010, 0.0
      %v1019 = vadd.f32 %v1011, 0.0
      %v1020 = vadd.f32 %v1012, 0.0
      %v1021 = vadd.f32 %v1013, 0.0
      %v1022 = vadd.f32 %v1014, 0.0
      %v1023 = vadd.f32 %v1015, 0.0
      %v1024 = vadd.f32 %v1016, 0.0
      %v1025 = vadd.f32 %v1017, 0.0
      %v1026 = vld [vmem:[%s988] sm:$0xff]
      %v1027 = vld [vmem:[%s988 + $0x10] sm:$0xff]
      %v1028 = vld [vmem:[%s988 + $0x20] sm:$0xff]
      %v1029 = vld [vmem:[%s988 + $0x30] sm:$0xff]
      %v1030 = vld [vmem:[%s988 + $0x40] sm:$0xff]
      %v1031 = vld [vmem:[%s988 + $0x50] sm:$0xff]
      %v1032 = vld [vmem:[%s988 + $0x60] sm:$0xff]
      %v1033 = vld [vmem:[%s988 + $0x70] sm:$0xff]
      %v1034 = vld [vmem:[%s2 + $0x12] sm:$0x1]
      %v1035 = vlaneseq
      %v1036 = vshrl.u32 %v1035, 7
      %v1037 = vsub.s32 0, %v1036
      %v1038 = vrot.slane %v1034, %v1037
      %v1039 = vmul.f32 %v1026, %v1038
      %v1040 = vmul.f32 %v1027, %v1038
      %v1041 = vmul.f32 %v1028, %v1038
      %v1042 = vmul.f32 %v1029, %v1038
      %v1043 = vmul.f32 %v1030, %v1038
      %v1044 = vmul.f32 %v1031, %v1038
      %v1045 = vmul.f32 %v1032, %v1038
      %v1046 = vmul.f32 %v1033, %v1038
      %v1047 = vadd.f32 %v1039, 0.0
      %v1048 = vadd.f32 %v1040, 0.0
      %v1049 = vadd.f32 %v1041, 0.0
      %v1050 = vadd.f32 %v1042, 0.0
      %v1051 = vadd.f32 %v1043, 0.0
      %v1052 = vadd.f32 %v1044, 0.0
      %v1053 = vadd.f32 %v1045, 0.0
      %v1054 = vadd.f32 %v1046, 0.0
      %s1055 = scalar_lea.vmem [#allocation2], 16
      %v1056 = vld [vmem:[%s1055 + $0x2] sm:$0xff]
      %v1057 = vld [vmem:[%s1055 + $0x12] sm:$0xff]
      %v1058 = vld [vmem:[%s1055 + $0x22] sm:$0xff]
      %v1059 = vld [vmem:[%s1055 + $0x32] sm:$0xff]
      %v1060 = vld [vmem:[%s1055 + $0x42] sm:$0xff]
      %v1061 = vld [vmem:[%s1055 + $0x52] sm:$0xff]
      %v1062 = vld [vmem:[%s1055 + $0x62] sm:$0xff]
      %v1063 = vld [vmem:[%s1055 + $0x72] sm:$0xff]
      %v1064 = vld [vmem:[%s2 + $0xe] sm:$0x1]
      %v1065 = vlaneseq
      %v1066 = vshrl.u32 %v1065, 7
      %v1067 = vsub.s32 0, %v1066
      %v1068 = vrot.slane %v1064, %v1067
      %v1069 = vmul.f32 %v1056, %v1068
      %v1070 = vmul.f32 %v1057, %v1068
      %v1071 = vmul.f32 %v1058, %v1068
      %v1072 = vmul.f32 %v1059, %v1068
      %v1073 = vmul.f32 %v1060, %v1068
      %v1074 = vmul.f32 %v1061, %v1068
      %v1075 = vmul.f32 %v1062, %v1068
      %v1076 = vmul.f32 %v1063, %v1068
      %v1077 = vadd.f32 %v1018, %v1069
      %v1078 = vadd.f32 %v1019, %v1070
      %v1079 = vadd.f32 %v1020, %v1071
      %v1080 = vadd.f32 %v1021, %v1072
      %v1081 = vadd.f32 %v1022, %v1073
      %v1082 = vadd.f32 %v1023, %v1074
      %v1083 = vadd.f32 %v1024, %v1075
      %v1084 = vadd.f32 %v1025, %v1076
      %v1085 = vld [vmem:[%s988 + $0x1] sm:$0xff]
      %v1086 = vld [vmem:[%s988 + $0x11] sm:$0xff]
      %v1087 = vld [vmem:[%s988 + $0x21] sm:$0xff]
      %v1088 = vld [vmem:[%s988 + $0x31] sm:$0xff]
      %v1089 = vld [vmem:[%s988 + $0x41] sm:$0xff]
      %v1090 = vld [vmem:[%s988 + $0x51] sm:$0xff]
      %v1091 = vld [vmem:[%s988 + $0x61] sm:$0xff]
      %v1092 = vld [vmem:[%s988 + $0x71] sm:$0xff]
      %v1093 = vld [vmem:[%s2 + $0x13] sm:$0x1]
      %v1094 = vlaneseq
      %v1095 = vshrl.u32 %v1094, 7
      %v1096 = vsub.s32 0, %v1095
      %v1097 = vrot.slane %v1093, %v1096
      %v1098 = vmul.f32 %v1085, %v1097
      %v1099 = vmul.f32 %v1086, %v1097
      %v1100 = vmul.f32 %v1087, %v1097
      %v1101 = vmul.f32 %v1088, %v1097
      %v1102 = vmul.f32 %v1089, %v1097
      %v1103 = vmul.f32 %v1090, %v1097
      %v1104 = vmul.f32 %v1091, %v1097
      %v1105 = vmul.f32 %v1092, %v1097
      %v1106 = vadd.f32 %v1047, %v1098
      %v1107 = vadd.f32 %v1048, %v1099
      %v1108 = vadd.f32 %v1049, %v1100
      %v1109 = vadd.f32 %v1050, %v1101
      %v1110 = vadd.f32 %v1051, %v1102
      %v1111 = vadd.f32 %v1052, %v1103
      %v1112 = vadd.f32 %v1053, %v1104
      %v1113 = vadd.f32 %v1054, %v1105
      %v1114 = vld [vmem:[%s988 + $0x2] sm:$0xff]
      %v1115 = vld [vmem:[%s988 + $0x12] sm:$0xff]
      %v1116 = vld [vmem:[%s988 + $0x22] sm:$0xff]
      %v1117 = vld [vmem:[%s988 + $0x32] sm:$0xff]
      %v1118 = vld [vmem:[%s988 + $0x42] sm:$0xff]
      %v1119 = vld [vmem:[%s988 + $0x52] sm:$0xff]
      %v1120 = vld [vmem:[%s988 + $0x62] sm:$0xff]
      %v1121 = vld [vmem:[%s988 + $0x72] sm:$0xff]
      %v1122 = vld [vmem:[%s2 + $0xf] sm:$0x1]
      %v1123 = vlaneseq
      %v1124 = vshrl.u32 %v1123, 7
      %v1125 = vsub.s32 0, %v1124
      %v1126 = vrot.slane %v1122, %v1125
      %v1127 = vmul.f32 %v1114, %v1126
      %v1128 = vmul.f32 %v1115, %v1126
      %v1129 = vmul.f32 %v1116, %v1126
      %v1130 = vmul.f32 %v1117, %v1126
      %v1131 = vmul.f32 %v1118, %v1126
      %v1132 = vmul.f32 %v1119, %v1126
      %v1133 = vmul.f32 %v1120, %v1126
      %v1134 = vmul.f32 %v1121, %v1126
      %v1135 = vadd.f32 %v1077, %v1127
      %v1136 = vadd.f32 %v1078, %v1128
      %v1137 = vadd.f32 %v1079, %v1129
      %v1138 = vadd.f32 %v1080, %v1130
      %v1139 = vadd.f32 %v1081, %v1131
      %v1140 = vadd.f32 %v1082, %v1132
      %v1141 = vadd.f32 %v1083, %v1133
      %v1142 = vadd.f32 %v1084, %v1134
      %v1143 = vld [vmem:[%s2 + $0x14] sm:$0x1]
      %v1144 = vlaneseq
      %v1145 = vshrl.u32 %v1144, 7
      %v1146 = vsub.s32 0, %v1145
      %v1147 = vrot.slane %v1143, %v1146
      %v1148 = vmul.f32 %v1114, %v1147
      %v1149 = vmul.f32 %v1115, %v1147
      %v1150 = vmul.f32 %v1116, %v1147
      %v1151 = vmul.f32 %v1117, %v1147
      %v1152 = vmul.f32 %v1118, %v1147
      %v1153 = vmul.f32 %v1119, %v1147
      %v1154 = vmul.f32 %v1120, %v1147
      %v1155 = vmul.f32 %v1121, %v1147
      %v1156 = vadd.f32 %v1106, %v1148
      %v1157 = vadd.f32 %v1107, %v1149
      %v1158 = vadd.f32 %v1108, %v1150
      %v1159 = vadd.f32 %v1109, %v1151
      %v1160 = vadd.f32 %v1110, %v1152
      %v1161 = vadd.f32 %v1111, %v1153
      %v1162 = vadd.f32 %v1112, %v1154
      %v1163 = vadd.f32 %v1113, %v1155
      %s1164 = scalar_lea.vmem [#allocation2], 48
      %v1165 = vld [vmem:[%s1164 + $0x2] sm:$0xff]
      %v1166 = vld [vmem:[%s1164 + $0x12] sm:$0xff]
      %v1167 = vld [vmem:[%s1164 + $0x22] sm:$0xff]
      %v1168 = vld [vmem:[%s1164 + $0x32] sm:$0xff]
      %v1169 = vld [vmem:[%s1164 + $0x42] sm:$0xff]
      %v1170 = vld [vmem:[%s1164 + $0x52] sm:$0xff]
      %v1171 = vld [vmem:[%s1164 + $0x62] sm:$0xff]
      %v1172 = vld [vmem:[%s1164 + $0x72] sm:$0xff]
      %v1173 = vld [vmem:[%s2 + $0x10] sm:$0x1]
      %v1174 = vlaneseq
      %v1175 = vshrl.u32 %v1174, 7
      %v1176 = vsub.s32 0, %v1175
      %v1177 = vrot.slane %v1173, %v1176
      %v1178 = vmul.f32 %v1165, %v1177
      %v1179 = vmul.f32 %v1166, %v1177
      %v1180 = vmul.f32 %v1167, %v1177
      %v1181 = vmul.f32 %v1168, %v1177
      %v1182 = vmul.f32 %v1169, %v1177
      %v1183 = vmul.f32 %v1170, %v1177
      %v1184 = vmul.f32 %v1171, %v1177
      %v1185 = vmul.f32 %v1172, %v1177
      %v1186 = vadd.f32 %v1135, %v1178
      %v1187 = vadd.f32 %v1136, %v1179
      %v1188 = vadd.f32 %v1137, %v1180
      %v1189 = vadd.f32 %v1138, %v1181
      %v1190 = vadd.f32 %v1139, %v1182
      %v1191 = vadd.f32 %v1140, %v1183
      %v1192 = vadd.f32 %v1141, %v1184
      %v1193 = vadd.f32 %v1142, %v1185
      %v1194 = vld [vmem:[%s988 + $0x3] sm:$0xff]
      %v1195 = vld [vmem:[%s988 + $0x13] sm:$0xff]
      %v1196 = vld [vmem:[%s988 + $0x23] sm:$0xff]
      %v1197 = vld [vmem:[%s988 + $0x33] sm:$0xff]
      %v1198 = vld [vmem:[%s988 + $0x43] sm:$0xff]
      %v1199 = vld [vmem:[%s988 + $0x53] sm:$0xff]
      %v1200 = vld [vmem:[%s988 + $0x63] sm:$0xff]
      %v1201 = vld [vmem:[%s988 + $0x73] sm:$0xff]
      %v1202 = vld [vmem:[%s2 + $0x15] sm:$0x1]
      %v1203 = vlaneseq
      %v1204 = vshrl.u32 %v1203, 7
      %v1205 = vsub.s32 0, %v1204
      %v1206 = vrot.slane %v1202, %v1205
      %v1207 = vmul.f32 %v1194, %v1206
      %v1208 = vmul.f32 %v1195, %v1206
      %v1209 = vmul.f32 %v1196, %v1206
      %v1210 = vmul.f32 %v1197, %v1206
      %v1211 = vmul.f32 %v1198, %v1206
      %v1212 = vmul.f32 %v1199, %v1206
      %v1213 = vmul.f32 %v1200, %v1206
      %v1214 = vmul.f32 %v1201, %v1206
      %v1215 = vadd.f32 %v1156, %v1207
      %v1216 = vadd.f32 %v1157, %v1208
      %v1217 = vadd.f32 %v1158, %v1209
      %v1218 = vadd.f32 %v1159, %v1210
      %v1219 = vadd.f32 %v1160, %v1211
      %v1220 = vadd.f32 %v1161, %v1212
      %v1221 = vadd.f32 %v1162, %v1213
      %v1222 = vadd.f32 %v1163, %v1214
      %s1223 = scalar_lea.vmem [#allocation2], 64
      %v1224 = vld [vmem:[%s1223 + $0x2] sm:$0xff]
      %v1225 = vld [vmem:[%s1223 + $0x12] sm:$0xff]
      %v1226 = vld [vmem:[%s1223 + $0x22] sm:$0xff]
      %v1227 = vld [vmem:[%s1223 + $0x32] sm:$0xff]
      %v1228 = vld [vmem:[%s1223 + $0x42] sm:$0xff]
      %v1229 = vld [vmem:[%s1223 + $0x52] sm:$0xff]
      %v1230 = vld [vmem:[%s1223 + $0x62] sm:$0xff]
      %v1231 = vld [vmem:[%s1223 + $0x72] sm:$0xff]
      %v1232 = vld [vmem:[%s2 + $0x11] sm:$0x1]
      %v1233 = vlaneseq
      %v1234 = vshrl.u32 %v1233, 7
      %v1235 = vsub.s32 0, %v1234
      %v1236 = vrot.slane %v1232, %v1235
      %v1237 = vmul.f32 %v1224, %v1236
      %v1238 = vmul.f32 %v1225, %v1236
      %v1239 = vmul.f32 %v1226, %v1236
      %v1240 = vmul.f32 %v1227, %v1236
      %v1241 = vmul.f32 %v1228, %v1236
      %v1242 = vmul.f32 %v1229, %v1236
      %v1243 = vmul.f32 %v1230, %v1236
      %v1244 = vmul.f32 %v1231, %v1236
      %v1245 = vadd.f32 %v1186, %v1237
      %v1246 = vadd.f32 %v1187, %v1238
      %v1247 = vadd.f32 %v1188, %v1239
      %v1248 = vadd.f32 %v1189, %v1240
      %v1249 = vadd.f32 %v1190, %v1241
      %v1250 = vadd.f32 %v1191, %v1242
      %v1251 = vadd.f32 %v1192, %v1243
      %v1252 = vadd.f32 %v1193, %v1244
      %v1253 = vld [vmem:[%s988 + $0x4] sm:$0xff]
      %v1254 = vld [vmem:[%s988 + $0x14] sm:$0xff]
      %v1255 = vld [vmem:[%s988 + $0x24] sm:$0xff]
      %v1256 = vld [vmem:[%s988 + $0x34] sm:$0xff]
      %v1257 = vld [vmem:[%s988 + $0x44] sm:$0xff]
      %v1258 = vld [vmem:[%s988 + $0x54] sm:$0xff]
      %v1259 = vld [vmem:[%s988 + $0x64] sm:$0xff]
      %v1260 = vld [vmem:[%s988 + $0x74] sm:$0xff]
      %v1261 = vld [vmem:[%s2 + $0x16] sm:$0x1]
      %v1262 = vlaneseq
      %v1263 = vshrl.u32 %v1262, 7
      %v1264 = vsub.s32 0, %v1263
      %v1265 = vrot.slane %v1261, %v1264
      %v1266 = vmul.f32 %v1253, %v1265
      %v1267 = vmul.f32 %v1254, %v1265
      %v1268 = vmul.f32 %v1255, %v1265
      %v1269 = vmul.f32 %v1256, %v1265
      %v1270 = vmul.f32 %v1257, %v1265
      %v1271 = vmul.f32 %v1258, %v1265
      %v1272 = vmul.f32 %v1259, %v1265
      %v1273 = vmul.f32 %v1260, %v1265
      %v1274 = vadd.f32 %v1215, %v1266
      %v1275 = vadd.f32 %v1216, %v1267
      %v1276 = vadd.f32 %v1217, %v1268
      %v1277 = vadd.f32 %v1218, %v1269
      %v1278 = vadd.f32 %v1219, %v1270
      %v1279 = vadd.f32 %v1220, %v1271
      %v1280 = vadd.f32 %v1221, %v1272
      %v1281 = vadd.f32 %v1222, %v1273
      %v1282 = vld [vmem:[%s2 + $0x4] sm:$0x1]
      %v1283 = vlaneseq
      %v1284 = vshrl.u32 %v1283, 7
      %v1285 = vsub.s32 0, %v1284
      %v1286 = vrot.slane %v1282, %v1285
      %v1287 = vadd.f32 %v1245, %v1286
      %v1288 = vadd.f32 %v1246, %v1286
      %v1289 = vadd.f32 %v1247, %v1286
      %v1290 = vadd.f32 %v1248, %v1286
      %v1291 = vadd.f32 %v1249, %v1286
      %v1292 = vadd.f32 %v1250, %v1286
      %v1293 = vadd.f32 %v1251, %v1286
      %v1294 = vadd.f32 %v1252, %v1286
      %v1295 = vmul.f32 %v1287, 0.5
      %v1296 = vmul.f32 %v1288, 0.5
      %v1297 = vmul.f32 %v1289, 0.5
      %v1298 = vmul.f32 %v1290, 0.5
      %v1299 = vmul.f32 %v1291, 0.5
      %v1300 = vmul.f32 %v1292, 0.5
      %v1301 = vmul.f32 %v1293, 0.5
      %v1302 = vmul.f32 %v1294, 0.5
      %v1303 = vmul.f32 %v1287, 0.70710677
      %v1304 = vmul.f32 %v1288, 0.70710677
      %v1305 = vmul.f32 %v1289, 0.70710677
      %v1306 = vmul.f32 %v1290, 0.70710677
      %v1307 = vmul.f32 %v1291, 0.70710677
      %v1308 = vmul.f32 %v1292, 0.70710677
      %v1309 = vmul.f32 %v1293, 0.70710677
      %v1310 = vmul.f32 %v1294, 0.70710677
      %vm1311 = vcmp.ge.f32.partialorder %v1303, 0.0
      %vm1312 = vcmp.ge.f32.partialorder %v1304, 0.0
      %vm1313 = vcmp.ge.f32.partialorder %v1305, 0.0
      %vm1314 = vcmp.ge.f32.partialorder %v1306, 0.0
      %vm1315 = vcmp.ge.f32.partialorder %v1307, 0.0
      %vm1316 = vcmp.ge.f32.partialorder %v1308, 0.0
      %vm1317 = vcmp.ge.f32.partialorder %v1309, 0.0
      %vm1318 = vcmp.ge.f32.partialorder %v1310, 0.0
      %v1319 = vsel %vm1311, 1.0, -1.0
      %v1320 = vsel %vm1312, 1.0, -1.0
      %v1321 = vsel %vm1313, 1.0, -1.0
      %v1322 = vsel %vm1314, 1.0, -1.0
      %v1323 = vsel %vm1315, 1.0, -1.0
      %v1324 = vsel %vm1316, 1.0, -1.0
      %v1325 = vsel %vm1317, 1.0, -1.0
      %v1326 = vsel %vm1318, 1.0, -1.0
      %v1327 = vand.u32 2147483647, %v1303
      %v1328 = vand.u32 2147483647, %v1304
      %v1329 = vand.u32 2147483647, %v1305
      %v1330 = vand.u32 2147483647, %v1306
      %v1331 = vand.u32 2147483647, %v1307
      %v1332 = vand.u32 2147483647, %v1308
      %v1333 = vand.u32 2147483647, %v1309
      %v1334 = vand.u32 2147483647, %v1310
      %v1335 = vmul.f32 %v1327, 0.3275911
      %v1336 = vmul.f32 %v1328, 0.3275911
      %v1337 = vmul.f32 %v1329, 0.3275911
      %v1338 = vmul.f32 %v1330, 0.3275911
      %v1339 = vmul.f32 %v1331, 0.3275911
      %v1340 = vmul.f32 %v1332, 0.3275911
      %v1341 = vmul.f32 %v1333, 0.3275911
      %v1342 = vmul.f32 %v1334, 0.3275911
      %v1343 = vadd.f32 %v1335, 1.0
      %v1344 = vadd.f32 %v1336, 1.0
      %v1345 = vadd.f32 %v1337, 1.0
      %v1346 = vadd.f32 %v1338, 1.0
      %v1347 = vadd.f32 %v1339, 1.0
      %v1348 = vadd.f32 %v1340, 1.0
      %v1349 = vadd.f32 %v1341, 1.0
      %v1350 = vadd.f32 %v1342, 1.0
      %v1351 = vrcp.pop %v1343
      %v1352 = vmul.f32 1.0, %v1351
      %v1353 = vrcp.pop %v1344
      %v1354 = vmul.f32 1.0, %v1353
      %v1355 = vrcp.pop %v1345
      %v1356 = vmul.f32 1.0, %v1355
      %v1357 = vrcp.pop %v1346
      %v1358 = vmul.f32 1.0, %v1357
      %v1359 = vrcp.pop %v1347
      %v1360 = vmul.f32 1.0, %v1359
      %v1361 = vrcp.pop %v1348
      %v1362 = vmul.f32 1.0, %v1361
      %v1363 = vrcp.pop %v1349
      %v1364 = vmul.f32 1.0, %v1363
      %v1365 = vrcp.pop %v1350
      %v1366 = vmul.f32 1.0, %v1365
      %v1367 = vmul.f32 %v1352, 1.0614054
      %v1368 = vmul.f32 %v1354, 1.0614054
      %v1369 = vmul.f32 %v1356, 1.0614054
      %v1370 = vmul.f32 %v1358, 1.0614054
      %v1371 = vmul.f32 %v1360, 1.0614054
      %v1372 = vmul.f32 %v1362, 1.0614054
      %v1373 = vmul.f32 %v1364, 1.0614054
      %v1374 = vmul.f32 %v1366, 1.0614054
      %v1375 = vadd.f32 %v1367, -1.4531521
      %v1376 = vadd.f32 %v1368, -1.4531521
      %v1377 = vadd.f32 %v1369, -1.4531521
      %v1378 = vadd.f32 %v1370, -1.4531521
      %v1379 = vadd.f32 %v1371, -1.4531521
      %v1380 = vadd.f32 %v1372, -1.4531521
      %v1381 = vadd.f32 %v1373, -1.4531521
      %v1382 = vadd.f32 %v1374, -1.4531521
      %v1383 = vmul.f32 %v1375, %v1352
      %v1384 = vmul.f32 %v1376, %v1354
      %v1385 = vmul.f32 %v1377, %v1356
      %v1386 = vmul.f32 %v1378, %v1358
      %v1387 = vmul.f32 %v1379, %v1360
      %v1388 = vmul.f32 %v1380, %v1362
      %v1389 = vmul.f32 %v1381, %v1364
      %v1390 = vmul.f32 %v1382, %v1366
      %v1391 = vadd.f32 %v1383, 1.4214138
      %v1392 = vadd.f32 %v1384, 1.4214138
      %v1393 = vadd.f32 %v1385, 1.4214138
      %v1394 = vadd.f32 %v1386, 1.4214138
      %v1395 = vadd.f32 %v1387, 1.4214138
      %v1396 = vadd.f32 %v1388, 1.4214138
      %v1397 = vadd.f32 %v1389, 1.4214138
      %v1398 = vadd.f32 %v1390, 1.4214138
      %v1399 = vmul.f32 %v1391, %v1352
      %v1400 = vmul.f32 %v1392, %v1354
      %v1401 = vmul.f32 %v1393, %v1356
      %v1402 = vmul.f32 %v1394, %v1358
      %v1403 = vmul.f32 %v1395, %v1360
      %v1404 = vmul.f32 %v1396, %v1362
      %v1405 = vmul.f32 %v1397, %v1364
      %v1406 = vmul.f32 %v1398, %v1366
      %v1407 = vadd.f32 %v1399, -0.28449672
      %v1408 = vadd.f32 %v1400, -0.28449672
      %v1409 = vadd.f32 %v1401, -0.28449672
      %v1410 = vadd.f32 %v1402, -0.28449672
      %v1411 = vadd.f32 %v1403, -0.28449672
      %v1412 = vadd.f32 %v1404, -0.28449672
      %v1413 = vadd.f32 %v1405, -0.28449672
      %v1414 = vadd.f32 %v1406, -0.28449672
      %v1415 = vmul.f32 %v1407, %v1352
      %v1416 = vmul.f32 %v1408, %v1354
      %v1417 = vmul.f32 %v1409, %v1356
      %v1418 = vmul.f32 %v1410, %v1358
      %v1419 = vmul.f32 %v1411, %v1360
      %v1420 = vmul.f32 %v1412, %v1362
      %v1421 = vmul.f32 %v1413, %v1364
      %v1422 = vmul.f32 %v1414, %v1366
      %v1423 = vadd.f32 %v1415, 0.2548296
      %v1424 = vadd.f32 %v1416, 0.2548296
      %v1425 = vadd.f32 %v1417, 0.2548296
      %v1426 = vadd.f32 %v1418, 0.2548296
      %v1427 = vadd.f32 %v1419, 0.2548296
      %v1428 = vadd.f32 %v1420, 0.2548296
      %v1429 = vadd.f32 %v1421, 0.2548296
      %v1430 = vadd.f32 %v1422, 0.2548296
      %v1431 = vmul.f32 %v1423, %v1352
      %v1432 = vmul.f32 %v1424, %v1354
      %v1433 = vmul.f32 %v1425, %v1356
      %v1434 = vmul.f32 %v1426, %v1358
      %v1435 = vmul.f32 %v1427, %v1360
      %v1436 = vmul.f32 %v1428, %v1362
      %v1437 = vmul.f32 %v1429, %v1364
      %v1438 = vmul.f32 %v1430, %v1366
      %v1439 = vsub.f32 0.0, %v1327
      %v1440 = vsub.f32 0.0, %v1328
      %v1441 = vsub.f32 0.0, %v1329
      %v1442 = vsub.f32 0.0, %v1330
      %v1443 = vsub.f32 0.0, %v1331
      %v1444 = vsub.f32 0.0, %v1332
      %v1445 = vsub.f32 0.0, %v1333
      %v1446 = vsub.f32 0.0, %v1334
      %v1447 = vmul.f32 %v1439, %v1327
      %v1448 = vmul.f32 %v1440, %v1328
      %v1449 = vmul.f32 %v1441, %v1329
      %v1450 = vmul.f32 %v1442, %v1330
      %v1451 = vmul.f32 %v1443, %v1331
      %v1452 = vmul.f32 %v1444, %v1332
      %v1453 = vmul.f32 %v1445, %v1333
      %v1454 = vmul.f32 %v1446, %v1334
      %v1455 = vmul.f32 %v1447, 1.442695
      %v1456 = vpow.pop %v1455
      %v1457 = vmul.f32 %v1448, 1.442695
      %v1458 = vpow.pop %v1457
      %v1459 = vmul.f32 %v1449, 1.442695
      %v1460 = vpow.pop %v1459
      %v1461 = vmul.f32 %v1450, 1.442695
      %v1462 = vpow.pop %v1461
      %v1463 = vmul.f32 %v1451, 1.442695
      %v1464 = vpow.pop %v1463
      %v1465 = vmul.f32 %v1452, 1.442695
      %v1466 = vpow.pop %v1465
      %v1467 = vmul.f32 %v1453, 1.442695
      %v1468 = vpow.pop %v1467
      %v1469 = vmul.f32 %v1454, 1.442695
      %v1470 = vpow.pop %v1469
      %v1471 = vmul.f32 %v1431, %v1456
      %v1472 = vmul.f32 %v1432, %v1458
      %v1473 = vmul.f32 %v1433, %v1460
      %v1474 = vmul.f32 %v1434, %v1462
      %v1475 = vmul.f32 %v1435, %v1464
      %v1476 = vmul.f32 %v1436, %v1466
      %v1477 = vmul.f32 %v1437, %v1468
      %v1478 = vmul.f32 %v1438, %v1470
      %v1479 = vsub.f32 1.0, %v1471
      %v1480 = vsub.f32 1.0, %v1472
      %v1481 = vsub.f32 1.0, %v1473
      %v1482 = vsub.f32 1.0, %v1474
      %v1483 = vsub.f32 1.0, %v1475
      %v1484 = vsub.f32 1.0, %v1476
      %v1485 = vsub.f32 1.0, %v1477
      %v1486 = vsub.f32 1.0, %v1478
      %v1487 = vmul.f32 %v1319, %v1479
      %v1488 = vmul.f32 %v1320, %v1480
      %v1489 = vmul.f32 %v1321, %v1481
      %v1490 = vmul.f32 %v1322, %v1482
      %v1491 = vmul.f32 %v1323, %v1483
      %v1492 = vmul.f32 %v1324, %v1484
      %v1493 = vmul.f32 %v1325, %v1485
      %v1494 = vmul.f32 %v1326, %v1486
      %v1495 = vadd.f32 %v1487, 1.0
      %v1496 = vadd.f32 %v1488, 1.0
      %v1497 = vadd.f32 %v1489, 1.0
      %v1498 = vadd.f32 %v1490, 1.0
      %v1499 = vadd.f32 %v1491, 1.0
      %v1500 = vadd.f32 %v1492, 1.0
      %v1501 = vadd.f32 %v1493, 1.0
      %v1502 = vadd.f32 %v1494, 1.0
      %v1503 = vmul.f32 %v1295, %v1495
      %v1504 = vmul.f32 %v1296, %v1496
      %v1505 = vmul.f32 %v1297, %v1497
      %v1506 = vmul.f32 %v1298, %v1498
      %v1507 = vmul.f32 %v1299, %v1499
      %v1508 = vmul.f32 %v1300, %v1500
      %v1509 = vmul.f32 %v1301, %v1501
      %v1510 = vmul.f32 %v1302, %v1502
      %v1511 = vld [vmem:[%s2 + $0x5] sm:$0x1]
      %v1512 = vlaneseq
      %v1513 = vshrl.u32 %v1512, 7
      %v1514 = vsub.s32 0, %v1513
      %v1515 = vrot.slane %v1511, %v1514
      %v1516 = vadd.f32 %v1274, %v1515
      %v1517 = vadd.f32 %v1275, %v1515
      %v1518 = vadd.f32 %v1276, %v1515
      %v1519 = vadd.f32 %v1277, %v1515
      %v1520 = vadd.f32 %v1278, %v1515
      %v1521 = vadd.f32 %v1279, %v1515
      %v1522 = vadd.f32 %v1280, %v1515
      %v1523 = vadd.f32 %v1281, %v1515
      %v1524 = vmul.f32 %v1516, 0.5
      %v1525 = vmul.f32 %v1517, 0.5
      %v1526 = vmul.f32 %v1518, 0.5
      %v1527 = vmul.f32 %v1519, 0.5
      %v1528 = vmul.f32 %v1520, 0.5
      %v1529 = vmul.f32 %v1521, 0.5
      %v1530 = vmul.f32 %v1522, 0.5
      %v1531 = vmul.f32 %v1523, 0.5
      %v1532 = vmul.f32 %v1516, 0.70710677
      %v1533 = vmul.f32 %v1517, 0.70710677
      %v1534 = vmul.f32 %v1518, 0.70710677
      %v1535 = vmul.f32 %v1519, 0.70710677
      %v1536 = vmul.f32 %v1520, 0.70710677
      %v1537 = vmul.f32 %v1521, 0.70710677
      %v1538 = vmul.f32 %v1522, 0.70710677
      %v1539 = vmul.f32 %v1523, 0.70710677
      %vm1540 = vcmp.ge.f32.partialorder %v1532, 0.0
      %vm1541 = vcmp.ge.f32.partialorder %v1533, 0.0
      %vm1542 = vcmp.ge.f32.partialorder %v1534, 0.0
      %vm1543 = vcmp.ge.f32.partialorder %v1535, 0.0
      %vm1544 = vcmp.ge.f32.partialorder %v1536, 0.0
      %vm1545 = vcmp.ge.f32.partialorder %v1537, 0.0
      %vm1546 = vcmp.ge.f32.partialorder %v1538, 0.0
      %vm1547 = vcmp.ge.f32.partialorder %v1539, 0.0
      %v1548 = vsel %vm1540, 1.0, -1.0
      %v1549 = vsel %vm1541, 1.0, -1.0
      %v1550 = vsel %vm1542, 1.0, -1.0
      %v1551 = vsel %vm1543, 1.0, -1.0
      %v1552 = vsel %vm1544, 1.0, -1.0
      %v1553 = vsel %vm1545, 1.0, -1.0
      %v1554 = vsel %vm1546, 1.0, -1.0
      %v1555 = vsel %vm1547, 1.0, -1.0
      %v1556 = vand.u32 2147483647, %v1532
      %v1557 = vand.u32 2147483647, %v1533
      %v1558 = vand.u32 2147483647, %v1534
      %v1559 = vand.u32 2147483647, %v1535
      %v1560 = vand.u32 2147483647, %v1536
      %v1561 = vand.u32 2147483647, %v1537
      %v1562 = vand.u32 2147483647, %v1538
      %v1563 = vand.u32 2147483647, %v1539
      %v1564 = vmul.f32 %v1556, 0.3275911
      %v1565 = vmul.f32 %v1557, 0.3275911
      %v1566 = vmul.f32 %v1558, 0.3275911
      %v1567 = vmul.f32 %v1559, 0.3275911
      %v1568 = vmul.f32 %v1560, 0.3275911
      %v1569 = vmul.f32 %v1561, 0.3275911
      %v1570 = vmul.f32 %v1562, 0.3275911
      %v1571 = vmul.f32 %v1563, 0.3275911
      %v1572 = vadd.f32 %v1564, 1.0
      %v1573 = vadd.f32 %v1565, 1.0
      %v1574 = vadd.f32 %v1566, 1.0
      %v1575 = vadd.f32 %v1567, 1.0
      %v1576 = vadd.f32 %v1568, 1.0
      %v1577 = vadd.f32 %v1569, 1.0
      %v1578 = vadd.f32 %v1570, 1.0
      %v1579 = vadd.f32 %v1571, 1.0
      %v1580 = vrcp.pop %v1572
      %v1581 = vmul.f32 1.0, %v1580
      %v1582 = vrcp.pop %v1573
      %v1583 = vmul.f32 1.0, %v1582
      %v1584 = vrcp.pop %v1574
      %v1585 = vmul.f32 1.0, %v1584
      %v1586 = vrcp.pop %v1575
      %v1587 = vmul.f32 1.0, %v1586
      %v1588 = vrcp.pop %v1576
      %v1589 = vmul.f32 1.0, %v1588
      %v1590 = vrcp.pop %v1577
      %v1591 = vmul.f32 1.0, %v1590
      %v1592 = vrcp.pop %v1578
      %v1593 = vmul.f32 1.0, %v1592
      %v1594 = vrcp.pop %v1579
      %v1595 = vmul.f32 1.0, %v1594
      %v1596 = vmul.f32 %v1581, 1.0614054
      %v1597 = vmul.f32 %v1583, 1.0614054
      %v1598 = vmul.f32 %v1585, 1.0614054
      %v1599 = vmul.f32 %v1587, 1.0614054
      %v1600 = vmul.f32 %v1589, 1.0614054
      %v1601 = vmul.f32 %v1591, 1.0614054
      %v1602 = vmul.f32 %v1593, 1.0614054
      %v1603 = vmul.f32 %v1595, 1.0614054
      %v1604 = vadd.f32 %v1596, -1.4531521
      %v1605 = vadd.f32 %v1597, -1.4531521
      %v1606 = vadd.f32 %v1598, -1.4531521
      %v1607 = vadd.f32 %v1599, -1.4531521
      %v1608 = vadd.f32 %v1600, -1.4531521
      %v1609 = vadd.f32 %v1601, -1.4531521
      %v1610 = vadd.f32 %v1602, -1.4531521
      %v1611 = vadd.f32 %v1603, -1.4531521
      %v1612 = vmul.f32 %v1604, %v1581
      %v1613 = vmul.f32 %v1605, %v1583
      %v1614 = vmul.f32 %v1606, %v1585
      %v1615 = vmul.f32 %v1607, %v1587
      %v1616 = vmul.f32 %v1608, %v1589
      %v1617 = vmul.f32 %v1609, %v1591
      %v1618 = vmul.f32 %v1610, %v1593
      %v1619 = vmul.f32 %v1611, %v1595
      %v1620 = vadd.f32 %v1612, 1.4214138
      %v1621 = vadd.f32 %v1613, 1.4214138
      %v1622 = vadd.f32 %v1614, 1.4214138
      %v1623 = vadd.f32 %v1615, 1.4214138
      %v1624 = vadd.f32 %v1616, 1.4214138
      %v1625 = vadd.f32 %v1617, 1.4214138
      %v1626 = vadd.f32 %v1618, 1.4214138
      %v1627 = vadd.f32 %v1619, 1.4214138
      %v1628 = vmul.f32 %v1620, %v1581
      %v1629 = vmul.f32 %v1621, %v1583
      %v1630 = vmul.f32 %v1622, %v1585
      %v1631 = vmul.f32 %v1623, %v1587
      %v1632 = vmul.f32 %v1624, %v1589
      %v1633 = vmul.f32 %v1625, %v1591
      %v1634 = vmul.f32 %v1626, %v1593
      %v1635 = vmul.f32 %v1627, %v1595
      %v1636 = vadd.f32 %v1628, -0.28449672
      %v1637 = vadd.f32 %v1629, -0.28449672
      %v1638 = vadd.f32 %v1630, -0.28449672
      %v1639 = vadd.f32 %v1631, -0.28449672
      %v1640 = vadd.f32 %v1632, -0.28449672
      %v1641 = vadd.f32 %v1633, -0.28449672
      %v1642 = vadd.f32 %v1634, -0.28449672
      %v1643 = vadd.f32 %v1635, -0.28449672
      %v1644 = vmul.f32 %v1636, %v1581
      %v1645 = vmul.f32 %v1637, %v1583
      %v1646 = vmul.f32 %v1638, %v1585
      %v1647 = vmul.f32 %v1639, %v1587
      %v1648 = vmul.f32 %v1640, %v1589
      %v1649 = vmul.f32 %v1641, %v1591
      %v1650 = vmul.f32 %v1642, %v1593
      %v1651 = vmul.f32 %v1643, %v1595
      %v1652 = vadd.f32 %v1644, 0.2548296
      %v1653 = vadd.f32 %v1645, 0.2548296
      %v1654 = vadd.f32 %v1646, 0.2548296
      %v1655 = vadd.f32 %v1647, 0.2548296
      %v1656 = vadd.f32 %v1648, 0.2548296
      %v1657 = vadd.f32 %v1649, 0.2548296
      %v1658 = vadd.f32 %v1650, 0.2548296
      %v1659 = vadd.f32 %v1651, 0.2548296
      %v1660 = vmul.f32 %v1652, %v1581
      %v1661 = vmul.f32 %v1653, %v1583
      %v1662 = vmul.f32 %v1654, %v1585
      %v1663 = vmul.f32 %v1655, %v1587
      %v1664 = vmul.f32 %v1656, %v1589
      %v1665 = vmul.f32 %v1657, %v1591
      %v1666 = vmul.f32 %v1658, %v1593
      %v1667 = vmul.f32 %v1659, %v1595
      %v1668 = vsub.f32 0.0, %v1556
      %v1669 = vsub.f32 0.0, %v1557
      %v1670 = vsub.f32 0.0, %v1558
      %v1671 = vsub.f32 0.0, %v1559
      %v1672 = vsub.f32 0.0, %v1560
      %v1673 = vsub.f32 0.0, %v1561
      %v1674 = vsub.f32 0.0, %v1562
      %v1675 = vsub.f32 0.0, %v1563
      %v1676 = vmul.f32 %v1668, %v1556
      %v1677 = vmul.f32 %v1669, %v1557
      %v1678 = vmul.f32 %v1670, %v1558
      %v1679 = vmul.f32 %v1671, %v1559
      %v1680 = vmul.f32 %v1672, %v1560
      %v1681 = vmul.f32 %v1673, %v1561
      %v1682 = vmul.f32 %v1674, %v1562
      %v1683 = vmul.f32 %v1675, %v1563
      %v1684 = vmul.f32 %v1676, 1.442695
      %v1685 = vpow.pop %v1684
      %v1686 = vmul.f32 %v1677, 1.442695
      %v1687 = vpow.pop %v1686
      %v1688 = vmul.f32 %v1678, 1.442695
      %v1689 = vpow.pop %v1688
      %v1690 = vmul.f32 %v1679, 1.442695
      %v1691 = vpow.pop %v1690
      %v1692 = vmul.f32 %v1680, 1.442695
      %v1693 = vpow.pop %v1692
      %v1694 = vmul.f32 %v1681, 1.442695
      %v1695 = vpow.pop %v1694
      %v1696 = vmul.f32 %v1682, 1.442695
      %v1697 = vpow.pop %v1696
      %v1698 = vmul.f32 %v1683, 1.442695
      %v1699 = vpow.pop %v1698
      %v1700 = vmul.f32 %v1660, %v1685
      %v1701 = vmul.f32 %v1661, %v1687
      %v1702 = vmul.f32 %v1662, %v1689
      %v1703 = vmul.f32 %v1663, %v1691
      %v1704 = vmul.f32 %v1664, %v1693
      %v1705 = vmul.f32 %v1665, %v1695
      %v1706 = vmul.f32 %v1666, %v1697
      %v1707 = vmul.f32 %v1667, %v1699
      %v1708 = vsub.f32 1.0, %v1700
      %v1709 = vsub.f32 1.0, %v1701
      %v1710 = vsub.f32 1.0, %v1702
      %v1711 = vsub.f32 1.0, %v1703
      %v1712 = vsub.f32 1.0, %v1704
      %v1713 = vsub.f32 1.0, %v1705
      %v1714 = vsub.f32 1.0, %v1706
      %v1715 = vsub.f32 1.0, %v1707
      %v1716 = vmul.f32 %v1548, %v1708
      %v1717 = vmul.f32 %v1549, %v1709
      %v1718 = vmul.f32 %v1550, %v1710
      %v1719 = vmul.f32 %v1551, %v1711
      %v1720 = vmul.f32 %v1552, %v1712
      %v1721 = vmul.f32 %v1553, %v1713
      %v1722 = vmul.f32 %v1554, %v1714
      %v1723 = vmul.f32 %v1555, %v1715
      %v1724 = vadd.f32 %v1716, 1.0
      %v1725 = vadd.f32 %v1717, 1.0
      %v1726 = vadd.f32 %v1718, 1.0
      %v1727 = vadd.f32 %v1719, 1.0
      %v1728 = vadd.f32 %v1720, 1.0
      %v1729 = vadd.f32 %v1721, 1.0
      %v1730 = vadd.f32 %v1722, 1.0
      %v1731 = vadd.f32 %v1723, 1.0
      %v1732 = vmul.f32 %v1524, %v1724
      %v1733 = vmul.f32 %v1525, %v1725
      %v1734 = vmul.f32 %v1526, %v1726
      %v1735 = vmul.f32 %v1527, %v1727
      %v1736 = vmul.f32 %v1528, %v1728
      %v1737 = vmul.f32 %v1529, %v1729
      %v1738 = vmul.f32 %v1530, %v1730
      %v1739 = vmul.f32 %v1531, %v1731
      %v1740 = vld [vmem:[%s1 + $0x20] sm:$0xff]
      %v1741 = vld [vmem:[%s1 + $0x68] sm:$0xff]
      %v1742 = vld [vmem:[%s1 + $0xb0] sm:$0xff]
      %v1743 = vld [vmem:[%s1 + $0xf8] sm:$0xff]
      %v1744 = vld [vmem:[%s1 + $0x140] sm:$0xff]
      %v1745 = vld [vmem:[%s1 + $0x188] sm:$0xff]
      %v1746 = vld [vmem:[%s1 + $0x1d0] sm:$0xff]
      %v1747 = vld [vmem:[%s1 + $0x218] sm:$0xff]
      %v1748 = vld [vmem:[%s1 + $0x260] sm:$0xff]
      %v1749 = vld [vmem:[%s1 + $0x2a8] sm:$0xff]
      %v1750 = vld [vmem:[%s1 + $0x2f0] sm:$0xff]
      %v1751 = vld [vmem:[%s1 + $0x338] sm:$0xff]
      %v1752 = vld [vmem:[%s1 + $0x380] sm:$0xff]
      %v1753 = vld [vmem:[%s1 + $0x3c8] sm:$0xff]
      %v1754 = vld [vmem:[%s1 + $0x410] sm:$0xff]
      %v1755 = vld [vmem:[%s1 + $0x458] sm:$0xff]
      %v1756 = vld [vmem:[%s1 + $0x28] sm:$0xff]
      %v1757 = vld [vmem:[%s1 + $0x70] sm:$0xff]
      %v1758 = vld [vmem:[%s1 + $0xb8] sm:$0xff]
      %v1759 = vld [vmem:[%s1 + $0x100] sm:$0xff]
      %v1760 = vld [vmem:[%s1 + $0x148] sm:$0xff]
      %v1761 = vld [vmem:[%s1 + $0x190] sm:$0xff]
      %v1762 = vld [vmem:[%s1 + $0x1d8] sm:$0xff]
      %v1763 = vld [vmem:[%s1 + $0x220] sm:$0xff]
      %v1764 = vld [vmem:[%s1 + $0x268] sm:$0xff]
      %v1765 = vld [vmem:[%s1 + $0x2b0] sm:$0xff]
      %v1766 = vld [vmem:[%s1 + $0x2f8] sm:$0xff]
      %v1767 = vld [vmem:[%s1 + $0x340] sm:$0xff]
      %v1768 = vld [vmem:[%s1 + $0x388] sm:$0xff]
      %v1769 = vld [vmem:[%s1 + $0x3d0] sm:$0xff]
      %v1770 = vld [vmem:[%s1 + $0x418] sm:$0xff]
      %v1771 = vld [vmem:[%s1 + $0x460] sm:$0xff]
      %1772 = vmatprep.subr.mxu0 0.0
      %1773 = vmatpush1.msra.mxu0 %v1756
      %1774 = vmatprep.subr.mxu0 0.0
      %1775 = vmatpush1.msra.mxu0 %v1757
      %1776 = vmatprep.subr.mxu0 0.0
      %1777 = vmatpush1.msra.mxu0 %v1758
      %1778 = vmatprep.subr.mxu0 0.0
      %1779 = vmatpush1.msra.mxu0 %v1759
      %1780 = vmatprep.subr.mxu0 0.0
      %1781 = vmatpush1.msra.mxu0 %v1760
      %1782 = vmatprep.subr.mxu0 0.0
      %1783 = vmatpush1.msra.mxu0 %v1761
      %1784 = vmatprep.subr.mxu0 0.0
      %1785 = vmatpush1.msra.mxu0 %v1762
      %1786 = vmatprep.subr.mxu0 0.0
      %1787 = vmatpush1.msra.mxu0 %v1763
      %1788 = vmatprep.subr.mxu0 0.0
      %1789 = vmatpush1.msra.mxu0 %v1764
      %1790 = vmatprep.subr.mxu0 0.0
      %1791 = vmatpush1.msra.mxu0 %v1765
      %1792 = vmatprep.subr.mxu0 0.0
      %1793 = vmatpush1.msra.mxu0 %v1766
      %1794 = vmatprep.subr.mxu0 0.0
      %1795 = vmatpush1.msra.mxu0 %v1767
      %1796 = vmatprep.subr.mxu0 0.0
      %1797 = vmatpush1.msra.mxu0 %v1768
      %1798 = vmatprep.subr.mxu0 0.0
      %1799 = vmatpush1.msra.mxu0 %v1769
      %1800 = vmatprep.subr.mxu0 0.0
      %1801 = vmatpush1.msra.mxu0 %v1770
      %1802 = vmatprep.subr.mxu0 0.0
      %1803 = vmatpush1.msra.mxu0 %v1771
      %1804 = vmatprep.subr.mxu0 0.0
      %1805 = vmatpush1.msra.mxu0 0.0
      %1806 = vmatprep.subr.mxu0 0.0
      %1807 = vmatpush1.msra.mxu0 0.0
      %1808 = vmatprep.subr.mxu0 0.0
      %1809 = vmatpush1.msra.mxu0 0.0
      %1810 = vmatprep.subr.mxu0 0.0
      %1811 = vmatpush1.msra.mxu0 0.0
      %1812 = vmatprep.subr.mxu0 0.0
      %1813 = vmatpush1.msra.mxu0 0.0
      %1814 = vmatprep.subr.mxu0 0.0
      %1815 = vmatpush1.msra.mxu0 0.0
      %1816 = vmatprep.subr.mxu0 0.0
      %1817 = vmatpush1.msra.mxu0 0.0
      %1818 = vmatprep.subr.mxu0 0.0
      %1819 = vmatpush1.msra.mxu0 0.0
      %1820 = vmatprep.subr.mxu0 0.0
      %1821 = vmatpush1.msra.mxu0 0.0
      %1822 = vmatprep.subr.mxu0 0.0
      %1823 = vmatpush1.msra.mxu0 0.0
      %1824 = vmatprep.subr.mxu0 0.0
      %1825 = vmatpush1.msra.mxu0 0.0
      %1826 = vmatprep.subr.mxu0 0.0
      %1827 = vmatpush1.msra.mxu0 0.0
      %1828 = vmatprep.subr.mxu0 0.0
      %1829 = vmatpush1.msra.mxu0 0.0
      %1830 = vmatprep.subr.mxu0 0.0
      %1831 = vmatpush1.msra.mxu0 0.0
      %1832 = vmatprep.subr.mxu0 0.0
      %1833 = vmatpush1.msra.mxu0 0.0
      %1834 = vmatprep.subr.mxu0 0.0
      %1835 = vmatpush1.msra.mxu0 0.0
      %1836 = vmatprep.mubr.f32.mxu0 0.0
      %1837 = vmatmul.mubr.f32.gmra.mrb[0].mxu0 %v1732
      %v1838 = vpop.f32.mrb[0].mxu0
      %v1839 = vadd.f32 0.0, %v1838
      %v1840 = vpop.f32.mrb[0].mxu0
      %1841 = vmatprep.mubr.f32.mxu0 0.0
      %1842 = vmatmul.mubr.f32.gmra.mrb[0].mxu0 %v1733
      %v1843 = vpop.f32.mrb[0].mxu0
      %v1844 = vadd.f32 0.0, %v1843
      %v1845 = vpop.f32.mrb[0].mxu0
      %1846 = vmatprep.mubr.f32.mxu0 0.0
      %1847 = vmatmul.mubr.f32.gmra.mrb[0].mxu0 %v1734
      %v1848 = vpop.f32.mrb[0].mxu0
      %v1849 = vadd.f32 0.0, %v1848
      %v1850 = vpop.f32.mrb[0].mxu0
      %1851 = vmatprep.mubr.f32.mxu0 0.0
      %1852 = vmatmul.mubr.f32.gmra.mrb[0].mxu0 %v1735
      %v1853 = vpop.f32.mrb[0].mxu0
      %v1854 = vadd.f32 0.0, %v1853
      %v1855 = vpop.f32.mrb[0].mxu0
      %1856 = vmatprep.mubr.f32.mxu0 0.0
      %1857 = vmatmul.mubr.f32.gmra.mrb[0].mxu0 %v1736
      %v1858 = vpop.f32.mrb[0].mxu0
      %v1859 = vadd.f32 0.0, %v1858
      %v1860 = vpop.f32.mrb[0].mxu0
      %1861 = vmatprep.mubr.f32.mxu0 0.0
      %1862 = vmatmul.mubr.f32.gmra.mrb[0].mxu0 %v1737
      %v1863 = vpop.f32.mrb[0].mxu0
      %v1864 = vadd.f32 0.0, %v1863
      %v1865 = vpop.f32.mrb[0].mxu0
      %1866 = vmatprep.mubr.f32.mxu0 0.0
      %1867 = vmatmul.mubr.f32.gmra.mrb[0].mxu0 %v1738
      %v1868 = vpop.f32.mrb[0].mxu0
      %v1869 = vadd.f32 0.0, %v1868
      %v1870 = vpop.f32.mrb[0].mxu0
      %1871 = vmatprep.mubr.f32.mxu0 0.0
      %1872 = vmatmul.mubr.f32.gmra.mrb[0].mxu0 %v1739
      %v1873 = vpop.f32.mrb[0].mxu0
      %v1874 = vadd.f32 0.0, %v1873
      %v1875 = vpop.f32.mrb[0].mxu0
      %1876 = vdwg.mxu0
      %1877 = vmatprep.subr.mxu0 0.0
      %1878 = vmatpush1.msra.mxu0 %v1740
      %1879 = vmatprep.subr.mxu0 0.0
      %1880 = vmatpush1.msra.mxu0 %v1741
      %1881 = vmatprep.subr.mxu0 0.0
      %1882 = vmatpush1.msra.mxu0 %v1742
      %1883 = vmatprep.subr.mxu0 0.0
      %1884 = vmatpush1.msra.mxu0 %v1743
      %1885 = vmatprep.subr.mxu0 0.0
      %1886 = vmatpush1.msra.mxu0 %v1744
      %1887 = vmatprep.subr.mxu0 0.0
      %1888 = vmatpush1.msra.mxu0 %v1745
      %1889 = vmatprep.subr.mxu0 0.0
      %1890 = vmatpush1.msra.mxu0 %v1746
      %1891 = vmatprep.subr.mxu0 0.0
      %1892 = vmatpush1.msra.mxu0 %v1747
      %1893 = vmatprep.subr.mxu0 0.0
      %1894 = vmatpush1.msra.mxu0 %v1748
      %1895 = vmatprep.subr.mxu0 0.0
      %1896 = vmatpush1.msra.mxu0 %v1749
      %1897 = vmatprep.subr.mxu0 0.0
      %1898 = vmatpush1.msra.mxu0 %v1750
      %1899 = vmatprep.subr.mxu0 0.0
      %1900 = vmatpush1.msra.mxu0 %v1751
      %1901 = vmatprep.subr.mxu0 0.0
      %1902 = vmatpush1.msra.mxu0 %v1752
      %1903 = vmatprep.subr.mxu0 0.0
      %1904 = vmatpush1.msra.mxu0 %v1753
      %1905 = vmatprep.subr.mxu0 0.0
      %1906 = vmatpush1.msra.mxu0 %v1754
      %1907 = vmatprep.subr.mxu0 0.0
      %1908 = vmatpush1.msra.mxu0 %v1755
      %1909 = vmatprep.subr.mxu0 0.0
      %1910 = vmatpush1.msra.mxu0 0.0
      %1911 = vmatprep.subr.mxu0 0.0
      %1912 = vmatpush1.msra.mxu0 0.0
      %1913 = vmatprep.subr.mxu0 0.0
      %1914 = vmatpush1.msra.mxu0 0.0
      %1915 = vmatprep.subr.mxu0 0.0
      %1916 = vmatpush1.msra.mxu0 0.0
      %1917 = vmatprep.subr.mxu0 0.0
      %1918 = vmatpush1.msra.mxu0 0.0
      %1919 = vmatprep.subr.mxu0 0.0
      %1920 = vmatpush1.msra.mxu0 0.0
      %1921 = vmatprep.subr.mxu0 0.0
      %1922 = vmatpush1.msra.mxu0 0.0
      %1923 = vmatprep.subr.mxu0 0.0
      %1924 = vmatpush1.msra.mxu0 0.0
      %1925 = vmatprep.subr.mxu0 0.0
      %1926 = vmatpush1.msra.mxu0 0.0
      %1927 = vmatprep.subr.mxu0 0.0
      %1928 = vmatpush1.msra.mxu0 0.0
      %1929 = vmatprep.subr.mxu0 0.0
      %1930 = vmatpush1.msra.mxu0 0.0
      %1931 = vmatprep.subr.mxu0 0.0
      %1932 = vmatpush1.msra.mxu0 0.0
      %1933 = vmatprep.subr.mxu0 0.0
      %1934 = vmatpush1.msra.mxu0 0.0
      %1935 = vmatprep.subr.mxu0 0.0
      %1936 = vmatpush1.msra.mxu0 0.0
      %1937 = vmatprep.subr.mxu0 0.0
      %1938 = vmatpush1.msra.mxu0 0.0
      %1939 = vmatprep.subr.mxu0 0.0
      %1940 = vmatpush1.msra.mxu0 0.0
      %1941 = vmatprep.mubr.f32.mxu0 0.0
      %1942 = vmatmul.mubr.f32.gmra.mrb[0].mxu0 %v1503
      %v1943 = vpop.f32.mrb[0].mxu0
      %v1944 = vadd.f32 %v1839, %v1943
      %v1945 = vpop.f32.mrb[0].mxu0
      %1946 = vmatprep.mubr.f32.mxu0 0.0
      %1947 = vmatmul.mubr.f32.gmra.mrb[0].mxu0 %v1504
      %v1948 = vpop.f32.mrb[0].mxu0
      %v1949 = vadd.f32 %v1844, %v1948
      %v1950 = vpop.f32.mrb[0].mxu0
      %1951 = vmatprep.mubr.f32.mxu0 0.0
      %1952 = vmatmul.mubr.f32.gmra.mrb[0].mxu0 %v1505
      %v1953 = vpop.f32.mrb[0].mxu0
      %v1954 = vadd.f32 %v1849, %v1953
      %v1955 = vpop.f32.mrb[0].mxu0
      %1956 = vmatprep.mubr.f32.mxu0 0.0
      %1957 = vmatmul.mubr.f32.gmra.mrb[0].mxu0 %v1506
      %v1958 = vpop.f32.mrb[0].mxu0
      %v1959 = vadd.f32 %v1854, %v1958
      %v1960 = vpop.f32.mrb[0].mxu0
      %1961 = vmatprep.mubr.f32.mxu0 0.0
      %1962 = vmatmul.mubr.f32.gmra.mrb[0].mxu0 %v1507
      %v1963 = vpop.f32.mrb[0].mxu0
      %v1964 = vadd.f32 %v1859, %v1963
      %v1965 = vpop.f32.mrb[0].mxu0
      %1966 = vmatprep.mubr.f32.mxu0 0.0
      %1967 = vmatmul.mubr.f32.gmra.mrb[0].mxu0 %v1508
      %v1968 = vpop.f32.mrb[0].mxu0
      %v1969 = vadd.f32 %v1864, %v1968
      %v1970 = vpop.f32.mrb[0].mxu0
      %1971 = vmatprep.mubr.f32.mxu0 0.0
      %1972 = vmatmul.mubr.f32.gmra.mrb[0].mxu0 %v1509
      %v1973 = vpop.f32.mrb[0].mxu0
      %v1974 = vadd.f32 %v1869, %v1973
      %v1975 = vpop.f32.mrb[0].mxu0
      %1976 = vmatprep.mubr.f32.mxu0 0.0
      %1977 = vmatmul.mubr.f32.gmra.mrb[0].mxu0 %v1510
      %v1978 = vpop.f32.mrb[0].mxu0
      %v1979 = vadd.f32 %v1874, %v1978
      %v1980 = vpop.f32.mrb[0].mxu0
      %1981 = vdwg.mxu0
      %v1982 = vld [vmem:[%s2 + $0x6] sm:$0x1]
      %v1983 = vlaneseq
      %v1984 = vshrl.u32 %v1983, 7
      %v1985 = vsub.s32 0, %v1984
      %v1986 = vrot.slane %v1982, %v1985
      %v1987 = vadd.f32 %v1944, %v1986
      %v1988 = vadd.f32 %v1949, %v1986
      %v1989 = vadd.f32 %v1954, %v1986
      %v1990 = vadd.f32 %v1959, %v1986
      %v1991 = vadd.f32 %v1964, %v1986
      %v1992 = vadd.f32 %v1969, %v1986
      %v1993 = vadd.f32 %v1974, %v1986
      %v1994 = vadd.f32 %v1979, %v1986
      %v1995 = vld [vmem:[%s1 + $0x30] sm:$0xff]
      %v1996 = vld [vmem:[%s1 + $0x78] sm:$0xff]
      %v1997 = vld [vmem:[%s1 + $0xc0] sm:$0xff]
      %v1998 = vld [vmem:[%s1 + $0x108] sm:$0xff]
      %v1999 = vld [vmem:[%s1 + $0x150] sm:$0xff]
      %v2000 = vld [vmem:[%s1 + $0x198] sm:$0xff]
      %v2001 = vld [vmem:[%s1 + $0x1e0] sm:$0xff]
      %v2002 = vld [vmem:[%s1 + $0x228] sm:$0xff]
      %v2003 = vld [vmem:[%s1 + $0x270] sm:$0xff]
      %v2004 = vld [vmem:[%s1 + $0x2b8] sm:$0xff]
      %v2005 = vld [vmem:[%s1 + $0x300] sm:$0xff]
      %v2006 = vld [vmem:[%s1 + $0x348] sm:$0xff]
      %v2007 = vld [vmem:[%s1 + $0x390] sm:$0xff]
      %v2008 = vld [vmem:[%s1 + $0x3d8] sm:$0xff]
      %v2009 = vld [vmem:[%s1 + $0x420] sm:$0xff]
      %v2010 = vld [vmem:[%s1 + $0x468] sm:$0xff]
      %v2011 = vld [vmem:[%s2 + $0x7] sm:$0x1]
      %v2012 = vlaneseq
      %v2013 = vshrl.u32 %v2012, 7
      %v2014 = vsub.s32 0, %v2013
      %v2015 = vrot.slane %v2011, %v2014
      %2016 = vmatprep.subr.mxu0 0.0
      %2017 = vmatpush1.msra.mxu0 %v1995
      %2018 = vmatprep.subr.mxu0 0.0
      %2019 = vmatpush1.msra.mxu0 %v1996
      %2020 = vmatprep.subr.mxu0 0.0
      %2021 = vmatpush1.msra.mxu0 %v1997
      %2022 = vmatprep.subr.mxu0 0.0
      %2023 = vmatpush1.msra.mxu0 %v1998
      %2024 = vmatprep.subr.mxu0 0.0
      %2025 = vmatpush1.msra.mxu0 %v1999
      %2026 = vmatprep.subr.mxu0 0.0
      %2027 = vmatpush1.msra.mxu0 %v2000
      %2028 = vmatprep.subr.mxu0 0.0
      %2029 = vmatpush1.msra.mxu0 %v2001
      %2030 = vmatprep.subr.mxu0 0.0
      %2031 = vmatpush1.msra.mxu0 %v2002
      %2032 = vmatprep.subr.mxu0 0.0
      %2033 = vmatpush1.msra.mxu0 %v2003
      %2034 = vmatprep.subr.mxu0 0.0
      %2035 = vmatpush1.msra.mxu0 %v2004
      %2036 = vmatprep.subr.mxu0 0.0
      %2037 = vmatpush1.msra.mxu0 %v2005
      %2038 = vmatprep.subr.mxu0 0.0
      %2039 = vmatpush1.msra.mxu0 %v2006
      %2040 = vmatprep.subr.mxu0 0.0
      %2041 = vmatpush1.msra.mxu0 %v2007
      %2042 = vmatprep.subr.mxu0 0.0
      %2043 = vmatpush1.msra.mxu0 %v2008
      %2044 = vmatprep.subr.mxu0 0.0
      %2045 = vmatpush1.msra.mxu0 %v2009
      %2046 = vmatprep.subr.mxu0 0.0
      %2047 = vmatpush1.msra.mxu0 %v2010
      %2048 = vmatprep.subr.mxu0 0.0
      %2049 = vmatpush1.msra.mxu0 0.0
      %2050 = vmatprep.subr.mxu0 0.0
      %2051 = vmatpush1.msra.mxu0 0.0
      %2052 = vmatprep.subr.mxu0 0.0
      %2053 = vmatpush1.msra.mxu0 0.0
      %2054 = vmatprep.subr.mxu0 0.0
      %2055 = vmatpush1.msra.mxu0 0.0
      %2056 = vmatprep.subr.mxu0 0.0
      %2057 = vmatpush1.msra.mxu0 0.0
      %2058 = vmatprep.subr.mxu0 0.0
      %2059 = vmatpush1.msra.mxu0 0.0
      %2060 = vmatprep.subr.mxu0 0.0
      %2061 = vmatpush1.msra.mxu0 0.0
      %2062 = vmatprep.subr.mxu0 0.0
      %2063 = vmatpush1.msra.mxu0 0.0
      %2064 = vmatprep.subr.mxu0 0.0
      %2065 = vmatpush1.msra.mxu0 0.0
      %2066 = vmatprep.subr.mxu0 0.0
      %2067 = vmatpush1.msra.mxu0 0.0
      %2068 = vmatprep.subr.mxu0 0.0
      %2069 = vmatpush1.msra.mxu0 0.0
      %2070 = vmatprep.subr.mxu0 0.0
      %2071 = vmatpush1.msra.mxu0 0.0
      %2072 = vmatprep.subr.mxu0 0.0
      %2073 = vmatpush1.msra.mxu0 0.0
      %2074 = vmatprep.subr.mxu0 0.0
      %2075 = vmatpush1.msra.mxu0 0.0
      %2076 = vmatprep.subr.mxu0 0.0
      %2077 = vmatpush1.msra.mxu0 0.0
      %2078 = vmatprep.subr.mxu0 0.0
      %2079 = vmatpush1.msra.mxu0 0.0
      %2080 = vmatprep.mubr.f32.mxu0 0.0
      %2081 = vmatmul.mubr.f32.gmra.mrb[0].mxu0 %v171
      %v2082 = vpop.f32.mrb[0].mxu0
      %v2083 = vadd.f32 %v2015, %v2082
      %v2084 = vpop.f32.mrb[0].mxu0
      %2085 = vmatprep.mubr.f32.mxu0 0.0
      %2086 = vmatmul.mubr.f32.gmra.mrb[0].mxu0 %v172
      %v2087 = vpop.f32.mrb[0].mxu0
      %v2088 = vadd.f32 %v2015, %v2087
      %v2089 = vpop.f32.mrb[0].mxu0
      %2090 = vmatprep.mubr.f32.mxu0 0.0
      %2091 = vmatmul.mubr.f32.gmra.mrb[0].mxu0 %v173
      %v2092 = vpop.f32.mrb[0].mxu0
      %v2093 = vadd.f32 %v2015, %v2092
      %v2094 = vpop.f32.mrb[0].mxu0
      %2095 = vmatprep.mubr.f32.mxu0 0.0
      %2096 = vmatmul.mubr.f32.gmra.mrb[0].mxu0 %v174
      %v2097 = vpop.f32.mrb[0].mxu0
      %v2098 = vadd.f32 %v2015, %v2097
      %v2099 = vpop.f32.mrb[0].mxu0
      %2100 = vmatprep.mubr.f32.mxu0 0.0
      %2101 = vmatmul.mubr.f32.gmra.mrb[0].mxu0 %v175
      %v2102 = vpop.f32.mrb[0].mxu0
      %v2103 = vadd.f32 %v2015, %v2102
      %v2104 = vpop.f32.mrb[0].mxu0
      %2105 = vmatprep.mubr.f32.mxu0 0.0
      %2106 = vmatmul.mubr.f32.gmra.mrb[0].mxu0 %v176
      %v2107 = vpop.f32.mrb[0].mxu0
      %v2108 = vadd.f32 %v2015, %v2107
      %v2109 = vpop.f32.mrb[0].mxu0
      %2110 = vmatprep.mubr.f32.mxu0 0.0
      %2111 = vmatmul.mubr.f32.gmra.mrb[0].mxu0 %v177
      %v2112 = vpop.f32.mrb[0].mxu0
      %v2113 = vadd.f32 %v2015, %v2112
      %v2114 = vpop.f32.mrb[0].mxu0
      %2115 = vmatprep.mubr.f32.mxu0 0.0
      %2116 = vmatmul.mubr.f32.gmra.mrb[0].mxu0 %v178
      %v2117 = vpop.f32.mrb[0].mxu0
      %v2118 = vadd.f32 %v2015, %v2117
      %v2119 = vpop.f32.mrb[0].mxu0
      %2120 = vdwg.mxu0
      %2121 = vmatprep.subr.mxu0 0.0
      %2122 = vmatpush1.xpose.msra.mxu0 %v926
      %2123 = vmatprep.subr.mxu0 0.0
      %2124 = vmatpush1.xpose.msra.mxu0 %v931
      %2125 = vmatprep.subr.mxu0 0.0
      %2126 = vmatpush1.xpose.msra.mxu0 %v936
      %2127 = vmatprep.subr.mxu0 0.0
      %2128 = vmatpush1.xpose.msra.mxu0 %v941
      %2129 = vmatprep.subr.mxu0 0.0
      %2130 = vmatpush1.xpose.msra.mxu0 %v946
      %2131 = vmatprep.subr.mxu0 0.0
      %2132 = vmatpush1.xpose.msra.mxu0 %v951
      %2133 = vmatprep.subr.mxu0 0.0
      %2134 = vmatpush1.xpose.msra.mxu0 %v956
      %2135 = vmatprep.subr.mxu0 0.0
      %2136 = vmatpush1.xpose.msra.mxu0 %v961
      %2137 = vmatprep.subr.mxu0 0.0
      %2138 = vmatpush1.xpose.msra.mxu0 0.0
      %2139 = vmatprep.subr.mxu0 0.0
      %2140 = vmatpush1.xpose.msra.mxu0 0.0
      %2141 = vmatprep.subr.mxu0 0.0
      %2142 = vmatpush1.xpose.msra.mxu0 0.0
      %2143 = vmatprep.subr.mxu0 0.0
      %2144 = vmatpush1.xpose.msra.mxu0 0.0
      %2145 = vmatprep.subr.mxu0 0.0
      %2146 = vmatpush1.xpose.msra.mxu0 0.0
      %2147 = vmatprep.subr.mxu0 0.0
      %2148 = vmatpush1.xpose.msra.mxu0 0.0
      %2149 = vmatprep.subr.mxu0 0.0
      %2150 = vmatpush1.xpose.msra.mxu0 0.0
      %2151 = vmatprep.subr.mxu0 0.0
      %2152 = vmatpush1.xpose.msra.mxu0 0.0
      %2153 = vmatprep.subr.mxu0 0.0
      %2154 = vmatpush1.xpose.msra.mxu0 0.0
      %2155 = vmatprep.subr.mxu0 0.0
      %2156 = vmatpush1.xpose.msra.mxu0 0.0
      %2157 = vmatprep.subr.mxu0 0.0
      %2158 = vmatpush1.xpose.msra.mxu0 0.0
      %2159 = vmatprep.subr.mxu0 0.0
      %2160 = vmatpush1.xpose.msra.mxu0 0.0
      %2161 = vmatprep.subr.mxu0 0.0
      %2162 = vmatpush1.xpose.msra.mxu0 0.0
      %2163 = vmatprep.subr.mxu0 0.0
      %2164 = vmatpush1.xpose.msra.mxu0 0.0
      %2165 = vmatprep.subr.mxu0 0.0
      %2166 = vmatpush1.xpose.msra.mxu0 0.0
      %2167 = vmatprep.subr.mxu0 0.0
      %2168 = vmatpush1.xpose.msra.mxu0 0.0
      %2169 = vmatprep.subr.mxu0 0.0
      %2170 = vmatpush1.xpose.msra.mxu0 0.0
      %2171 = vmatprep.subr.mxu0 0.0
      %2172 = vmatpush1.xpose.msra.mxu0 0.0
      %2173 = vmatprep.subr.mxu0 0.0
      %2174 = vmatpush1.xpose.msra.mxu0 0.0
      %2175 = vmatprep.subr.mxu0 0.0
      %2176 = vmatpush1.xpose.msra.mxu0 0.0
      %2177 = vmatprep.subr.mxu0 0.0
      %2178 = vmatpush1.xpose.msra.mxu0 0.0
      %2179 = vmatprep.subr.mxu0 0.0
      %2180 = vmatpush1.xpose.msra.mxu0 0.0
      %2181 = vmatprep.subr.mxu0 0.0
      %2182 = vmatpush1.xpose.msra.mxu0 0.0
      %2183 = vmatprep.subr.mxu0 0.0
      %2184 = vmatpush1.xpose.msra.mxu0 0.0
      %2185 = vmatprep.mubr.f32.mxu0 0.0
      %2186 = vmatmul.mubr.f32.gmra.mrb[0].mxu0 %v1987
      %v2187 = vpop.f32.mrb[0].mxu0
      %v2188 = vadd.f32 0.0, %v2187
      %v2189 = vpop.f32.mrb[0].mxu0
      %2190 = vmatprep.mubr.f32.mxu0 0.0
      %2191 = vmatmul.mubr.f32.gmra.mrb[0].mxu0 %v1988
      %v2192 = vpop.f32.mrb[0].mxu0
      %v2193 = vadd.f32 0.0, %v2192
      %v2194 = vpop.f32.mrb[0].mxu0
      %2195 = vmatprep.mubr.f32.mxu0 0.0
      %2196 = vmatmul.mubr.f32.gmra.mrb[0].mxu0 %v1989
      %v2197 = vpop.f32.mrb[0].mxu0
      %v2198 = vadd.f32 0.0, %v2197
      %v2199 = vpop.f32.mrb[0].mxu0
      %2200 = vmatprep.mubr.f32.mxu0 0.0
      %2201 = vmatmul.mubr.f32.gmra.mrb[0].mxu0 %v1990
      %v2202 = vpop.f32.mrb[0].mxu0
      %v2203 = vadd.f32 0.0, %v2202
      %v2204 = vpop.f32.mrb[0].mxu0
      %2205 = vmatprep.mubr.f32.mxu0 0.0
      %2206 = vmatmul.mubr.f32.gmra.mrb[0].mxu0 %v1991
      %v2207 = vpop.f32.mrb[0].mxu0
      %v2208 = vadd.f32 0.0, %v2207
      %v2209 = vpop.f32.mrb[0].mxu0
      %2210 = vmatprep.mubr.f32.mxu0 0.0
      %2211 = vmatmul.mubr.f32.gmra.mrb[0].mxu0 %v1992
      %v2212 = vpop.f32.mrb[0].mxu0
      %v2213 = vadd.f32 0.0, %v2212
      %v2214 = vpop.f32.mrb[0].mxu0
      %2215 = vmatprep.mubr.f32.mxu0 0.0
      %2216 = vmatmul.mubr.f32.gmra.mrb[0].mxu0 %v1993
      %v2217 = vpop.f32.mrb[0].mxu0
      %v2218 = vadd.f32 0.0, %v2217
      %v2219 = vpop.f32.mrb[0].mxu0
      %2220 = vmatprep.mubr.f32.mxu0 0.0
      %2221 = vmatmul.mubr.f32.gmra.mrb[0].mxu0 %v1994
      %v2222 = vpop.f32.mrb[0].mxu0
      %v2223 = vadd.f32 0.0, %v2222
      %v2224 = vpop.f32.mrb[0].mxu0
      %2225 = vdwg.mxu0
      %v2226 = vmul.f32 %v2188, 0.35355338
      %v2227 = vmul.f32 %v2193, 0.35355338
      %v2228 = vmul.f32 %v2198, 0.35355338
      %v2229 = vmul.f32 %v2203, 0.35355338
      %v2230 = vmul.f32 %v2208, 0.35355338
      %v2231 = vmul.f32 %v2213, 0.35355338
      %v2232 = vmul.f32 %v2218, 0.35355338
      %v2233 = vmul.f32 %v2223, 0.35355338
      %v2234 = vsel %vm620, %v2226, -inf
      %2235 = vmax.xlane.f32.xlu0 %v2234
      %v2236 = vpop.xlane.xlu0 %2235
      %v2237 = vsel %vm620, %v2227, -inf
      %2238 = vmax.xlane.f32.xlu0 %v2237
      %v2239 = vpop.xlane.xlu0 %2238
      %v2240 = vsel %vm620, %v2228, -inf
      %2241 = vmax.xlane.f32.xlu0 %v2240
      %v2242 = vpop.xlane.xlu0 %2241
      %v2243 = vsel %vm620, %v2229, -inf
      %2244 = vmax.xlane.f32.xlu0 %v2243
      %v2245 = vpop.xlane.xlu0 %2244
      %v2246 = vsel %vm620, %v2230, -inf
      %2247 = vmax.xlane.f32.xlu0 %v2246
      %v2248 = vpop.xlane.xlu0 %2247
      %v2249 = vsel %vm620, %v2231, -inf
      %2250 = vmax.xlane.f32.xlu0 %v2249
      %v2251 = vpop.xlane.xlu0 %2250
      %v2252 = vsel %vm620, %v2232, -inf
      %2253 = vmax.xlane.f32.xlu0 %v2252
      %v2254 = vpop.xlane.xlu0 %2253
      %v2255 = vsel %vm620, %v2233, -inf
      %2256 = vmax.xlane.f32.xlu0 %v2255
      %v2257 = vpop.xlane.xlu0 %2256
      %v2258 = vsub.f32 %v2226, %v2236
      %v2259 = vsub.f32 %v2227, %v2239
      %v2260 = vsub.f32 %v2228, %v2242
      %v2261 = vsub.f32 %v2229, %v2245
      %v2262 = vsub.f32 %v2230, %v2248
      %v2263 = vsub.f32 %v2231, %v2251
      %v2264 = vsub.f32 %v2232, %v2254
      %v2265 = vsub.f32 %v2233, %v2257
      %v2266 = vmul.f32 %v2258, 1.442695
      %v2267 = vpow.pop %v2266
      %v2268 = vmul.f32 %v2259, 1.442695
      %v2269 = vpow.pop %v2268
      %v2270 = vmul.f32 %v2260, 1.442695
      %v2271 = vpow.pop %v2270
      %v2272 = vmul.f32 %v2261, 1.442695
      %v2273 = vpow.pop %v2272
      %v2274 = vmul.f32 %v2262, 1.442695
      %v2275 = vpow.pop %v2274
      %v2276 = vmul.f32 %v2263, 1.442695
      %v2277 = vpow.pop %v2276
      %v2278 = vmul.f32 %v2264, 1.442695
      %v2279 = vpow.pop %v2278
      %v2280 = vmul.f32 %v2265, 1.442695
      %v2281 = vpow.pop %v2280
      %v2282 = vsel %vm620, %v2267, 0.0
      %2283 = vadd.xlane.f32.xlu0 %v2282
      %v2284 = vpop.xlane.xlu0 %2283
      %v2285 = vsel %vm620, %v2269, 0.0
      %2286 = vadd.xlane.f32.xlu0 %v2285
      %v2287 = vpop.xlane.xlu0 %2286
      %v2288 = vsel %vm620, %v2271, 0.0
      %2289 = vadd.xlane.f32.xlu0 %v2288
      %v2290 = vpop.xlane.xlu0 %2289
      %v2291 = vsel %vm620, %v2273, 0.0
      %2292 = vadd.xlane.f32.xlu0 %v2291
      %v2293 = vpop.xlane.xlu0 %2292
      %v2294 = vsel %vm620, %v2275, 0.0
      %2295 = vadd.xlane.f32.xlu0 %v2294
      %v2296 = vpop.xlane.xlu0 %2295
      %v2297 = vsel %vm620, %v2277, 0.0
      %2298 = vadd.xlane.f32.xlu0 %v2297
      %v2299 = vpop.xlane.xlu0 %2298
      %v2300 = vsel %vm620, %v2279, 0.0
      %2301 = vadd.xlane.f32.xlu0 %v2300
      %v2302 = vpop.xlane.xlu0 %2301
      %v2303 = vsel %vm620, %v2281, 0.0
      %2304 = vadd.xlane.f32.xlu0 %v2303
      %v2305 = vpop.xlane.xlu0 %2304
      %v2306 = vrcp.pop %v2284
      %v2307 = vrcp.pop %v2287
      %v2308 = vrcp.pop %v2290
      %v2309 = vrcp.pop %v2293
      %v2310 = vrcp.pop %v2296
      %v2311 = vrcp.pop %v2299
      %v2312 = vrcp.pop %v2302
      %v2313 = vrcp.pop %v2305
      %v2314 = vmul.f32 %v2267, %v2306
      %v2315 = vmul.f32 %v2269, %v2307
      %v2316 = vmul.f32 %v2271, %v2308
      %v2317 = vmul.f32 %v2273, %v2309
      %v2318 = vmul.f32 %v2275, %v2310
      %v2319 = vmul.f32 %v2277, %v2311
      %v2320 = vmul.f32 %v2279, %v2312
      %v2321 = vmul.f32 %v2281, %v2313
      %v2323 = vsel %vm620, %v2314, 0
      %v2326 = vsel %vm620, %v2315, 0
      %v2329 = vsel %vm620, %v2316, 0
      %v2332 = vsel %vm620, %v2317, 0
      %v2335 = vsel %vm620, %v2318, 0
      %v2338 = vsel %vm620, %v2319, 0
      %v2341 = vsel %vm620, %v2320, 0
      %v2344 = vsel %vm620, %v2321, 0
      %2346 = vmatprep.subr.mxu0 0.0
      %2347 = vmatpush1.msra.mxu0 %v2083
      %2348 = vmatprep.subr.mxu0 0.0
      %2349 = vmatpush1.msra.mxu0 %v2088
      %2350 = vmatprep.subr.mxu0 0.0
      %2351 = vmatpush1.msra.mxu0 %v2093
      %2352 = vmatprep.subr.mxu0 0.0
      %2353 = vmatpush1.msra.mxu0 %v2098
      %2354 = vmatprep.subr.mxu0 0.0
      %2355 = vmatpush1.msra.mxu0 %v2103
      %2356 = vmatprep.subr.mxu0 0.0
      %2357 = vmatpush1.msra.mxu0 %v2108
      %2358 = vmatprep.subr.mxu0 0.0
      %2359 = vmatpush1.msra.mxu0 %v2113
      %2360 = vmatprep.subr.mxu0 0.0
      %2361 = vmatpush1.msra.mxu0 %v2118
      %2362 = vmatprep.subr.mxu0 0.0
      %2363 = vmatpush1.msra.mxu0 0.0
      %2364 = vmatprep.subr.mxu0 0.0
      %2365 = vmatpush1.msra.mxu0 0.0
      %2366 = vmatprep.subr.mxu0 0.0
      %2367 = vmatpush1.msra.mxu0 0.0
      %2368 = vmatprep.subr.mxu0 0.0
      %2369 = vmatpush1.msra.mxu0 0.0
      %2370 = vmatprep.subr.mxu0 0.0
      %2371 = vmatpush1.msra.mxu0 0.0
      %2372 = vmatprep.subr.mxu0 0.0
      %2373 = vmatpush1.msra.mxu0 0.0
      %2374 = vmatprep.subr.mxu0 0.0
      %2375 = vmatpush1.msra.mxu0 0.0
      %2376 = vmatprep.subr.mxu0 0.0
      %2377 = vmatpush1.msra.mxu0 0.0
      %2378 = vmatprep.subr.mxu0 0.0
      %2379 = vmatpush1.msra.mxu0 0.0
      %2380 = vmatprep.subr.mxu0 0.0
      %2381 = vmatpush1.msra.mxu0 0.0
      %2382 = vmatprep.subr.mxu0 0.0
      %2383 = vmatpush1.msra.mxu0 0.0
      %2384 = vmatprep.subr.mxu0 0.0
      %2385 = vmatpush1.msra.mxu0 0.0
      %2386 = vmatprep.subr.mxu0 0.0
      %2387 = vmatpush1.msra.mxu0 0.0
      %2388 = vmatprep.subr.mxu0 0.0
      %2389 = vmatpush1.msra.mxu0 0.0
      %2390 = vmatprep.subr.mxu0 0.0
      %2391 = vmatpush1.msra.mxu0 0.0
      %2392 = vmatprep.subr.mxu0 0.0
      %2393 = vmatpush1.msra.mxu0 0.0
      %2394 = vmatprep.subr.mxu0 0.0
      %2395 = vmatpush1.msra.mxu0 0.0
      %2396 = vmatprep.subr.mxu0 0.0
      %2397 = vmatpush1.msra.mxu0 0.0
      %2398 = vmatprep.subr.mxu0 0.0
      %2399 = vmatpush1.msra.mxu0 0.0
      %2400 = vmatprep.subr.mxu0 0.0
      %2401 = vmatpush1.msra.mxu0 0.0
      %2402 = vmatprep.subr.mxu0 0.0
      %2403 = vmatpush1.msra.mxu0 0.0
      %2404 = vmatprep.subr.mxu0 0.0
      %2405 = vmatpush1.msra.mxu0 0.0
      %2406 = vmatprep.subr.mxu0 0.0
      %2407 = vmatpush1.msra.mxu0 0.0
      %2408 = vmatprep.subr.mxu0 0.0
      %2409 = vmatpush1.msra.mxu0 0.0
      %2410 = vmatprep.mubr.f32.mxu0 0.0
      %2411 = vmatmul.mubr.f32.gmra.mrb[0].mxu0 %v2323
      %v2412 = vpop.f32.mrb[0].mxu0
      %v2413 = vadd.f32 0.0, %v2412
      %v2414 = vpop.f32.mrb[0].mxu0
      %2415 = vmatprep.mubr.f32.mxu0 0.0
      %2416 = vmatmul.mubr.f32.gmra.mrb[0].mxu0 %v2326
      %v2417 = vpop.f32.mrb[0].mxu0
      %v2418 = vadd.f32 0.0, %v2417
      %v2419 = vpop.f32.mrb[0].mxu0
      %2420 = vmatprep.mubr.f32.mxu0 0.0
      %2421 = vmatmul.mubr.f32.gmra.mrb[0].mxu0 %v2329
      %v2422 = vpop.f32.mrb[0].mxu0
      %v2423 = vadd.f32 0.0, %v2422
      %v2424 = vpop.f32.mrb[0].mxu0
      %2425 = vmatprep.mubr.f32.mxu0 0.0
      %2426 = vmatmul.mubr.f32.gmra.mrb[0].mxu0 %v2332
      %v2427 = vpop.f32.mrb[0].mxu0
      %v2428 = vadd.f32 0.0, %v2427
      %v2429 = vpop.f32.mrb[0].mxu0
      %2430 = vmatprep.mubr.f32.mxu0 0.0
      %2431 = vmatmul.mubr.f32.gmra.mrb[0].mxu0 %v2335
      %v2432 = vpop.f32.mrb[0].mxu0
      %v2433 = vadd.f32 0.0, %v2432
      %v2434 = vpop.f32.mrb[0].mxu0
      %2435 = vmatprep.mubr.f32.mxu0 0.0
      %2436 = vmatmul.mubr.f32.gmra.mrb[0].mxu0 %v2338
      %v2437 = vpop.f32.mrb[0].mxu0
      %v2438 = vadd.f32 0.0, %v2437
      %v2439 = vpop.f32.mrb[0].mxu0
      %2440 = vmatprep.mubr.f32.mxu0 0.0
      %2441 = vmatmul.mubr.f32.gmra.mrb[0].mxu0 %v2341
      %v2442 = vpop.f32.mrb[0].mxu0
      %v2443 = vadd.f32 0.0, %v2442
      %v2444 = vpop.f32.mrb[0].mxu0
      %2445 = vmatprep.mubr.f32.mxu0 0.0
      %2446 = vmatmul.mubr.f32.gmra.mrb[0].mxu0 %v2344
      %v2447 = vpop.f32.mrb[0].mxu0
      %v2448 = vadd.f32 0.0, %v2447
      %v2449 = vpop.f32.mrb[0].mxu0
      %2450 = vdwg.mxu0
      %v2451 = vld [vmem:[%s1 + $0x38] sm:$0xff]
      %v2452 = vld [vmem:[%s1 + $0x80] sm:$0xff]
      %v2453 = vld [vmem:[%s1 + $0xc8] sm:$0xff]
      %v2454 = vld [vmem:[%s1 + $0x110] sm:$0xff]
      %v2455 = vld [vmem:[%s1 + $0x158] sm:$0xff]
      %v2456 = vld [vmem:[%s1 + $0x1a0] sm:$0xff]
      %v2457 = vld [vmem:[%s1 + $0x1e8] sm:$0xff]
      %v2458 = vld [vmem:[%s1 + $0x230] sm:$0xff]
      %v2459 = vld [vmem:[%s1 + $0x278] sm:$0xff]
      %v2460 = vld [vmem:[%s1 + $0x2c0] sm:$0xff]
      %v2461 = vld [vmem:[%s1 + $0x308] sm:$0xff]
      %v2462 = vld [vmem:[%s1 + $0x350] sm:$0xff]
      %v2463 = vld [vmem:[%s1 + $0x398] sm:$0xff]
      %v2464 = vld [vmem:[%s1 + $0x3e0] sm:$0xff]
      %v2465 = vld [vmem:[%s1 + $0x428] sm:$0xff]
      %v2466 = vld [vmem:[%s1 + $0x470] sm:$0xff]
      %v2467 = vld [vmem:[%s2 + $0x8] sm:$0x1]
      %v2468 = vlaneseq
      %v2469 = vshrl.u32 %v2468, 7
      %v2470 = vsub.s32 0, %v2469
      %v2471 = vrot.slane %v2467, %v2470
      %2472 = vmatprep.subr.mxu0 0.0
      %2473 = vmatpush1.msra.mxu0 %v2451
      %2474 = vmatprep.subr.mxu0 0.0
      %2475 = vmatpush1.msra.mxu0 %v2452
      %2476 = vmatprep.subr.mxu0 0.0
      %2477 = vmatpush1.msra.mxu0 %v2453
      %2478 = vmatprep.subr.mxu0 0.0
      %2479 = vmatpush1.msra.mxu0 %v2454
      %2480 = vmatprep.subr.mxu0 0.0
      %2481 = vmatpush1.msra.mxu0 %v2455
      %2482 = vmatprep.subr.mxu0 0.0
      %2483 = vmatpush1.msra.mxu0 %v2456
      %2484 = vmatprep.subr.mxu0 0.0
      %2485 = vmatpush1.msra.mxu0 %v2457
      %2486 = vmatprep.subr.mxu0 0.0
      %2487 = vmatpush1.msra.mxu0 %v2458
      %2488 = vmatprep.subr.mxu0 0.0
      %2489 = vmatpush1.msra.mxu0 %v2459
      %2490 = vmatprep.subr.mxu0 0.0
      %2491 = vmatpush1.msra.mxu0 %v2460
      %2492 = vmatprep.subr.mxu0 0.0
      %2493 = vmatpush1.msra.mxu0 %v2461
      %2494 = vmatprep.subr.mxu0 0.0
      %2495 = vmatpush1.msra.mxu0 %v2462
      %2496 = vmatprep.subr.mxu0 0.0
      %2497 = vmatpush1.msra.mxu0 %v2463
      %2498 = vmatprep.subr.mxu0 0.0
      %2499 = vmatpush1.msra.mxu0 %v2464
      %2500 = vmatprep.subr.mxu0 0.0
      %2501 = vmatpush1.msra.mxu0 %v2465
      %2502 = vmatprep.subr.mxu0 0.0
      %2503 = vmatpush1.msra.mxu0 %v2466
      %2504 = vmatprep.subr.mxu0 0.0
      %2505 = vmatpush1.msra.mxu0 0.0
      %2506 = vmatprep.subr.mxu0 0.0
      %2507 = vmatpush1.msra.mxu0 0.0
      %2508 = vmatprep.subr.mxu0 0.0
      %2509 = vmatpush1.msra.mxu0 0.0
      %2510 = vmatprep.subr.mxu0 0.0
      %2511 = vmatpush1.msra.mxu0 0.0
      %2512 = vmatprep.subr.mxu0 0.0
      %2513 = vmatpush1.msra.mxu0 0.0
      %2514 = vmatprep.subr.mxu0 0.0
      %2515 = vmatpush1.msra.mxu0 0.0
      %2516 = vmatprep.subr.mxu0 0.0
      %2517 = vmatpush1.msra.mxu0 0.0
      %2518 = vmatprep.subr.mxu0 0.0
      %2519 = vmatpush1.msra.mxu0 0.0
      %2520 = vmatprep.subr.mxu0 0.0
      %2521 = vmatpush1.msra.mxu0 0.0
      %2522 = vmatprep.subr.mxu0 0.0
      %2523 = vmatpush1.msra.mxu0 0.0
      %2524 = vmatprep.subr.mxu0 0.0
      %2525 = vmatpush1.msra.mxu0 0.0
      %2526 = vmatprep.subr.mxu0 0.0
      %2527 = vmatpush1.msra.mxu0 0.0
      %2528 = vmatprep.subr.mxu0 0.0
      %2529 = vmatpush1.msra.mxu0 0.0
      %2530 = vmatprep.subr.mxu0 0.0
      %2531 = vmatpush1.msra.mxu0 0.0
      %2532 = vmatprep.subr.mxu0 0.0
      %2533 = vmatpush1.msra.mxu0 0.0
      %2534 = vmatprep.subr.mxu0 0.0
      %2535 = vmatpush1.msra.mxu0 0.0
      %2536 = vmatprep.mubr.f32.mxu0 0.0
      %2537 = vmatmul.mubr.f32.gmra.mrb[0].mxu0 %v2413
      %v2538 = vpop.f32.mrb[0].mxu0
      %v2539 = vadd.f32 %v2471, %v2538
      %v2540 = vpop.f32.mrb[0].mxu0
      %2541 = vmatprep.mubr.f32.mxu0 0.0
      %2542 = vmatmul.mubr.f32.gmra.mrb[0].mxu0 %v2418
      %v2543 = vpop.f32.mrb[0].mxu0
      %v2544 = vadd.f32 %v2471, %v2543
      %v2545 = vpop.f32.mrb[0].mxu0
      %2546 = vmatprep.mubr.f32.mxu0 0.0
      %2547 = vmatmul.mubr.f32.gmra.mrb[0].mxu0 %v2423
      %v2548 = vpop.f32.mrb[0].mxu0
      %v2549 = vadd.f32 %v2471, %v2548
      %v2550 = vpop.f32.mrb[0].mxu0
      %2551 = vmatprep.mubr.f32.mxu0 0.0
      %2552 = vmatmul.mubr.f32.gmra.mrb[0].mxu0 %v2428
      %v2553 = vpop.f32.mrb[0].mxu0
      %v2554 = vadd.f32 %v2471, %v2553
      %v2555 = vpop.f32.mrb[0].mxu0
      %2556 = vmatprep.mubr.f32.mxu0 0.0
      %2557 = vmatmul.mubr.f32.gmra.mrb[0].mxu0 %v2433
      %v2558 = vpop.f32.mrb[0].mxu0
      %v2559 = vadd.f32 %v2471, %v2558
      %v2560 = vpop.f32.mrb[0].mxu0
      %2561 = vmatprep.mubr.f32.mxu0 0.0
      %2562 = vmatmul.mubr.f32.gmra.mrb[0].mxu0 %v2438
      %v2563 = vpop.f32.mrb[0].mxu0
      %v2564 = vadd.f32 %v2471, %v2563
      %v2565 = vpop.f32.mrb[0].mxu0
      %2566 = vmatprep.mubr.f32.mxu0 0.0
      %2567 = vmatmul.mubr.f32.gmra.mrb[0].mxu0 %v2443
      %v2568 = vpop.f32.mrb[0].mxu0
      %v2569 = vadd.f32 %v2471, %v2568
      %v2570 = vpop.f32.mrb[0].mxu0
      %2571 = vmatprep.mubr.f32.mxu0 0.0
      %2572 = vmatmul.mubr.f32.gmra.mrb[0].mxu0 %v2448
      %v2573 = vpop.f32.mrb[0].mxu0
      %v2574 = vadd.f32 %v2471, %v2573
      %v2575 = vpop.f32.mrb[0].mxu0
      %2576 = vdwg.mxu0
      %v2577 = vadd.f32 %v2539, %v2083
      %v2578 = vadd.f32 %v2544, %v2088
      %v2579 = vadd.f32 %v2549, %v2093
      %v2580 = vadd.f32 %v2554, %v2098
      %v2581 = vadd.f32 %v2559, %v2103
      %v2582 = vadd.f32 %v2564, %v2108
      %v2583 = vadd.f32 %v2569, %v2113
      %v2584 = vadd.f32 %v2574, %v2118
      %2585 = vadd.xlane.f32.xlu0 %v2577
      %v2586 = vpop.xlane.xlu0 %2585
      %2587 = vadd.xlane.f32.xlu0 %v2578
      %v2588 = vpop.xlane.xlu0 %2587
      %2589 = vadd.xlane.f32.xlu0 %v2579
      %v2590 = vpop.xlane.xlu0 %2589
      %2591 = vadd.xlane.f32.xlu0 %v2580
      %v2592 = vpop.xlane.xlu0 %2591
      %2593 = vadd.xlane.f32.xlu0 %v2581
      %v2594 = vpop.xlane.xlu0 %2593
      %2595 = vadd.xlane.f32.xlu0 %v2582
      %v2596 = vpop.xlane.xlu0 %2595
      %2597 = vadd.xlane.f32.xlu0 %v2583
      %v2598 = vpop.xlane.xlu0 %2597
      %2599 = vadd.xlane.f32.xlu0 %v2584
      %v2600 = vpop.xlane.xlu0 %2599
      %v2601 = vmul.f32 %v2586, 0.125
      %v2602 = vmul.f32 %v2588, 0.125
      %v2603 = vmul.f32 %v2590, 0.125
      %v2604 = vmul.f32 %v2592, 0.125
      %v2605 = vmul.f32 %v2594, 0.125
      %v2606 = vmul.f32 %v2596, 0.125
      %v2607 = vmul.f32 %v2598, 0.125
      %v2608 = vmul.f32 %v2600, 0.125
      %v2609 = vmul.f32 %v2577, %v2577
      %v2610 = vmul.f32 %v2578, %v2578
      %v2611 = vmul.f32 %v2579, %v2579
      %v2612 = vmul.f32 %v2580, %v2580
      %v2613 = vmul.f32 %v2581, %v2581
      %v2614 = vmul.f32 %v2582, %v2582
      %v2615 = vmul.f32 %v2583, %v2583
      %v2616 = vmul.f32 %v2584, %v2584
      %2617 = vadd.xlane.f32.xlu0 %v2609
      %v2618 = vpop.xlane.xlu0 %2617
      %2619 = vadd.xlane.f32.xlu0 %v2610
      %v2620 = vpop.xlane.xlu0 %2619
      %2621 = vadd.xlane.f32.xlu0 %v2611
      %v2622 = vpop.xlane.xlu0 %2621
      %2623 = vadd.xlane.f32.xlu0 %v2612
      %v2624 = vpop.xlane.xlu0 %2623
      %2625 = vadd.xlane.f32.xlu0 %v2613
      %v2626 = vpop.xlane.xlu0 %2625
      %2627 = vadd.xlane.f32.xlu0 %v2614
      %v2628 = vpop.xlane.xlu0 %2627
      %2629 = vadd.xlane.f32.xlu0 %v2615
      %v2630 = vpop.xlane.xlu0 %2629
      %2631 = vadd.xlane.f32.xlu0 %v2616
      %v2632 = vpop.xlane.xlu0 %2631
      %v2633 = vmul.f32 %v2618, 0.125
      %v2634 = vmul.f32 %v2620, 0.125
      %v2635 = vmul.f32 %v2622, 0.125
      %v2636 = vmul.f32 %v2624, 0.125
      %v2637 = vmul.f32 %v2626, 0.125
      %v2638 = vmul.f32 %v2628, 0.125
      %v2639 = vmul.f32 %v2630, 0.125
      %v2640 = vmul.f32 %v2632, 0.125
      %v2641 = vmul.f32 %v2601, %v2601
      %v2642 = vmul.f32 %v2602, %v2602
      %v2643 = vmul.f32 %v2603, %v2603
      %v2644 = vmul.f32 %v2604, %v2604
      %v2645 = vmul.f32 %v2605, %v2605
      %v2646 = vmul.f32 %v2606, %v2606
      %v2647 = vmul.f32 %v2607, %v2607
      %v2648 = vmul.f32 %v2608, %v2608
      %v2649 = vsub.f32 %v2633, %v2641
      %v2650 = vsub.f32 %v2634, %v2642
      %v2651 = vsub.f32 %v2635, %v2643
      %v2652 = vsub.f32 %v2636, %v2644
      %v2653 = vsub.f32 %v2637, %v2645
      %v2654 = vsub.f32 %v2638, %v2646
      %v2655 = vsub.f32 %v2639, %v2647
      %v2656 = vsub.f32 %v2640, %v2648
      %v2657 = vsub.f32 %v2577, %v2601
      %v2658 = vsub.f32 %v2578, %v2602
      %v2659 = vsub.f32 %v2579, %v2603
      %v2660 = vsub.f32 %v2580, %v2604
      %v2661 = vsub.f32 %v2581, %v2605
      %v2662 = vsub.f32 %v2582, %v2606
      %v2663 = vsub.f32 %v2583, %v2607
      %v2664 = vsub.f32 %v2584, %v2608
      %v2665 = vadd.f32 %v2649, 1e-05
      %v2666 = vadd.f32 %v2650, 1e-05
      %v2667 = vadd.f32 %v2651, 1e-05
      %v2668 = vadd.f32 %v2652, 1e-05
      %v2669 = vadd.f32 %v2653, 1e-05
      %v2670 = vadd.f32 %v2654, 1e-05
      %v2671 = vadd.f32 %v2655, 1e-05
      %v2672 = vadd.f32 %v2656, 1e-05
      %v2673 = vrsqrt.pop %v2665
      %v2674 = vrsqrt.pop %v2666
      %v2675 = vrsqrt.pop %v2667
      %v2676 = vrsqrt.pop %v2668
      %v2677 = vrsqrt.pop %v2669
      %v2678 = vrsqrt.pop %v2670
      %v2679 = vrsqrt.pop %v2671
      %v2680 = vrsqrt.pop %v2672
      %v2681 = vmul.f32 %v2657, %v2673
      %v2682 = vmul.f32 %v2658, %v2674
      %v2683 = vmul.f32 %v2659, %v2675
      %v2684 = vmul.f32 %v2660, %v2676
      %v2685 = vmul.f32 %v2661, %v2677
      %v2686 = vmul.f32 %v2662, %v2678
      %v2687 = vmul.f32 %v2663, %v2679
      %v2688 = vmul.f32 %v2664, %v2680
      %v2689 = vld [vmem:[%s2 + $0x9] sm:$0x1]
      %v2690 = vlaneseq
      %v2691 = vshrl.u32 %v2690, 7
      %v2692 = vsub.s32 0, %v2691
      %v2693 = vrot.slane %v2689, %v2692
      %v2694 = vmul.f32 %v2681, %v2693
      %v2695 = vmul.f32 %v2682, %v2693
      %v2696 = vmul.f32 %v2683, %v2693
      %v2697 = vmul.f32 %v2684, %v2693
      %v2698 = vmul.f32 %v2685, %v2693
      %v2699 = vmul.f32 %v2686, %v2693
      %v2700 = vmul.f32 %v2687, %v2693
      %v2701 = vmul.f32 %v2688, %v2693
      %v2702 = vld [vmem:[%s2 + $0xa] sm:$0x1]
      %v2703 = vlaneseq
      %v2704 = vshrl.u32 %v2703, 7
      %v2705 = vsub.s32 0, %v2704
      %v2706 = vrot.slane %v2702, %v2705
      %v2707 = vadd.f32 %v2694, %v2706
      %v2708 = vadd.f32 %v2695, %v2706
      %v2709 = vadd.f32 %v2696, %v2706
      %v2710 = vadd.f32 %v2697, %v2706
      %v2711 = vadd.f32 %v2698, %v2706
      %v2712 = vadd.f32 %v2699, %v2706
      %v2713 = vadd.f32 %v2700, %v2706
      %v2714 = vadd.f32 %v2701, %v2706
      %2715 = vst [vmem:[#allocation3] sm:$0xff] 0.0
      %2716 = vst [vmem:[#allocation3 + $0x8] sm:$0x3] 0.0
      %2717 = vst [vmem:[#allocation3 + $0x10] sm:$0xff] 0.0
      %2718 = vst [vmem:[#allocation3 + $0x18] sm:$0x3] 0.0
      %2719 = vst [vmem:[#allocation3 + $0x20] sm:$0xff] 0.0
      %2720 = vst [vmem:[#allocation3 + $0x28] sm:$0x3] 0.0
      %2721 = vst [vmem:[#allocation3 + $0x30] sm:$0xff] 0.0
      %2722 = vst [vmem:[#allocation3 + $0x38] sm:$0x3] 0.0
      %2723 = vst [vmem:[#allocation3 + $0x40] sm:$0xff] 0.0
      %2724 = vst [vmem:[#allocation3 + $0x48] sm:$0x3] 0.0
      %2725 = vst [vmem:[#allocation3 + $0x50] sm:$0xff] 0.0
      %2726 = vst [vmem:[#allocation3 + $0x58] sm:$0x3] 0.0
      %2727 = vst [vmem:[#allocation3 + $0x60] sm:$0xff] 0.0
      %2728 = vst [vmem:[#allocation3 + $0x68] sm:$0x3] 0.0
      %2729 = vst [vmem:[#allocation3 + $0x70] sm:$0xff] 0.0
      %2730 = vst [vmem:[#allocation3 + $0x78] sm:$0x3] 0.0
      %2731 = vst [vmem:[#allocation3 + $0x80] sm:$0xff] 0.0
      %2732 = vst [vmem:[#allocation3 + $0x88] sm:$0x3] 0.0
      %2733 = vst [vmem:[#allocation3 + $0x90] sm:$0xff] 0.0
      %2734 = vst [vmem:[#allocation3 + $0x98] sm:$0x3] 0.0
      %s2735 = scalar_lea.vmem [#allocation3], 16
      %2736 = vst [vmem:[%s2735 + $0x1] sm:$0xff] %v2707
      %2737 = vst [vmem:[%s2735 + $0x11] sm:$0xff] %v2708
      %2738 = vst [vmem:[%s2735 + $0x21] sm:$0xff] %v2709
      %2739 = vst [vmem:[%s2735 + $0x31] sm:$0xff] %v2710
      %2740 = vst [vmem:[%s2735 + $0x41] sm:$0xff] %v2711
      %2741 = vst [vmem:[%s2735 + $0x51] sm:$0xff] %v2712
      %2742 = vst [vmem:[%s2735 + $0x61] sm:$0xff] %v2713
      %2743 = vst [vmem:[%s2735 + $0x71] sm:$0xff] %v2714
      %v2744 = vld [vmem:[#allocation3] sm:$0xff]
      %v2745 = vld [vmem:[#allocation3 + $0x10] sm:$0xff]
      %v2746 = vld [vmem:[#allocation3 + $0x20] sm:$0xff]
      %v2747 = vld [vmem:[#allocation3 + $0x30] sm:$0xff]
      %v2748 = vld [vmem:[#allocation3 + $0x40] sm:$0xff]
      %v2749 = vld [vmem:[#allocation3 + $0x50] sm:$0xff]
      %v2750 = vld [vmem:[#allocation3 + $0x60] sm:$0xff]
      %v2751 = vld [vmem:[#allocation3 + $0x70] sm:$0xff]
      %v2752 = vld [vmem:[%s2 + $0x17] sm:$0x1]
      %v2753 = vlaneseq
      %v2754 = vshrl.u32 %v2753, 7
      %v2755 = vsub.s32 0, %v2754
      %v2756 = vrot.slane %v2752, %v2755
      %v2757 = vmul.f32 %v2744, %v2756
      %v2758 = vmul.f32 %v2745, %v2756
      %v2759 = vmul.f32 %v2746, %v2756
      %v2760 = vmul.f32 %v2747, %v2756
      %v2761 = vmul.f32 %v2748, %v2756
      %v2762 = vmul.f32 %v2749, %v2756
      %v2763 = vmul.f32 %v2750, %v2756
      %v2764 = vmul.f32 %v2751, %v2756
      %v2765 = vadd.f32 %v2757, 0.0
      %v2766 = vadd.f32 %v2758, 0.0
      %v2767 = vadd.f32 %v2759, 0.0
      %v2768 = vadd.f32 %v2760, 0.0
      %v2769 = vadd.f32 %v2761, 0.0
      %v2770 = vadd.f32 %v2762, 0.0
      %v2771 = vadd.f32 %v2763, 0.0
      %v2772 = vadd.f32 %v2764, 0.0
      %v2773 = vld [vmem:[#allocation3 + $0x1] sm:$0xff]
      %v2774 = vld [vmem:[#allocation3 + $0x11] sm:$0xff]
      %v2775 = vld [vmem:[#allocation3 + $0x21] sm:$0xff]
      %v2776 = vld [vmem:[#allocation3 + $0x31] sm:$0xff]
      %v2777 = vld [vmem:[#allocation3 + $0x41] sm:$0xff]
      %v2778 = vld [vmem:[#allocation3 + $0x51] sm:$0xff]
      %v2779 = vld [vmem:[#allocation3 + $0x61] sm:$0xff]
      %v2780 = vld [vmem:[#allocation3 + $0x71] sm:$0xff]
      %v2781 = vld [vmem:[%s2 + $0x18] sm:$0x1]
      %v2782 = vlaneseq
      %v2783 = vshrl.u32 %v2782, 7
      %v2784 = vsub.s32 0, %v2783
      %v2785 = vrot.slane %v2781, %v2784
      %v2786 = vmul.f32 %v2773, %v2785
      %v2787 = vmul.f32 %v2774, %v2785
      %v2788 = vmul.f32 %v2775, %v2785
      %v2789 = vmul.f32 %v2776, %v2785
      %v2790 = vmul.f32 %v2777, %v2785
      %v2791 = vmul.f32 %v2778, %v2785
      %v2792 = vmul.f32 %v2779, %v2785
      %v2793 = vmul.f32 %v2780, %v2785
      %v2794 = vadd.f32 %v2765, %v2786
      %v2795 = vadd.f32 %v2766, %v2787
      %v2796 = vadd.f32 %v2767, %v2788
      %v2797 = vadd.f32 %v2768, %v2789
      %v2798 = vadd.f32 %v2769, %v2790
      %v2799 = vadd.f32 %v2770, %v2791
      %v2800 = vadd.f32 %v2771, %v2792
      %v2801 = vadd.f32 %v2772, %v2793
      %v2802 = vld [vmem:[#allocation3 + $0x2] sm:$0xff]
      %v2803 = vld [vmem:[#allocation3 + $0x12] sm:$0xff]
      %v2804 = vld [vmem:[#allocation3 + $0x22] sm:$0xff]
      %v2805 = vld [vmem:[#allocation3 + $0x32] sm:$0xff]
      %v2806 = vld [vmem:[#allocation3 + $0x42] sm:$0xff]
      %v2807 = vld [vmem:[#allocation3 + $0x52] sm:$0xff]
      %v2808 = vld [vmem:[#allocation3 + $0x62] sm:$0xff]
      %v2809 = vld [vmem:[#allocation3 + $0x72] sm:$0xff]
      %v2810 = vld [vmem:[%s2 + $0x19] sm:$0x1]
      %v2811 = vlaneseq
      %v2812 = vshrl.u32 %v2811, 7
      %v2813 = vsub.s32 0, %v2812
      %v2814 = vrot.slane %v2810, %v2813
      %v2815 = vmul.f32 %v2802, %v2814
      %v2816 = vmul.f32 %v2803, %v2814
      %v2817 = vmul.f32 %v2804, %v2814
      %v2818 = vmul.f32 %v2805, %v2814
      %v2819 = vmul.f32 %v2806, %v2814
      %v2820 = vmul.f32 %v2807, %v2814
      %v2821 = vmul.f32 %v2808, %v2814
      %v2822 = vmul.f32 %v2809, %v2814
      %v2823 = vadd.f32 %v2794, %v2815
      %v2824 = vadd.f32 %v2795, %v2816
      %v2825 = vadd.f32 %v2796, %v2817
      %v2826 = vadd.f32 %v2797, %v2818
      %v2827 = vadd.f32 %v2798, %v2819
      %v2828 = vadd.f32 %v2799, %v2820
      %v2829 = vadd.f32 %v2800, %v2821
      %v2830 = vadd.f32 %v2801, %v2822
      %v2831 = vld [vmem:[%s2735] sm:$0xff]
      %v2832 = vld [vmem:[%s2735 + $0x10] sm:$0xff]
      %v2833 = vld [vmem:[%s2735 + $0x20] sm:$0xff]
      %v2834 = vld [vmem:[%s2735 + $0x30] sm:$0xff]
      %v2835 = vld [vmem:[%s2735 + $0x40] sm:$0xff]
      %v2836 = vld [vmem:[%s2735 + $0x50] sm:$0xff]
      %v2837 = vld [vmem:[%s2735 + $0x60] sm:$0xff]
      %v2838 = vld [vmem:[%s2735 + $0x70] sm:$0xff]
      %v2839 = vld [vmem:[%s2 + $0x1a] sm:$0x1]
      %v2840 = vlaneseq
      %v2841 = vshrl.u32 %v2840, 7
      %v2842 = vsub.s32 0, %v2841
      %v2843 = vrot.slane %v2839, %v2842
      %v2844 = vmul.f32 %v2831, %v2843
      %v2845 = vmul.f32 %v2832, %v2843
      %v2846 = vmul.f32 %v2833, %v2843
      %v2847 = vmul.f32 %v2834, %v2843
      %v2848 = vmul.f32 %v2835, %v2843
      %v2849 = vmul.f32 %v2836, %v2843
      %v2850 = vmul.f32 %v2837, %v2843
      %v2851 = vmul.f32 %v2838, %v2843
      %v2852 = vadd.f32 %v2823, %v2844
      %v2853 = vadd.f32 %v2824, %v2845
      %v2854 = vadd.f32 %v2825, %v2846
      %v2855 = vadd.f32 %v2826, %v2847
      %v2856 = vadd.f32 %v2827, %v2848
      %v2857 = vadd.f32 %v2828, %v2849
      %v2858 = vadd.f32 %v2829, %v2850
      %v2859 = vadd.f32 %v2830, %v2851
      %v2860 = vld [vmem:[%s2735 + $0x1] sm:$0xff]
      %v2861 = vld [vmem:[%s2735 + $0x11] sm:$0xff]
      %v2862 = vld [vmem:[%s2735 + $0x21] sm:$0xff]
      %v2863 = vld [vmem:[%s2735 + $0x31] sm:$0xff]
      %v2864 = vld [vmem:[%s2735 + $0x41] sm:$0xff]
      %v2865 = vld [vmem:[%s2735 + $0x51] sm:$0xff]
      %v2866 = vld [vmem:[%s2735 + $0x61] sm:$0xff]
      %v2867 = vld [vmem:[%s2735 + $0x71] sm:$0xff]
      %v2868 = vld [vmem:[%s2 + $0x1b] sm:$0x1]
      %v2869 = vlaneseq
      %v2870 = vshrl.u32 %v2869, 7
      %v2871 = vsub.s32 0, %v2870
      %v2872 = vrot.slane %v2868, %v2871
      %v2873 = vmul.f32 %v2860, %v2872
      %v2874 = vmul.f32 %v2861, %v2872
      %v2875 = vmul.f32 %v2862, %v2872
      %v2876 = vmul.f32 %v2863, %v2872
      %v2877 = vmul.f32 %v2864, %v2872
      %v2878 = vmul.f32 %v2865, %v2872
      %v2879 = vmul.f32 %v2866, %v2872
      %v2880 = vmul.f32 %v2867, %v2872
      %v2881 = vadd.f32 %v2852, %v2873
      %v2882 = vadd.f32 %v2853, %v2874
      %v2883 = vadd.f32 %v2854, %v2875
      %v2884 = vadd.f32 %v2855, %v2876
      %v2885 = vadd.f32 %v2856, %v2877
      %v2886 = vadd.f32 %v2857, %v2878
      %v2887 = vadd.f32 %v2858, %v2879
      %v2888 = vadd.f32 %v2859, %v2880
      %v2889 = vld [vmem:[%s2735 + $0x2] sm:$0xff]
      %v2890 = vld [vmem:[%s2735 + $0x12] sm:$0xff]
      %v2891 = vld [vmem:[%s2735 + $0x22] sm:$0xff]
      %v2892 = vld [vmem:[%s2735 + $0x32] sm:$0xff]
      %v2893 = vld [vmem:[%s2735 + $0x42] sm:$0xff]
      %v2894 = vld [vmem:[%s2735 + $0x52] sm:$0xff]
      %v2895 = vld [vmem:[%s2735 + $0x62] sm:$0xff]
      %v2896 = vld [vmem:[%s2735 + $0x72] sm:$0xff]
      %v2897 = vld [vmem:[%s2 + $0x1c] sm:$0x1]
      %v2898 = vlaneseq
      %v2899 = vshrl.u32 %v2898, 7
      %v2900 = vsub.s32 0, %v2899
      %v2901 = vrot.slane %v2897, %v2900
      %v2902 = vmul.f32 %v2889, %v2901
      %v2903 = vmul.f32 %v2890, %v2901
      %v2904 = vmul.f32 %v2891, %v2901
      %v2905 = vmul.f32 %v2892, %v2901
      %v2906 = vmul.f32 %v2893, %v2901
      %v2907 = vmul.f32 %v2894, %v2901
      %v2908 = vmul.f32 %v2895, %v2901
      %v2909 = vmul.f32 %v2896, %v2901
      %v2910 = vadd.f32 %v2881, %v2902
      %v2911 = vadd.f32 %v2882, %v2903
      %v2912 = vadd.f32 %v2883, %v2904
      %v2913 = vadd.f32 %v2884, %v2905
      %v2914 = vadd.f32 %v2885, %v2906
      %v2915 = vadd.f32 %v2886, %v2907
      %v2916 = vadd.f32 %v2887, %v2908
      %v2917 = vadd.f32 %v2888, %v2909
      %s2918 = scalar_lea.vmem [#allocation3], 32
      %v2919 = vld [vmem:[%s2918] sm:$0xff]
      %v2920 = vld [vmem:[%s2918 + $0x10] sm:$0xff]
      %v2921 = vld [vmem:[%s2918 + $0x20] sm:$0xff]
      %v2922 = vld [vmem:[%s2918 + $0x30] sm:$0xff]
      %v2923 = vld [vmem:[%s2918 + $0x40] sm:$0xff]
      %v2924 = vld [vmem:[%s2918 + $0x50] sm:$0xff]
      %v2925 = vld [vmem:[%s2918 + $0x60] sm:$0xff]
      %v2926 = vld [vmem:[%s2918 + $0x70] sm:$0xff]
      %v2927 = vld [vmem:[%s2 + $0x1d] sm:$0x1]
      %v2928 = vlaneseq
      %v2929 = vshrl.u32 %v2928, 7
      %v2930 = vsub.s32 0, %v2929
      %v2931 = vrot.slane %v2927, %v2930
      %v2932 = vmul.f32 %v2919, %v2931
      %v2933 = vmul.f32 %v2920, %v2931
      %v2934 = vmul.f32 %v2921, %v2931
      %v2935 = vmul.f32 %v2922, %v2931
      %v2936 = vmul.f32 %v2923, %v2931
      %v2937 = vmul.f32 %v2924, %v2931
      %v2938 = vmul.f32 %v2925, %v2931
      %v2939 = vmul.f32 %v2926, %v2931
      %v2940 = vadd.f32 %v2910, %v2932
      %v2941 = vadd.f32 %v2911, %v2933
      %v2942 = vadd.f32 %v2912, %v2934
      %v2943 = vadd.f32 %v2913, %v2935
      %v2944 = vadd.f32 %v2914, %v2936
      %v2945 = vadd.f32 %v2915, %v2937
      %v2946 = vadd.f32 %v2916, %v2938
      %v2947 = vadd.f32 %v2917, %v2939
      %v2948 = vld [vmem:[%s2918 + $0x1] sm:$0xff]
      %v2949 = vld [vmem:[%s2918 + $0x11] sm:$0xff]
      %v2950 = vld [vmem:[%s2918 + $0x21] sm:$0xff]
      %v2951 = vld [vmem:[%s2918 + $0x31] sm:$0xff]
      %v2952 = vld [vmem:[%s2918 + $0x41] sm:$0xff]
      %v2953 = vld [vmem:[%s2918 + $0x51] sm:$0xff]
      %v2954 = vld [vmem:[%s2918 + $0x61] sm:$0xff]
      %v2955 = vld [vmem:[%s2918 + $0x71] sm:$0xff]
      %v2956 = vld [vmem:[%s2 + $0x1e] sm:$0x1]
      %v2957 = vlaneseq
      %v2958 = vshrl.u32 %v2957, 7
      %v2959 = vsub.s32 0, %v2958
      %v2960 = vrot.slane %v2956, %v2959
      %v2961 = vmul.f32 %v2948, %v2960
      %v2962 = vmul.f32 %v2949, %v2960
      %v2963 = vmul.f32 %v2950, %v2960
      %v2964 = vmul.f32 %v2951, %v2960
      %v2965 = vmul.f32 %v2952, %v2960
      %v2966 = vmul.f32 %v2953, %v2960
      %v2967 = vmul.f32 %v2954, %v2960
      %v2968 = vmul.f32 %v2955, %v2960
      %v2969 = vadd.f32 %v2940, %v2961
      %v2970 = vadd.f32 %v2941, %v2962
      %v2971 = vadd.f32 %v2942, %v2963
      %v2972 = vadd.f32 %v2943, %v2964
      %v2973 = vadd.f32 %v2944, %v2965
      %v2974 = vadd.f32 %v2945, %v2966
      %v2975 = vadd.f32 %v2946, %v2967
      %v2976 = vadd.f32 %v2947, %v2968
      %v2977 = vld [vmem:[%s2918 + $0x2] sm:$0xff]
      %v2978 = vld [vmem:[%s2918 + $0x12] sm:$0xff]
      %v2979 = vld [vmem:[%s2918 + $0x22] sm:$0xff]
      %v2980 = vld [vmem:[%s2918 + $0x32] sm:$0xff]
      %v2981 = vld [vmem:[%s2918 + $0x42] sm:$0xff]
      %v2982 = vld [vmem:[%s2918 + $0x52] sm:$0xff]
      %v2983 = vld [vmem:[%s2918 + $0x62] sm:$0xff]
      %v2984 = vld [vmem:[%s2918 + $0x72] sm:$0xff]
      %v2985 = vld [vmem:[%s2 + $0x1f] sm:$0x1]
      %v2986 = vlaneseq
      %v2987 = vshrl.u32 %v2986, 7
      %v2988 = vsub.s32 0, %v2987
      %v2989 = vrot.slane %v2985, %v2988
      %v2990 = vmul.f32 %v2977, %v2989
      %v2991 = vmul.f32 %v2978, %v2989
      %v2992 = vmul.f32 %v2979, %v2989
      %v2993 = vmul.f32 %v2980, %v2989
      %v2994 = vmul.f32 %v2981, %v2989
      %v2995 = vmul.f32 %v2982, %v2989
      %v2996 = vmul.f32 %v2983, %v2989
      %v2997 = vmul.f32 %v2984, %v2989
      %v2998 = vadd.f32 %v2969, %v2990
      %v2999 = vadd.f32 %v2970, %v2991
      %v3000 = vadd.f32 %v2971, %v2992
      %v3001 = vadd.f32 %v2972, %v2993
      %v3002 = vadd.f32 %v2973, %v2994
      %v3003 = vadd.f32 %v2974, %v2995
      %v3004 = vadd.f32 %v2975, %v2996
      %v3005 = vadd.f32 %v2976, %v2997
      %v3006 = vld [vmem:[%s2 + $0xb] sm:$0x1]
      %v3007 = vlaneseq
      %v3008 = vshrl.u32 %v3007, 7
      %v3009 = vsub.s32 0, %v3008
      %v3010 = vrot.slane %v3006, %v3009
      %v3011 = vadd.f32 %v2998, %v3010
      %v3012 = vadd.f32 %v2999, %v3010
      %v3013 = vadd.f32 %v3000, %v3010
      %v3014 = vadd.f32 %v3001, %v3010
      %v3015 = vadd.f32 %v3002, %v3010
      %v3016 = vadd.f32 %v3003, %v3010
      %v3017 = vadd.f32 %v3004, %v3010
      %v3018 = vadd.f32 %v3005, %v3010
      %v3019 = vmul.f32 %v3011, 0.5
      %v3020 = vmul.f32 %v3012, 0.5
      %v3021 = vmul.f32 %v3013, 0.5
      %v3022 = vmul.f32 %v3014, 0.5
      %v3023 = vmul.f32 %v3015, 0.5
      %v3024 = vmul.f32 %v3016, 0.5
      %v3025 = vmul.f32 %v3017, 0.5
      %v3026 = vmul.f32 %v3018, 0.5
      %v3027 = vmul.f32 %v3011, 0.70710677
      %v3028 = vmul.f32 %v3012, 0.70710677
      %v3029 = vmul.f32 %v3013, 0.70710677
      %v3030 = vmul.f32 %v3014, 0.70710677
      %v3031 = vmul.f32 %v3015, 0.70710677
      %v3032 = vmul.f32 %v3016, 0.70710677
      %v3033 = vmul.f32 %v3017, 0.70710677
      %v3034 = vmul.f32 %v3018, 0.70710677
      %vm3035 = vcmp.ge.f32.partialorder %v3027, 0.0
      %vm3036 = vcmp.ge.f32.partialorder %v3028, 0.0
      %vm3037 = vcmp.ge.f32.partialorder %v3029, 0.0
      %vm3038 = vcmp.ge.f32.partialorder %v3030, 0.0
      %vm3039 = vcmp.ge.f32.partialorder %v3031, 0.0
      %vm3040 = vcmp.ge.f32.partialorder %v3032, 0.0
      %vm3041 = vcmp.ge.f32.partialorder %v3033, 0.0
      %vm3042 = vcmp.ge.f32.partialorder %v3034, 0.0
      %v3043 = vsel %vm3035, 1.0, -1.0
      %v3044 = vsel %vm3036, 1.0, -1.0
      %v3045 = vsel %vm3037, 1.0, -1.0
      %v3046 = vsel %vm3038, 1.0, -1.0
      %v3047 = vsel %vm3039, 1.0, -1.0
      %v3048 = vsel %vm3040, 1.0, -1.0
      %v3049 = vsel %vm3041, 1.0, -1.0
      %v3050 = vsel %vm3042, 1.0, -1.0
      %v3051 = vand.u32 2147483647, %v3027
      %v3052 = vand.u32 2147483647, %v3028
      %v3053 = vand.u32 2147483647, %v3029
      %v3054 = vand.u32 2147483647, %v3030
      %v3055 = vand.u32 2147483647, %v3031
      %v3056 = vand.u32 2147483647, %v3032
      %v3057 = vand.u32 2147483647, %v3033
      %v3058 = vand.u32 2147483647, %v3034
      %v3059 = vmul.f32 %v3051, 0.3275911
      %v3060 = vmul.f32 %v3052, 0.3275911
      %v3061 = vmul.f32 %v3053, 0.3275911
      %v3062 = vmul.f32 %v3054, 0.3275911
      %v3063 = vmul.f32 %v3055, 0.3275911
      %v3064 = vmul.f32 %v3056, 0.3275911
      %v3065 = vmul.f32 %v3057, 0.3275911
      %v3066 = vmul.f32 %v3058, 0.3275911
      %v3067 = vadd.f32 %v3059, 1.0
      %v3068 = vadd.f32 %v3060, 1.0
      %v3069 = vadd.f32 %v3061, 1.0
      %v3070 = vadd.f32 %v3062, 1.0
      %v3071 = vadd.f32 %v3063, 1.0
      %v3072 = vadd.f32 %v3064, 1.0
      %v3073 = vadd.f32 %v3065, 1.0
      %v3074 = vadd.f32 %v3066, 1.0
      %v3075 = vrcp.pop %v3067
      %v3076 = vmul.f32 1.0, %v3075
      %v3077 = vrcp.pop %v3068
      %v3078 = vmul.f32 1.0, %v3077
      %v3079 = vrcp.pop %v3069
      %v3080 = vmul.f32 1.0, %v3079
      %v3081 = vrcp.pop %v3070
      %v3082 = vmul.f32 1.0, %v3081
      %v3083 = vrcp.pop %v3071
      %v3084 = vmul.f32 1.0, %v3083
      %v3085 = vrcp.pop %v3072
      %v3086 = vmul.f32 1.0, %v3085
      %v3087 = vrcp.pop %v3073
      %v3088 = vmul.f32 1.0, %v3087
      %v3089 = vrcp.pop %v3074
      %v3090 = vmul.f32 1.0, %v3089
      %v3091 = vmul.f32 %v3076, 1.0614054
      %v3092 = vmul.f32 %v3078, 1.0614054
      %v3093 = vmul.f32 %v3080, 1.0614054
      %v3094 = vmul.f32 %v3082, 1.0614054
      %v3095 = vmul.f32 %v3084, 1.0614054
      %v3096 = vmul.f32 %v3086, 1.0614054
      %v3097 = vmul.f32 %v3088, 1.0614054
      %v3098 = vmul.f32 %v3090, 1.0614054
      %v3099 = vadd.f32 %v3091, -1.4531521
      %v3100 = vadd.f32 %v3092, -1.4531521
      %v3101 = vadd.f32 %v3093, -1.4531521
      %v3102 = vadd.f32 %v3094, -1.4531521
      %v3103 = vadd.f32 %v3095, -1.4531521
      %v3104 = vadd.f32 %v3096, -1.4531521
      %v3105 = vadd.f32 %v3097, -1.4531521
      %v3106 = vadd.f32 %v3098, -1.4531521
      %v3107 = vmul.f32 %v3099, %v3076
      %v3108 = vmul.f32 %v3100, %v3078
      %v3109 = vmul.f32 %v3101, %v3080
      %v3110 = vmul.f32 %v3102, %v3082
      %v3111 = vmul.f32 %v3103, %v3084
      %v3112 = vmul.f32 %v3104, %v3086
      %v3113 = vmul.f32 %v3105, %v3088
      %v3114 = vmul.f32 %v3106, %v3090
      %v3115 = vadd.f32 %v3107, 1.4214138
      %v3116 = vadd.f32 %v3108, 1.4214138
      %v3117 = vadd.f32 %v3109, 1.4214138
      %v3118 = vadd.f32 %v3110, 1.4214138
      %v3119 = vadd.f32 %v3111, 1.4214138
      %v3120 = vadd.f32 %v3112, 1.4214138
      %v3121 = vadd.f32 %v3113, 1.4214138
      %v3122 = vadd.f32 %v3114, 1.4214138
      %v3123 = vmul.f32 %v3115, %v3076
      %v3124 = vmul.f32 %v3116, %v3078
      %v3125 = vmul.f32 %v3117, %v3080
      %v3126 = vmul.f32 %v3118, %v3082
      %v3127 = vmul.f32 %v3119, %v3084
      %v3128 = vmul.f32 %v3120, %v3086
      %v3129 = vmul.f32 %v3121, %v3088
      %v3130 = vmul.f32 %v3122, %v3090
      %v3131 = vadd.f32 %v3123, -0.28449672
      %v3132 = vadd.f32 %v3124, -0.28449672
      %v3133 = vadd.f32 %v3125, -0.28449672
      %v3134 = vadd.f32 %v3126, -0.28449672
      %v3135 = vadd.f32 %v3127, -0.28449672
      %v3136 = vadd.f32 %v3128, -0.28449672
      %v3137 = vadd.f32 %v3129, -0.28449672
      %v3138 = vadd.f32 %v3130, -0.28449672
      %v3139 = vmul.f32 %v3131, %v3076
      %v3140 = vmul.f32 %v3132, %v3078
      %v3141 = vmul.f32 %v3133, %v3080
      %v3142 = vmul.f32 %v3134, %v3082
      %v3143 = vmul.f32 %v3135, %v3084
      %v3144 = vmul.f32 %v3136, %v3086
      %v3145 = vmul.f32 %v3137, %v3088
      %v3146 = vmul.f32 %v3138, %v3090
      %v3147 = vadd.f32 %v3139, 0.2548296
      %v3148 = vadd.f32 %v3140, 0.2548296
      %v3149 = vadd.f32 %v3141, 0.2548296
      %v3150 = vadd.f32 %v3142, 0.2548296
      %v3151 = vadd.f32 %v3143, 0.2548296
      %v3152 = vadd.f32 %v3144, 0.2548296
      %v3153 = vadd.f32 %v3145, 0.2548296
      %v3154 = vadd.f32 %v3146, 0.2548296
      %v3155 = vmul.f32 %v3147, %v3076
      %v3156 = vmul.f32 %v3148, %v3078
      %v3157 = vmul.f32 %v3149, %v3080
      %v3158 = vmul.f32 %v3150, %v3082
      %v3159 = vmul.f32 %v3151, %v3084
      %v3160 = vmul.f32 %v3152, %v3086
      %v3161 = vmul.f32 %v3153, %v3088
      %v3162 = vmul.f32 %v3154, %v3090
      %v3163 = vsub.f32 0.0, %v3051
      %v3164 = vsub.f32 0.0, %v3052
      %v3165 = vsub.f32 0.0, %v3053
      %v3166 = vsub.f32 0.0, %v3054
      %v3167 = vsub.f32 0.0, %v3055
      %v3168 = vsub.f32 0.0, %v3056
      %v3169 = vsub.f32 0.0, %v3057
      %v3170 = vsub.f32 0.0, %v3058
      %v3171 = vmul.f32 %v3163, %v3051
      %v3172 = vmul.f32 %v3164, %v3052
      %v3173 = vmul.f32 %v3165, %v3053
      %v3174 = vmul.f32 %v3166, %v3054
      %v3175 = vmul.f32 %v3167, %v3055
      %v3176 = vmul.f32 %v3168, %v3056
      %v3177 = vmul.f32 %v3169, %v3057
      %v3178 = vmul.f32 %v3170, %v3058
      %v3179 = vmul.f32 %v3171, 1.442695
      %v3180 = vpow.pop %v3179
      %v3181 = vmul.f32 %v3172, 1.442695
      %v3182 = vpow.pop %v3181
      %v3183 = vmul.f32 %v3173, 1.442695
      %v3184 = vpow.pop %v3183
      %v3185 = vmul.f32 %v3174, 1.442695
      %v3186 = vpow.pop %v3185
      %v3187 = vmul.f32 %v3175, 1.442695
      %v3188 = vpow.pop %v3187
      %v3189 = vmul.f32 %v3176, 1.442695
      %v3190 = vpow.pop %v3189
      %v3191 = vmul.f32 %v3177, 1.442695
      %v3192 = vpow.pop %v3191
      %v3193 = vmul.f32 %v3178, 1.442695
      %v3194 = vpow.pop %v3193
      %v3195 = vmul.f32 %v3155, %v3180
      %v3196 = vmul.f32 %v3156, %v3182
      %v3197 = vmul.f32 %v3157, %v3184
      %v3198 = vmul.f32 %v3158, %v3186
      %v3199 = vmul.f32 %v3159, %v3188
      %v3200 = vmul.f32 %v3160, %v3190
      %v3201 = vmul.f32 %v3161, %v3192
      %v3202 = vmul.f32 %v3162, %v3194
      %v3203 = vsub.f32 1.0, %v3195
      %v3204 = vsub.f32 1.0, %v3196
      %v3205 = vsub.f32 1.0, %v3197
      %v3206 = vsub.f32 1.0, %v3198
      %v3207 = vsub.f32 1.0, %v3199
      %v3208 = vsub.f32 1.0, %v3200
      %v3209 = vsub.f32 1.0, %v3201
      %v3210 = vsub.f32 1.0, %v3202
      %v3211 = vmul.f32 %v3043, %v3203
      %v3212 = vmul.f32 %v3044, %v3204
      %v3213 = vmul.f32 %v3045, %v3205
      %v3214 = vmul.f32 %v3046, %v3206
      %v3215 = vmul.f32 %v3047, %v3207
      %v3216 = vmul.f32 %v3048, %v3208
      %v3217 = vmul.f32 %v3049, %v3209
      %v3218 = vmul.f32 %v3050, %v3210
      %v3219 = vadd.f32 %v3211, 1.0
      %v3220 = vadd.f32 %v3212, 1.0
      %v3221 = vadd.f32 %v3213, 1.0
      %v3222 = vadd.f32 %v3214, 1.0
      %v3223 = vadd.f32 %v3215, 1.0
      %v3224 = vadd.f32 %v3216, 1.0
      %v3225 = vadd.f32 %v3217, 1.0
      %v3226 = vadd.f32 %v3218, 1.0
      %v3227 = vmul.f32 %v3019, %v3219
      %v3228 = vmul.f32 %v3020, %v3220
      %v3229 = vmul.f32 %v3021, %v3221
      %v3230 = vmul.f32 %v3022, %v3222
      %v3231 = vmul.f32 %v3023, %v3223
      %v3232 = vmul.f32 %v3024, %v3224
      %v3233 = vmul.f32 %v3025, %v3225
      %v3234 = vmul.f32 %v3026, %v3226
      %v3235 = vld [vmem:[%s1 + $0x40] sm:$0xff]
      %v3236 = vld [vmem:[%s1 + $0x88] sm:$0xff]
      %v3237 = vld [vmem:[%s1 + $0xd0] sm:$0xff]
      %v3238 = vld [vmem:[%s1 + $0x118] sm:$0xff]
      %v3239 = vld [vmem:[%s1 + $0x160] sm:$0xff]
      %v3240 = vld [vmem:[%s1 + $0x1a8] sm:$0xff]
      %v3241 = vld [vmem:[%s1 + $0x1f0] sm:$0xff]
      %v3242 = vld [vmem:[%s1 + $0x238] sm:$0xff]
      %v3243 = vld [vmem:[%s1 + $0x280] sm:$0xff]
      %v3244 = vld [vmem:[%s1 + $0x2c8] sm:$0xff]
      %v3245 = vld [vmem:[%s1 + $0x310] sm:$0xff]
      %v3246 = vld [vmem:[%s1 + $0x358] sm:$0xff]
      %v3247 = vld [vmem:[%s1 + $0x3a0] sm:$0xff]
      %v3248 = vld [vmem:[%s1 + $0x3e8] sm:$0xff]
      %v3249 = vld [vmem:[%s1 + $0x430] sm:$0xff]
      %v3250 = vld [vmem:[%s1 + $0x478] sm:$0xff]
      %v3251 = vld [vmem:[%s2 + $0xc] sm:$0x1]
      %v3252 = vlaneseq
      %v3253 = vshrl.u32 %v3252, 7
      %v3254 = vsub.s32 0, %v3253
      %v3255 = vrot.slane %v3251, %v3254
      %3256 = vmatprep.subr.mxu0 0.0
      %3257 = vmatpush1.msra.mxu0 %v3235
      %3258 = vmatprep.subr.mxu0 0.0
      %3259 = vmatpush1.msra.mxu0 %v3236
      %3260 = vmatprep.subr.mxu0 0.0
      %3261 = vmatpush1.msra.mxu0 %v3237
      %3262 = vmatprep.subr.mxu0 0.0
      %3263 = vmatpush1.msra.mxu0 %v3238
      %3264 = vmatprep.subr.mxu0 0.0
      %3265 = vmatpush1.msra.mxu0 %v3239
      %3266 = vmatprep.subr.mxu0 0.0
      %3267 = vmatpush1.msra.mxu0 %v3240
      %3268 = vmatprep.subr.mxu0 0.0
      %3269 = vmatpush1.msra.mxu0 %v3241
      %3270 = vmatprep.subr.mxu0 0.0
      %3271 = vmatpush1.msra.mxu0 %v3242
      %3272 = vmatprep.subr.mxu0 0.0
      %3273 = vmatpush1.msra.mxu0 %v3243
      %3274 = vmatprep.subr.mxu0 0.0
      %3275 = vmatpush1.msra.mxu0 %v3244
      %3276 = vmatprep.subr.mxu0 0.0
      %3277 = vmatpush1.msra.mxu0 %v3245
      %3278 = vmatprep.subr.mxu0 0.0
      %3279 = vmatpush1.msra.mxu0 %v3246
      %3280 = vmatprep.subr.mxu0 0.0
      %3281 = vmatpush1.msra.mxu0 %v3247
      %3282 = vmatprep.subr.mxu0 0.0
      %3283 = vmatpush1.msra.mxu0 %v3248
      %3284 = vmatprep.subr.mxu0 0.0
      %3285 = vmatpush1.msra.mxu0 %v3249
      %3286 = vmatprep.subr.mxu0 0.0
      %3287 = vmatpush1.msra.mxu0 %v3250
      %3288 = vmatprep.subr.mxu0 0.0
      %3289 = vmatpush1.msra.mxu0 0.0
      %3290 = vmatprep.subr.mxu0 0.0
      %3291 = vmatpush1.msra.mxu0 0.0
      %3292 = vmatprep.subr.mxu0 0.0
      %3293 = vmatpush1.msra.mxu0 0.0
      %3294 = vmatprep.subr.mxu0 0.0
      %3295 = vmatpush1.msra.mxu0 0.0
      %3296 = vmatprep.subr.mxu0 0.0
      %3297 = vmatpush1.msra.mxu0 0.0
      %3298 = vmatprep.subr.mxu0 0.0
      %3299 = vmatpush1.msra.mxu0 0.0
      %3300 = vmatprep.subr.mxu0 0.0
      %3301 = vmatpush1.msra.mxu0 0.0
      %3302 = vmatprep.subr.mxu0 0.0
      %3303 = vmatpush1.msra.mxu0 0.0
      %3304 = vmatprep.subr.mxu0 0.0
      %3305 = vmatpush1.msra.mxu0 0.0
      %3306 = vmatprep.subr.mxu0 0.0
      %3307 = vmatpush1.msra.mxu0 0.0
      %3308 = vmatprep.subr.mxu0 0.0
      %3309 = vmatpush1.msra.mxu0 0.0
      %3310 = vmatprep.subr.mxu0 0.0
      %3311 = vmatpush1.msra.mxu0 0.0
      %3312 = vmatprep.subr.mxu0 0.0
      %3313 = vmatpush1.msra.mxu0 0.0
      %3314 = vmatprep.subr.mxu0 0.0
      %3315 = vmatpush1.msra.mxu0 0.0
      %3316 = vmatprep.subr.mxu0 0.0
      %3317 = vmatpush1.msra.mxu0 0.0
      %3318 = vmatprep.subr.mxu0 0.0
      %3319 = vmatpush1.msra.mxu0 0.0
      %3320 = vmatprep.mubr.f32.mxu0 0.0
      %3321 = vmatmul.mubr.f32.gmra.mrb[0].mxu0 %v3227
      %v3322 = vpop.f32.mrb[0].mxu0
      %v3323 = vadd.f32 %v3255, %v3322
      %v3324 = vpop.f32.mrb[0].mxu0
      %3325 = vmatprep.mubr.f32.mxu0 0.0
      %3326 = vmatmul.mubr.f32.gmra.mrb[0].mxu0 %v3228
      %v3327 = vpop.f32.mrb[0].mxu0
      %v3328 = vadd.f32 %v3255, %v3327
      %v3329 = vpop.f32.mrb[0].mxu0
      %3330 = vmatprep.mubr.f32.mxu0 0.0
      %3331 = vmatmul.mubr.f32.gmra.mrb[0].mxu0 %v3229
      %v3332 = vpop.f32.mrb[0].mxu0
      %v3333 = vadd.f32 %v3255, %v3332
      %v3334 = vpop.f32.mrb[0].mxu0
      %3335 = vmatprep.mubr.f32.mxu0 0.0
      %3336 = vmatmul.mubr.f32.gmra.mrb[0].mxu0 %v3230
      %v3337 = vpop.f32.mrb[0].mxu0
      %v3338 = vadd.f32 %v3255, %v3337
      %v3339 = vpop.f32.mrb[0].mxu0
      %3340 = vmatprep.mubr.f32.mxu0 0.0
      %3341 = vmatmul.mubr.f32.gmra.mrb[0].mxu0 %v3231
      %v3342 = vpop.f32.mrb[0].mxu0
      %v3343 = vadd.f32 %v3255, %v3342
      %v3344 = vpop.f32.mrb[0].mxu0
      %3345 = vmatprep.mubr.f32.mxu0 0.0
      %3346 = vmatmul.mubr.f32.gmra.mrb[0].mxu0 %v3232
      %v3347 = vpop.f32.mrb[0].mxu0
      %v3348 = vadd.f32 %v3255, %v3347
      %v3349 = vpop.f32.mrb[0].mxu0
      %3350 = vmatprep.mubr.f32.mxu0 0.0
      %3351 = vmatmul.mubr.f32.gmra.mrb[0].mxu0 %v3233
      %v3352 = vpop.f32.mrb[0].mxu0
      %v3353 = vadd.f32 %v3255, %v3352
      %v3354 = vpop.f32.mrb[0].mxu0
      %3355 = vmatprep.mubr.f32.mxu0 0.0
      %3356 = vmatmul.mubr.f32.gmra.mrb[0].mxu0 %v3234
      %v3357 = vpop.f32.mrb[0].mxu0
      %v3358 = vadd.f32 %v3255, %v3357
      %v3359 = vpop.f32.mrb[0].mxu0
      %3360 = vdwg.mxu0
      %v3361 = vadd.f32 %v3323, %v2707
      %v3362 = vadd.f32 %v3328, %v2708
      %v3363 = vadd.f32 %v3333, %v2709
      %v3364 = vadd.f32 %v3338, %v2710
      %v3365 = vadd.f32 %v3343, %v2711
      %v3366 = vadd.f32 %v3348, %v2712
      %v3367 = vadd.f32 %v3353, %v2713
      %v3368 = vadd.f32 %v3358, %v2714
      %3369 = vst [vmem:[%s170] sm:$0xff] %v3361
      %3370 = vst [vmem:[%s170 + $0x8] sm:$0xff] %v3362
      %3371 = vst [vmem:[%s170 + $0x10] sm:$0xff] %v3363
      %3372 = vst [vmem:[%s170 + $0x18] sm:$0xff] %v3364
      %3373 = vst [vmem:[%s170 + $0x20] sm:$0xff] %v3365
      %3374 = vst [vmem:[%s170 + $0x28] sm:$0xff] %v3366
      %3375 = vst [vmem:[%s170 + $0x30] sm:$0xff] %v3367
      %3376 = vst [vmem:[%s170 + $0x38] sm:$0xff] %v3368
      %p3377 = scmp.lt.s32.totalorder %s14, 1
      %s3378 = scalar_select %p3377, %s14, 1
      %s3379 = smul.addr %s3378, 8
      %s3380 = smul.addr %s3379, 8
      %s3381 = scalar_lea.vmem %s3, %s3380
      // Predicated region
      $region33: #{gcm_forward.1} parent=31 // pred_check
        %p3382 = pneg %p100
      $region34: #{gcm_forward.1} parent=31 // pred_check_branch
        %3384 = sbr.rel (%p3382) target = $region36
      $region35: #{gcm_forward.1} parent=31 // pred_region
        _
      $region36: #{gcm_forward.1} parent=31 // pred_fallthru
        _
    $region32: #{gcm_forward.1} parent=5 // pred_fallthru
      _
    %p3385 = scmp.le.s32.totalorder 2, %s9
    // Predicated region
    $region37: #{gcm_forward.1} parent=5 // pred_check
      %p3386 = pneg %p3385
    $region38: #{gcm_forward.1} parent=5 // pred_check_branch
      %3388 = sbr.rel (%p3386) target = $region40
    $region39: #{gcm_forward.1} parent=5 // pred_region
      %s3389 = ssub.s32 %s9, 2
      // Predicated region
      $region41: #{gcm_forward.1} parent=39 // pred_check
        %p3390 = pneg %p106
      $region42: #{gcm_forward.1} parent=39 // pred_check_branch
        %3392 = sbr.rel (%p3390) target = $region44
      $region43: #{gcm_forward.1} parent=39 // pred_region
        %p3393 = scmp.lt.s32.totalorder %s15, 1
        %s3394 = scalar_select %p3393, %s15, 1
        %s3395 = smul.addr %s3394, 8
        %s3396 = smul.addr %s3395, 8
        %s3397 = scalar_lea.vmem %s3, %s3396
      $region44: #{gcm_forward.1} parent=39 // pred_fallthru
        _
    $region40: #{gcm_forward.1} parent=5 // pred_fallthru
      _
  $region6: #{gcm_forward.1} parent=0 // loop_footer
    %s13 = sadd.s32 1, %s9
  $region7: #{gcm_forward.1} parent=0 // loop_footer_branch
    %8 = sbr.rel target = $region3
  $region8: #{gcm_forward.1} parent=0 // loop_exit
    _

</llo_original>
